<compile_context>
chip_gen: v7x
topology: tpu7x:2x2x1
jax: 0.10.0
libtpu: 0.0.40
codegen_flags: <defaults>
</compile_context>

<pallas_src>
import functools

import jax
import jax.numpy as jnp
from jax.experimental import pallas as pl
from jax.experimental.pallas import tpu as pltpu


LATENT = 32
CHANS = (8, 16, 32, 64)       # encoder channel widths (decoder mirrors them)
IMG = 64
C_IN = 3
FEAT = CHANS[-1] * 4 * 4      # flattened encoder feature size


def _round_up(x, m):
    return (x + m - 1) // m * m


# ----------------------------------------------------------------------------
# Fused GEMM + bias + activation Pallas kernel.
#   out = act(A @ B + bias)
#   A: (M, K) with M <= 128 (weight rows / batch rows) -- single row block.
#   B: (K, N) with large, lane-dense N (tiled by tn, multiple of 128/256).
#   K is NOT tiled: the whole reduction lives in one VMEM tile (K <= 1024).
#   bias is per-row (M,) for the reoriented conv GEMMs or per-col (N,) for FCs.
# ----------------------------------------------------------------------------
def _gemm_kernel(a_ref, b_ref, bias_ref, o_ref, *, act):
    acc = jnp.dot(a_ref[...], b_ref[...], preferred_element_type=jnp.float32)
    y = acc + bias_ref[...].astype(jnp.float32)   # (M,1) or (1,tn) broadcast
    if act == "relu":
        y = jnp.maximum(y, 0.0)
    elif act == "sigmoid":
        # exact sigmoid via EUP tanh (numerically stable, off the VALU)
        y = 0.5 * (jnp.tanh(0.5 * y) + 1.0)
    o_ref[...] = y.astype(o_ref.dtype)


def gemm_bias_act(a, b, bias, *, act="none", bias_per="col",
                  out_dtype=jnp.float32, tn=512):
    """act(a @ b + bias) with bf16 operands and f32 accumulation."""
    M, K = a.shape
    K2, N = b.shape
    assert K == K2
    a = a.astype(jnp.bfloat16)
    b = b.astype(jnp.bfloat16)
    bias = bias.astype(jnp.float32)

    Mp = _round_up(M, 8)          # sublane pad only (<=128 rows in this model)
    Kp = _round_up(K, 16)         # bf16 sublane packing; K stays a single tile
    tn = min(tn, _round_up(N, 128))
    Np = _round_up(N, tn)

    a_p = jnp.pad(a, ((0, Mp - M), (0, Kp - K)))
    b_p = jnp.pad(b, ((0, Kp - K), (0, Np - N)))
    if bias_per == "row":
        bias_p = jnp.pad(bias, (0, Mp - M)).reshape(Mp, 1)
        bias_spec = pl.BlockSpec((Mp, 1), lambda j: (0, 0))
    else:
        bias_p = jnp.pad(bias, (0, Np - N)).reshape(1, Np)
        bias_spec = pl.BlockSpec((1, tn), lambda j: (0, j))

    out = pl.pallas_call(
        functools.partial(_gemm_kernel, act=act),
        out_shape=jax.ShapeDtypeStruct((Mp, Np), out_dtype),
        grid_spec=pltpu.PrefetchScalarGridSpec(
            num_scalar_prefetch=0,
            grid=(Np // tn,),
            in_specs=[
                pl.BlockSpec((Mp, Kp), lambda j: (0, 0)),   # A: resident
                pl.BlockSpec((Kp, tn), lambda j: (0, j)),   # B: streamed
                bias_spec,
            ],
            out_specs=pl.BlockSpec((Mp, tn), lambda j: (0, j)),
        ),
        compiler_params=pltpu.CompilerParams(
            dimension_semantics=("parallel",),
            vmem_limit_bytes=32 * 1024 * 1024),
    )(a_p, b_p, bias_p)
    return out[:M, :N]


# ----------------------------------------------------------------------------
# Conv / ConvTranspose lowering (channel-major "CNHW" activations).
# ----------------------------------------------------------------------------
def conv2d_s2_k4(x, w, b, act, out_dtype=jnp.bfloat16):
    """4x4 stride-2 pad-1 conv.  x: (Cin, N, H, W); w: torch (Cout, Cin, 4, 4)."""
    cin, n, h, wd = x.shape
    cout = w.shape[0]
    ho, wo = h // 2, wd // 2
    xp = jnp.pad(x, ((0, 0), (0, 0), (1, 1), (1, 1)))
    cols = [xp[:, :, ki:ki + 2 * ho:2, kj:kj + 2 * wo:2]
            for ki in range(4) for kj in range(4)]
    # (Cin, 16, N, Ho, Wo) -> (K = Cin*16, M = N*Ho*Wo), contiguous reshape.
    patches_t = jnp.stack(cols, axis=1).reshape(cin * 16, n * ho * wo)
    w_mat = w.reshape(cout, cin * 16)                      # (Cout, K), same order
    out = gemm_bias_act(w_mat, patches_t, b, act=act, bias_per="row",
                        out_dtype=out_dtype)               # (Cout, M)
    return out.reshape(cout, n, ho, wo)


def conv_transpose2d_s2_k4(x, w_t, b, act, out_dtype=jnp.bfloat16):
    """4x4 stride-2 pad-1 transposed conv via sub-pixel decomposition.
    x: (Cin, N, H, W); w_t: torch (Cin, Cout, 4, 4).  Output (Cout, N, 2H, 2W).

    out[co, n, 2oy+a, 2ox+b] = sum_{ci,di,dj} x_pad[ci, n, oy+a+di, ox+b+dj]
                                              * w_t[ci, co, 3+a-2(a+di), 3+b-2(b+dj)]
    The four (a,b) 2x2 sub-kernels are embedded (zero-padded) in a 3x3 window so
    a single GEMM against one 3x3 im2col handles all parities at once.
    """
    cin, n, h, wd = x.shape
    cout = w_t.shape[1]
    xp = jnp.pad(x, ((0, 0), (0, 0), (1, 1), (1, 1)))
    cols = [xp[:, :, r:r + h, c:c + wd] for r in range(3) for c in range(3)]
    patches_t = jnp.stack(cols, axis=1).reshape(cin * 9, n * h * wd)   # (K, M)

    w_oc = w_t.transpose(1, 0, 2, 3)                       # (Cout, Cin, 4, 4)
    w_big = jnp.zeros((2, 2, cout, cin, 3, 3), w_t.dtype)
    for a in range(2):
        for bb in range(2):
            for di in range(2):
                for dj in range(2):
                    r, c = a + di, bb + dj
                    w_big = w_big.at[a, bb, :, :, r, c].set(
                        w_oc[:, :, 3 + a - 2 * r, 3 + bb - 2 * c])
    w_big = w_big.reshape(4 * cout, cin * 9)               # (4*Cout, K)
    bias4 = jnp.tile(b, 4)

    out = gemm_bias_act(w_big, patches_t, bias4, act=act, bias_per="row",
                        out_dtype=out_dtype)               # (4*Cout, M)
    out = out.reshape(2, 2, cout, n, h, wd)
    out = out.transpose(2, 3, 4, 0, 5, 1).reshape(cout, n, 2 * h, 2 * wd)
    return out


# ----------------------------------------------------------------------------
# Parameter construction (deterministic kaiming-normal, fan_in, relu gain)
# ----------------------------------------------------------------------------
def _kaiming(key, shape, fan_in):
    return jax.random.normal(key, shape, jnp.float32) * jnp.sqrt(2.0 / fan_in)


def init_params(seed=0):
    key = jax.random.PRNGKey(seed)
    keys = iter(jax.random.split(key, 32))
    p = {}
    cin = C_IN
    for li, cout in enumerate(CHANS):
        p[f"enc_w{li}"] = _kaiming(next(keys), (cout, cin, 4, 4), cin * 16)
        p[f"enc_b{li}"] = jnp.zeros((cout,), jnp.float32)
        cin = cout
    p["mu_w"] = _kaiming(next(keys), (LATENT, FEAT), FEAT)
    p["mu_b"] = jnp.zeros((LATENT,), jnp.float32)
    p["lv_w"] = _kaiming(next(keys), (LATENT, FEAT), FEAT)
    p["lv_b"] = jnp.zeros((LATENT,), jnp.float32)
    p["dec_fc_w"] = _kaiming(next(keys), (FEAT, LATENT), LATENT)
    p["dec_fc_b"] = jnp.zeros((FEAT,), jnp.float32)
    dec_out = (CHANS[2], CHANS[1], CHANS[0], C_IN)
    cin = CHANS[-1]
    for li, cout in enumerate(dec_out):
        p[f"dec_w{li}"] = _kaiming(next(keys), (cin, cout, 4, 4), cin * 16)
        p[f"dec_b{li}"] = jnp.zeros((cout,), jnp.float32)
        cin = cout
    return p


# ----------------------------------------------------------------------------
# Forward pass
# ----------------------------------------------------------------------------
def mmdvae_forward(params, x, eps):
    n = x.shape[0]
    # NCHW -> channel-major CNHW once at the module boundary; bf16 activations.
    h = x.transpose(1, 0, 2, 3).astype(jnp.bfloat16)

    # ---- variational encoder ----
    for li in range(len(CHANS)):
        h = conv2d_s2_k4(h, params[f"enc_w{li}"], params[f"enc_b{li}"],
                         act="relu")
    # (C, N, 4, 4) -> (N, FEAT) with torch (c, h, w) flatten order (tiny)
    h_flat = h.transpose(1, 0, 2, 3).reshape(n, FEAT)

    # fused mu / logvar heads: single GEMM, lane width = 2*LATENT
    head_w = jnp.concatenate([params["mu_w"], params["lv_w"]], axis=0)  # (2L, FEAT)
    head_b = jnp.concatenate([params["mu_b"], params["lv_b"]], axis=0)
    heads = gemm_bias_act(h_flat, head_w.T, head_b, act="none",
                          out_dtype=jnp.float32)                        # (N, 2L)
    mu, logvar = heads[:, :LATENT], heads[:, LATENT:]
    z = mu + jnp.exp(0.5 * logvar) * eps          # reparameterization (tiny)

    # ---- decoder ----
    d = gemm_bias_act(z.astype(jnp.bfloat16), params["dec_fc_w"].T,
                      params["dec_fc_b"], act="relu", out_dtype=jnp.bfloat16)
    d = d.reshape(n, CHANS[-1], 4, 4).transpose(1, 0, 2, 3)   # -> (C, N, 4, 4)
    acts = ("relu", "relu", "relu", "sigmoid")
    dts = (jnp.bfloat16, jnp.bfloat16, jnp.bfloat16, jnp.float32)
    for li in range(4):
        d = conv_transpose2d_s2_k4(d, params[f"dec_w{li}"], params[f"dec_b{li}"],
                                   act=acts[li], out_dtype=dts[li])
    return d.transpose(1, 0, 2, 3)                # CNHW -> NCHW, (N, 3, 64, 64)


if __name__ == "__main__":
    key = jax.random.PRNGKey(0)
    kx, keps = jax.random.split(key)
    batch = 2
    x = jax.random.normal(kx, (batch, C_IN, IMG, IMG), jnp.float32)   # NCHW
    eps = jax.random.normal(keps, (batch, LATENT), jnp.float32)
    params = init_params(seed=0)

    out = jax.jit(mmdvae_forward)(params, x, eps)
    out = jax.block_until_ready(out)
    assert out.shape == (batch, C_IN, IMG, IMG), out.shape
    assert bool(jnp.all(jnp.isfinite(out)))
    print("KERNEL_OK")
</pallas_src>

<mosaic_0001>
module attributes {stable_mosaic.version = 11 : i64} {
  func.func @_gemm_kernel(%arg0: i32, %arg1: memref<8x48xbf16, #tpu.memory_space<vmem>>, %arg2: memref<48x512xbf16, #tpu.memory_space<vmem>>, %arg3: memref<8x1xf32, #tpu.memory_space<vmem>>, %arg4: memref<8x512xbf16, #tpu.memory_space<vmem>>) attributes {dimension_semantics = [#tpu.dimension_semantics<parallel>], iteration_bounds = array<i64: 4>, scalar_prefetch = 0 : i64, scratch_operands = 0 : i64, tpu.core_type = #tpu.core_type<tc>, window_params = [{pipeline_mode = #tpu.pipeline_mode<synchronous>, transform_indices = @transform_0, window_bounds = array<i64: 8, 48>}, {transform_indices = @transform_1, window_bounds = array<i64: 48, 512>}, {pipeline_mode = #tpu.pipeline_mode<synchronous>, transform_indices = @transform_2, window_bounds = array<i64: 8, 1>}, {transform_indices = @transform_3, window_bounds = array<i64: 8, 512>}]} {
    %c0 = arith.constant 0 : index
    %c0_0 = arith.constant 0 : index
    %0 = vector.load %arg1[%c0, %c0_0] : memref<8x48xbf16, #tpu.memory_space<vmem>>, vector<8x48xbf16>
    %c0_1 = arith.constant 0 : index
    %c0_2 = arith.constant 0 : index
    %1 = vector.load %arg2[%c0_1, %c0_2] : memref<48x512xbf16, #tpu.memory_space<vmem>>, vector<48x512xbf16>
    %cst = arith.constant dense<0.000000e+00> : vector<8x512xf32>
    %2 = tpu.matmul %0, %1, %cst {dimension_numbers = #tpu.dot_dimension_numbers<[1], [0], [0], [1], [0, 0, 1, 1], [], []>} : vector<8x48xbf16>, vector<48x512xbf16>, vector<8x512xf32> -> vector<8x512xf32>
    %c0_3 = arith.constant 0 : index
    %c0_4 = arith.constant 0 : index
    %3 = vector.load %arg3[%c0_3, %c0_4] : memref<8x1xf32, #tpu.memory_space<vmem>>, vector<8x1xf32>
    %4 = vector.broadcast %3 : vector<8x1xf32> to vector<8x512xf32>
    %5 = arith.addf %2, %4 : vector<8x512xf32>
    %cst_5 = arith.constant 0.000000e+00 : f32
    %6 = vector.broadcast %cst_5 : f32 to vector<8x512xf32>
    %7 = arith.maximumf %5, %6 : vector<8x512xf32>
    %8 = arith.truncf %7 : vector<8x512xf32> to vector<8x512xbf16>
    %c0_6 = arith.constant 0 : index
    %c0_7 = arith.constant 0 : index
    %9 = vector.load %arg4[%c0_6, %c0_7] : memref<8x512xbf16, #tpu.memory_space<vmem>>, vector<8x512xbf16>
    tpu.vector_store %arg4[%c0_6, %c0_7], %8 {strides = array<i32>} : memref<8x512xbf16, #tpu.memory_space<vmem>>, vector<8x512xbf16>,
    return
  }
  func.func @transform_0(%arg0: i32) -> (i32, i32) {
    %c0_i32 = arith.constant 0 : i32
    %c0_i32_0 = arith.constant 0 : i32
    %c0_i32_1 = arith.constant 0 : i32
    return %c0_i32, %c0_i32_0 : i32, i32
  }
  func.func @transform_1(%arg0: i32) -> (i32, i32) {
    %c0_i32 = arith.constant 0 : i32
    %c0_i32_0 = arith.constant 0 : i32
    return %c0_i32, %arg0 : i32, i32
  }
  func.func @transform_2(%arg0: i32) -> (i32, i32) {
    %c0_i32 = arith.constant 0 : i32
    %c0_i32_0 = arith.constant 0 : i32
    %c0_i32_1 = arith.constant 0 : i32
    return %c0_i32, %c0_i32_0 : i32, i32
  }
  func.func @transform_3(%arg0: i32) -> (i32, i32) {
    %c0_i32 = arith.constant 0 : i32
    %c0_i32_0 = arith.constant 0 : i32
    return %c0_i32, %arg0 : i32, i32
  }
}

module attributes {stable_mosaic.version = 11 : i64} {
  func.func @_gemm_kernel(%arg0: i32, %arg1: memref<16x128xbf16, #tpu.memory_space<vmem>>, %arg2: memref<128x512xbf16, #tpu.memory_space<vmem>>, %arg3: memref<16x1xf32, #tpu.memory_space<vmem>>, %arg4: memref<16x512xbf16, #tpu.memory_space<vmem>>) attributes {dimension_semantics = [#tpu.dimension_semantics<parallel>], iteration_bounds = array<i64: 1>, scalar_prefetch = 0 : i64, scratch_operands = 0 : i64, tpu.core_type = #tpu.core_type<tc>, window_params = [{pipeline_mode = #tpu.pipeline_mode<synchronous>, transform_indices = @transform_0, window_bounds = array<i64: 16, 128>}, {transform_indices = @transform_1, window_bounds = array<i64: 128, 512>}, {pipeline_mode = #tpu.pipeline_mode<synchronous>, transform_indices = @transform_2, window_bounds = array<i64: 16, 1>}, {transform_indices = @transform_3, window_bounds = array<i64: 16, 512>}]} {
    %c0 = arith.constant 0 : index
    %c0_0 = arith.constant 0 : index
    %0 = vector.load %arg1[%c0, %c0_0] : memref<16x128xbf16, #tpu.memory_space<vmem>>, vector<16x128xbf16>
    %c0_1 = arith.constant 0 : index
    %c0_2 = arith.constant 0 : index
    %1 = vector.load %arg2[%c0_1, %c0_2] : memref<128x512xbf16, #tpu.memory_space<vmem>>, vector<128x512xbf16>
    %cst = arith.constant dense<0.000000e+00> : vector<16x512xf32>
    %2 = tpu.matmul %0, %1, %cst {dimension_numbers = #tpu.dot_dimension_numbers<[1], [0], [0], [1], [0, 0, 1, 1], [], []>} : vector<16x128xbf16>, vector<128x512xbf16>, vector<16x512xf32> -> vector<16x512xf32>
    %c0_3 = arith.constant 0 : index
    %c0_4 = arith.constant 0 : index
    %3 = vector.load %arg3[%c0_3, %c0_4] : memref<16x1xf32, #tpu.memory_space<vmem>>, vector<16x1xf32>
    %4 = vector.broadcast %3 : vector<16x1xf32> to vector<16x512xf32>
    %5 = arith.addf %2, %4 : vector<16x512xf32>
    %cst_5 = arith.constant 0.000000e+00 : f32
    %6 = vector.broadcast %cst_5 : f32 to vector<16x512xf32>
    %7 = arith.maximumf %5, %6 : vector<16x512xf32>
    %8 = arith.truncf %7 : vector<16x512xf32> to vector<16x512xbf16>
    %c0_6 = arith.constant 0 : index
    %c0_7 = arith.constant 0 : index
    %9 = vector.load %arg4[%c0_6, %c0_7] : memref<16x512xbf16, #tpu.memory_space<vmem>>, vector<16x512xbf16>
    tpu.vector_store %arg4[%c0_6, %c0_7], %8 {strides = array<i32>} : memref<16x512xbf16, #tpu.memory_space<vmem>>, vector<16x512xbf16>,
    return
  }
  func.func @transform_0(%arg0: i32) -> (i32, i32) {
    %c0_i32 = arith.constant 0 : i32
    %c0_i32_0 = arith.constant 0 : i32
    %c0_i32_1 = arith.constant 0 : i32
    return %c0_i32, %c0_i32_0 : i32, i32
  }
  func.func @transform_1(%arg0: i32) -> (i32, i32) {
    %c0_i32 = arith.constant 0 : i32
    %c0_i32_0 = arith.constant 0 : i32
    return %c0_i32, %arg0 : i32, i32
  }
  func.func @transform_2(%arg0: i32) -> (i32, i32) {
    %c0_i32 = arith.constant 0 : i32
    %c0_i32_0 = arith.constant 0 : i32
    %c0_i32_1 = arith.constant 0 : i32
    return %c0_i32, %c0_i32_0 : i32, i32
  }
  func.func @transform_3(%arg0: i32) -> (i32, i32) {
    %c0_i32 = arith.constant 0 : i32
    %c0_i32_0 = arith.constant 0 : i32
    return %c0_i32, %arg0 : i32, i32
  }
}

module attributes {stable_mosaic.version = 11 : i64} {
  func.func @_gemm_kernel(%arg0: i32, %arg1: memref<32x256xbf16, #tpu.memory_space<vmem>>, %arg2: memref<256x128xbf16, #tpu.memory_space<vmem>>, %arg3: memref<32x1xf32, #tpu.memory_space<vmem>>, %arg4: memref<32x128xbf16, #tpu.memory_space<vmem>>) attributes {dimension_semantics = [#tpu.dimension_semantics<parallel>], iteration_bounds = array<i64: 1>, scalar_prefetch = 0 : i64, scratch_operands = 0 : i64, tpu.core_type = #tpu.core_type<tc>, window_params = [{pipeline_mode = #tpu.pipeline_mode<synchronous>, transform_indices = @transform_0, window_bounds = array<i64: 32, 256>}, {transform_indices = @transform_1, window_bounds = array<i64: 256, 128>}, {pipeline_mode = #tpu.pipeline_mode<synchronous>, transform_indices = @transform_2, window_bounds = array<i64: 32, 1>}, {transform_indices = @transform_3, window_bounds = array<i64: 32, 128>}]} {
    %c0 = arith.constant 0 : index
    %c0_0 = arith.constant 0 : index
    %0 = vector.load %arg1[%c0, %c0_0] : memref<32x256xbf16, #tpu.memory_space<vmem>>, vector<32x256xbf16>
    %c0_1 = arith.constant 0 : index
    %c0_2 = arith.constant 0 : index
    %1 = vector.load %arg2[%c0_1, %c0_2] : memref<256x128xbf16, #tpu.memory_space<vmem>>, vector<256x128xbf16>
    %cst = arith.constant dense<0.000000e+00> : vector<32x128xf32>
    %2 = tpu.matmul %0, %1, %cst {dimension_numbers = #tpu.dot_dimension_numbers<[1], [0], [0], [1], [0, 0, 1, 1], [], []>} : vector<32x256xbf16>, vector<256x128xbf16>, vector<32x128xf32> -> vector<32x128xf32>
    %c0_3 = arith.constant 0 : index
    %c0_4 = arith.constant 0 : index
    %3 = vector.load %arg3[%c0_3, %c0_4] : memref<32x1xf32, #tpu.memory_space<vmem>>, vector<32x1xf32>
    %4 = vector.broadcast %3 : vector<32x1xf32> to vector<32x128xf32>
    %5 = arith.addf %2, %4 : vector<32x128xf32>
    %cst_5 = arith.constant 0.000000e+00 : f32
    %6 = vector.broadcast %cst_5 : f32 to vector<32x128xf32>
    %7 = arith.maximumf %5, %6 : vector<32x128xf32>
    %8 = arith.truncf %7 : vector<32x128xf32> to vector<32x128xbf16>
    %c0_6 = arith.constant 0 : index
    %c0_7 = arith.constant 0 : index
    %9 = vector.load %arg4[%c0_6, %c0_7] : memref<32x128xbf16, #tpu.memory_space<vmem>>, vector<32x128xbf16>
    tpu.vector_store %arg4[%c0_6, %c0_7], %8 {strides = array<i32>} : memref<32x128xbf16, #tpu.memory_space<vmem>>, vector<32x128xbf16>,
    return
  }
  func.func @transform_0(%arg0: i32) -> (i32, i32) {
    %c0_i32 = arith.constant 0 : i32
    %c0_i32_0 = arith.constant 0 : i32
    %c0_i32_1 = arith.constant 0 : i32
    return %c0_i32, %c0_i32_0 : i32, i32
  }
  func.func @transform_1(%arg0: i32) -> (i32, i32) {
    %c0_i32 = arith.constant 0 : i32
    %c0_i32_0 = arith.constant 0 : i32
    return %c0_i32, %arg0 : i32, i32
  }
  func.func @transform_2(%arg0: i32) -> (i32, i32) {
    %c0_i32 = arith.constant 0 : i32
    %c0_i32_0 = arith.constant 0 : i32
    %c0_i32_1 = arith.constant 0 : i32
    return %c0_i32, %c0_i32_0 : i32, i32
  }
  func.func @transform_3(%arg0: i32) -> (i32, i32) {
    %c0_i32 = arith.constant 0 : i32
    %c0_i32_0 = arith.constant 0 : i32
    return %c0_i32, %arg0 : i32, i32
  }
}

module attributes {stable_mosaic.version = 11 : i64} {
  func.func @_gemm_kernel(%arg0: i32, %arg1: memref<64x512xbf16, #tpu.memory_space<vmem>>, %arg2: memref<512x128xbf16, #tpu.memory_space<vmem>>, %arg3: memref<64x1xf32, #tpu.memory_space<vmem>>, %arg4: memref<64x128xbf16, #tpu.memory_space<vmem>>) attributes {dimension_semantics = [#tpu.dimension_semantics<parallel>], iteration_bounds = array<i64: 1>, scalar_prefetch = 0 : i64, scratch_operands = 0 : i64, tpu.core_type = #tpu.core_type<tc>, window_params = [{pipeline_mode = #tpu.pipeline_mode<synchronous>, transform_indices = @transform_0, window_bounds = array<i64: 64, 512>}, {transform_indices = @transform_1, window_bounds = array<i64: 512, 128>}, {pipeline_mode = #tpu.pipeline_mode<synchronous>, transform_indices = @transform_2, window_bounds = array<i64: 64, 1>}, {transform_indices = @transform_3, window_bounds = array<i64: 64, 128>}]} {
    %c0 = arith.constant 0 : index
    %c0_0 = arith.constant 0 : index
    %0 = vector.load %arg1[%c0, %c0_0] : memref<64x512xbf16, #tpu.memory_space<vmem>>, vector<64x512xbf16>
    %c0_1 = arith.constant 0 : index
    %c0_2 = arith.constant 0 : index
    %1 = vector.load %arg2[%c0_1, %c0_2] : memref<512x128xbf16, #tpu.memory_space<vmem>>, vector<512x128xbf16>
    %cst = arith.constant dense<0.000000e+00> : vector<64x128xf32>
    %2 = tpu.matmul %0, %1, %cst {dimension_numbers = #tpu.dot_dimension_numbers<[1], [0], [0], [1], [0, 0, 1, 1], [], []>} : vector<64x512xbf16>, vector<512x128xbf16>, vector<64x128xf32> -> vector<64x128xf32>
    %c0_3 = arith.constant 0 : index
    %c0_4 = arith.constant 0 : index
    %3 = vector.load %arg3[%c0_3, %c0_4] : memref<64x1xf32, #tpu.memory_space<vmem>>, vector<64x1xf32>
    %4 = vector.broadcast %3 : vector<64x1xf32> to vector<64x128xf32>
    %5 = arith.addf %2, %4 : vector<64x128xf32>
    %cst_5 = arith.constant 0.000000e+00 : f32
    %6 = vector.broadcast %cst_5 : f32 to vector<64x128xf32>
    %7 = arith.maximumf %5, %6 : vector<64x128xf32>
    %8 = arith.truncf %7 : vector<64x128xf32> to vector<64x128xbf16>
    %c0_6 = arith.constant 0 : index
    %c0_7 = arith.constant 0 : index
    %9 = vector.load %arg4[%c0_6, %c0_7] : memref<64x128xbf16, #tpu.memory_space<vmem>>, vector<64x128xbf16>
    tpu.vector_store %arg4[%c0_6, %c0_7], %8 {strides = array<i32>} : memref<64x128xbf16, #tpu.memory_space<vmem>>, vector<64x128xbf16>,
    return
  }
  func.func @transform_0(%arg0: i32) -> (i32, i32) {
    %c0_i32 = arith.constant 0 : i32
    %c0_i32_0 = arith.constant 0 : i32
    %c0_i32_1 = arith.constant 0 : i32
    return %c0_i32, %c0_i32_0 : i32, i32
  }
  func.func @transform_1(%arg0: i32) -> (i32, i32) {
    %c0_i32 = arith.constant 0 : i32
    %c0_i32_0 = arith.constant 0 : i32
    return %c0_i32, %arg0 : i32, i32
  }
  func.func @transform_2(%arg0: i32) -> (i32, i32) {
    %c0_i32 = arith.constant 0 : i32
    %c0_i32_0 = arith.constant 0 : i32
    %c0_i32_1 = arith.constant 0 : i32
    return %c0_i32, %c0_i32_0 : i32, i32
  }
  func.func @transform_3(%arg0: i32) -> (i32, i32) {
    %c0_i32 = arith.constant 0 : i32
    %c0_i32_0 = arith.constant 0 : i32
    return %c0_i32, %arg0 : i32, i32
  }
}

module attributes {stable_mosaic.version = 11 : i64} {
  func.func @_gemm_kernel(%arg0: i32, %arg1: memref<8x1024xbf16, #tpu.memory_space<vmem>>, %arg2: memref<1024x128xbf16, #tpu.memory_space<vmem>>, %arg3: memref<1x128xf32, #tpu.memory_space<vmem>>, %arg4: memref<8x128xf32, #tpu.memory_space<vmem>>) attributes {dimension_semantics = [#tpu.dimension_semantics<parallel>], iteration_bounds = array<i64: 1>, scalar_prefetch = 0 : i64, scratch_operands = 0 : i64, tpu.core_type = #tpu.core_type<tc>, window_params = [{pipeline_mode = #tpu.pipeline_mode<synchronous>, transform_indices = @transform_0, window_bounds = array<i64: 8, 1024>}, {transform_indices = @transform_1, window_bounds = array<i64: 1024, 128>}, {transform_indices = @transform_2, window_bounds = array<i64: 1, 128>}, {transform_indices = @transform_3, window_bounds = array<i64: 8, 128>}]} {
    %c0 = arith.constant 0 : index
    %c0_0 = arith.constant 0 : index
    %0 = vector.load %arg1[%c0, %c0_0] : memref<8x1024xbf16, #tpu.memory_space<vmem>>, vector<8x1024xbf16>
    %c0_1 = arith.constant 0 : index
    %c0_2 = arith.constant 0 : index
    %1 = vector.load %arg2[%c0_1, %c0_2] : memref<1024x128xbf16, #tpu.memory_space<vmem>>, vector<1024x128xbf16>
    %cst = arith.constant dense<0.000000e+00> : vector<8x128xf32>
    %2 = tpu.matmul %0, %1, %cst {dimension_numbers = #tpu.dot_dimension_numbers<[1], [0], [0], [1], [0, 0, 1, 1], [], []>} : vector<8x1024xbf16>, vector<1024x128xbf16>, vector<8x128xf32> -> vector<8x128xf32>
    %c0_3 = arith.constant 0 : index
    %c0_4 = arith.constant 0 : index
    %3 = vector.load %arg3[%c0_3, %c0_4] : memref<1x128xf32, #tpu.memory_space<vmem>>, vector<1x128xf32>
    %4 = vector.broadcast %3 : vector<1x128xf32> to vector<8x128xf32>
    %5 = arith.addf %2, %4 : vector<8x128xf32>
    %c0_5 = arith.constant 0 : index
    %c0_6 = arith.constant 0 : index
    %6 = vector.load %arg4[%c0_5, %c0_6] : memref<8x128xf32, #tpu.memory_space<vmem>>, vector<8x128xf32>
    tpu.vector_store %arg4[%c0_5, %c0_6], %5 {strides = array<i32>} : memref<8x128xf32, #tpu.memory_space<vmem>>, vector<8x128xf32>,
    return
  }
  func.func @transform_0(%arg0: i32) -> (i32, i32) {
    %c0_i32 = arith.constant 0 : i32
    %c0_i32_0 = arith.constant 0 : i32
    %c0_i32_1 = arith.constant 0 : i32
    return %c0_i32, %c0_i32_0 : i32, i32
  }
  func.func @transform_1(%arg0: i32) -> (i32, i32) {
    %c0_i32 = arith.constant 0 : i32
    %c0_i32_0 = arith.constant 0 : i32
    return %c0_i32, %arg0 : i32, i32
  }
  func.func @transform_2(%arg0: i32) -> (i32, i32) {
    %c0_i32 = arith.constant 0 : i32
    %c0_i32_0 = arith.constant 0 : i32
    return %c0_i32, %arg0 : i32, i32
  }
  func.func @transform_3(%arg0: i32) -> (i32, i32) {
    %c0_i32 = arith.constant 0 : i32
    %c0_i32_0 = arith.constant 0 : i32
    return %c0_i32, %arg0 : i32, i32
  }
}

module attributes {stable_mosaic.version = 11 : i64} {
  func.func @_gemm_kernel(%arg0: i32, %arg1: memref<8x32xbf16, #tpu.memory_space<vmem>>, %arg2: memref<32x512xbf16, #tpu.memory_space<vmem>>, %arg3: memref<1x512xf32, #tpu.memory_space<vmem>>, %arg4: memref<8x512xbf16, #tpu.memory_space<vmem>>) attributes {dimension_semantics = [#tpu.dimension_semantics<parallel>], iteration_bounds = array<i64: 2>, scalar_prefetch = 0 : i64, scratch_operands = 0 : i64, tpu.core_type = #tpu.core_type<tc>, window_params = [{pipeline_mode = #tpu.pipeline_mode<synchronous>, transform_indices = @transform_0, window_bounds = array<i64: 8, 32>}, {transform_indices = @transform_1, window_bounds = array<i64: 32, 512>}, {transform_indices = @transform_2, window_bounds = array<i64: 1, 512>}, {transform_indices = @transform_3, window_bounds = array<i64: 8, 512>}]} {
    %c0 = arith.constant 0 : index
    %c0_0 = arith.constant 0 : index
    %0 = vector.load %arg1[%c0, %c0_0] : memref<8x32xbf16, #tpu.memory_space<vmem>>, vector<8x32xbf16>
    %c0_1 = arith.constant 0 : index
    %c0_2 = arith.constant 0 : index
    %1 = vector.load %arg2[%c0_1, %c0_2] : memref<32x512xbf16, #tpu.memory_space<vmem>>, vector<32x512xbf16>
    %cst = arith.constant dense<0.000000e+00> : vector<8x512xf32>
    %2 = tpu.matmul %0, %1, %cst {dimension_numbers = #tpu.dot_dimension_numbers<[1], [0], [0], [1], [0, 0, 1, 1], [], []>} : vector<8x32xbf16>, vector<32x512xbf16>, vector<8x512xf32> -> vector<8x512xf32>
    %c0_3 = arith.constant 0 : index
    %c0_4 = arith.constant 0 : index
    %3 = vector.load %arg3[%c0_3, %c0_4] : memref<1x512xf32, #tpu.memory_space<vmem>>, vector<1x512xf32>
    %4 = vector.broadcast %3 : vector<1x512xf32> to vector<8x512xf32>
    %5 = arith.addf %2, %4 : vector<8x512xf32>
    %cst_5 = arith.constant 0.000000e+00 : f32
    %6 = vector.broadcast %cst_5 : f32 to vector<8x512xf32>
    %7 = arith.maximumf %5, %6 : vector<8x512xf32>
    %8 = arith.truncf %7 : vector<8x512xf32> to vector<8x512xbf16>
    %c0_6 = arith.constant 0 : index
    %c0_7 = arith.constant 0 : index
    %9 = vector.load %arg4[%c0_6, %c0_7] : memref<8x512xbf16, #tpu.memory_space<vmem>>, vector<8x512xbf16>
    tpu.vector_store %arg4[%c0_6, %c0_7], %8 {strides = array<i32>} : memref<8x512xbf16, #tpu.memory_space<vmem>>, vector<8x512xbf16>,
    return
  }
  func.func @transform_0(%arg0: i32) -> (i32, i32) {
    %c0_i32 = arith.constant 0 : i32
    %c0_i32_0 = arith.constant 0 : i32
    %c0_i32_1 = arith.constant 0 : i32
    return %c0_i32, %c0_i32_0 : i32, i32
  }
  func.func @transform_1(%arg0: i32) -> (i32, i32) {
    %c0_i32 = arith.constant 0 : i32
    %c0_i32_0 = arith.constant 0 : i32
    return %c0_i32, %arg0 : i32, i32
  }
  func.func @transform_2(%arg0: i32) -> (i32, i32) {
    %c0_i32 = arith.constant 0 : i32
    %c0_i32_0 = arith.constant 0 : i32
    return %c0_i32, %arg0 : i32, i32
  }
  func.func @transform_3(%arg0: i32) -> (i32, i32) {
    %c0_i32 = arith.constant 0 : i32
    %c0_i32_0 = arith.constant 0 : i32
    return %c0_i32, %arg0 : i32, i32
  }
}

module attributes {stable_mosaic.version = 11 : i64} {
  func.func @_gemm_kernel(%arg0: i32, %arg1: memref<128x576xbf16, #tpu.memory_space<vmem>>, %arg2: memref<576x128xbf16, #tpu.memory_space<vmem>>, %arg3: memref<128x1xf32, #tpu.memory_space<vmem>>, %arg4: memref<128x128xbf16, #tpu.memory_space<vmem>>) attributes {dimension_semantics = [#tpu.dimension_semantics<parallel>], iteration_bounds = array<i64: 1>, scalar_prefetch = 0 : i64, scratch_operands = 0 : i64, tpu.core_type = #tpu.core_type<tc>, window_params = [{pipeline_mode = #tpu.pipeline_mode<synchronous>, transform_indices = @transform_0, window_bounds = array<i64: 128, 576>}, {transform_indices = @transform_1, window_bounds = array<i64: 576, 128>}, {pipeline_mode = #tpu.pipeline_mode<synchronous>, transform_indices = @transform_2, window_bounds = array<i64: 128, 1>}, {transform_indices = @transform_3, window_bounds = array<i64: 128, 128>}]} {
    %c0 = arith.constant 0 : index
    %c0_0 = arith.constant 0 : index
    %0 = vector.load %arg1[%c0, %c0_0] : memref<128x576xbf16, #tpu.memory_space<vmem>>, vector<128x576xbf16>
    %c0_1 = arith.constant 0 : index
    %c0_2 = arith.constant 0 : index
    %1 = vector.load %arg2[%c0_1, %c0_2] : memref<576x128xbf16, #tpu.memory_space<vmem>>, vector<576x128xbf16>
    %cst = arith.constant dense<0.000000e+00> : vector<128x128xf32>
    %2 = tpu.matmul %0, %1, %cst {dimension_numbers = #tpu.dot_dimension_numbers<[1], [0], [0], [1], [0, 0, 1, 1], [], []>} : vector<128x576xbf16>, vector<576x128xbf16>, vector<128x128xf32> -> vector<128x128xf32>
    %c0_3 = arith.constant 0 : index
    %c0_4 = arith.constant 0 : index
    %3 = vector.load %arg3[%c0_3, %c0_4] : memref<128x1xf32, #tpu.memory_space<vmem>>, vector<128x1xf32>
    %4 = vector.broadcast %3 : vector<128x1xf32> to vector<128x128xf32>
    %5 = arith.addf %2, %4 : vector<128x128xf32>
    %cst_5 = arith.constant 0.000000e+00 : f32
    %6 = vector.broadcast %cst_5 : f32 to vector<128x128xf32>
    %7 = arith.maximumf %5, %6 : vector<128x128xf32>
    %8 = arith.truncf %7 : vector<128x128xf32> to vector<128x128xbf16>
    %c0_6 = arith.constant 0 : index
    %c0_7 = arith.constant 0 : index
    %9 = vector.load %arg4[%c0_6, %c0_7] : memref<128x128xbf16, #tpu.memory_space<vmem>>, vector<128x128xbf16>
    tpu.vector_store %arg4[%c0_6, %c0_7], %8 {strides = array<i32>} : memref<128x128xbf16, #tpu.memory_space<vmem>>, vector<128x128xbf16>,
    return
  }
  func.func @transform_0(%arg0: i32) -> (i32, i32) {
    %c0_i32 = arith.constant 0 : i32
    %c0_i32_0 = arith.constant 0 : i32
    %c0_i32_1 = arith.constant 0 : i32
    return %c0_i32, %c0_i32_0 : i32, i32
  }
  func.func @transform_1(%arg0: i32) -> (i32, i32) {
    %c0_i32 = arith.constant 0 : i32
    %c0_i32_0 = arith.constant 0 : i32
    return %c0_i32, %arg0 : i32, i32
  }
  func.func @transform_2(%arg0: i32) -> (i32, i32) {
    %c0_i32 = arith.constant 0 : i32
    %c0_i32_0 = arith.constant 0 : i32
    %c0_i32_1 = arith.constant 0 : i32
    return %c0_i32, %c0_i32_0 : i32, i32
  }
  func.func @transform_3(%arg0: i32) -> (i32, i32) {
    %c0_i32 = arith.constant 0 : i32
    %c0_i32_0 = arith.constant 0 : i32
    return %c0_i32, %arg0 : i32, i32
  }
}

module attributes {stable_mosaic.version = 11 : i64} {
  func.func @_gemm_kernel(%arg0: i32, %arg1: memref<64x288xbf16, #tpu.memory_space<vmem>>, %arg2: memref<288x128xbf16, #tpu.memory_space<vmem>>, %arg3: memref<64x1xf32, #tpu.memory_space<vmem>>, %arg4: memref<64x128xbf16, #tpu.memory_space<vmem>>) attributes {dimension_semantics = [#tpu.dimension_semantics<parallel>], iteration_bounds = array<i64: 1>, scalar_prefetch = 0 : i64, scratch_operands = 0 : i64, tpu.core_type = #tpu.core_type<tc>, window_params = [{pipeline_mode = #tpu.pipeline_mode<synchronous>, transform_indices = @transform_0, window_bounds = array<i64: 64, 288>}, {transform_indices = @transform_1, window_bounds = array<i64: 288, 128>}, {pipeline_mode = #tpu.pipeline_mode<synchronous>, transform_indices = @transform_2, window_bounds = array<i64: 64, 1>}, {transform_indices = @transform_3, window_bounds = array<i64: 64, 128>}]} {
    %c0 = arith.constant 0 : index
    %c0_0 = arith.constant 0 : index
    %0 = vector.load %arg1[%c0, %c0_0] : memref<64x288xbf16, #tpu.memory_space<vmem>>, vector<64x288xbf16>
    %c0_1 = arith.constant 0 : index
    %c0_2 = arith.constant 0 : index
    %1 = vector.load %arg2[%c0_1, %c0_2] : memref<288x128xbf16, #tpu.memory_space<vmem>>, vector<288x128xbf16>
    %cst = arith.constant dense<0.000000e+00> : vector<64x128xf32>
    %2 = tpu.matmul %0, %1, %cst {dimension_numbers = #tpu.dot_dimension_numbers<[1], [0], [0], [1], [0, 0, 1, 1], [], []>} : vector<64x288xbf16>, vector<288x128xbf16>, vector<64x128xf32> -> vector<64x128xf32>
    %c0_3 = arith.constant 0 : index
    %c0_4 = arith.constant 0 : index
    %3 = vector.load %arg3[%c0_3, %c0_4] : memref<64x1xf32, #tpu.memory_space<vmem>>, vector<64x1xf32>
    %4 = vector.broadcast %3 : vector<64x1xf32> to vector<64x128xf32>
    %5 = arith.addf %2, %4 : vector<64x128xf32>
    %cst_5 = arith.constant 0.000000e+00 : f32
    %6 = vector.broadcast %cst_5 : f32 to vector<64x128xf32>
    %7 = arith.maximumf %5, %6 : vector<64x128xf32>
    %8 = arith.truncf %7 : vector<64x128xf32> to vector<64x128xbf16>
    %c0_6 = arith.constant 0 : index
    %c0_7 = arith.constant 0 : index
    %9 = vector.load %arg4[%c0_6, %c0_7] : memref<64x128xbf16, #tpu.memory_space<vmem>>, vector<64x128xbf16>
    tpu.vector_store %arg4[%c0_6, %c0_7], %8 {strides = array<i32>} : memref<64x128xbf16, #tpu.memory_space<vmem>>, vector<64x128xbf16>,
    return
  }
  func.func @transform_0(%arg0: i32) -> (i32, i32) {
    %c0_i32 = arith.constant 0 : i32
    %c0_i32_0 = arith.constant 0 : i32
    %c0_i32_1 = arith.constant 0 : i32
    return %c0_i32, %c0_i32_0 : i32, i32
  }
  func.func @transform_1(%arg0: i32) -> (i32, i32) {
    %c0_i32 = arith.constant 0 : i32
    %c0_i32_0 = arith.constant 0 : i32
    return %c0_i32, %arg0 : i32, i32
  }
  func.func @transform_2(%arg0: i32) -> (i32, i32) {
    %c0_i32 = arith.constant 0 : i32
    %c0_i32_0 = arith.constant 0 : i32
    %c0_i32_1 = arith.constant 0 : i32
    return %c0_i32, %c0_i32_0 : i32, i32
  }
  func.func @transform_3(%arg0: i32) -> (i32, i32) {
    %c0_i32 = arith.constant 0 : i32
    %c0_i32_0 = arith.constant 0 : i32
    return %c0_i32, %arg0 : i32, i32
  }
}

module attributes {stable_mosaic.version = 11 : i64} {
  func.func @_gemm_kernel(%arg0: i32, %arg1: memref<32x144xbf16, #tpu.memory_space<vmem>>, %arg2: memref<144x512xbf16, #tpu.memory_space<vmem>>, %arg3: memref<32x1xf32, #tpu.memory_space<vmem>>, %arg4: memref<32x512xbf16, #tpu.memory_space<vmem>>) attributes {dimension_semantics = [#tpu.dimension_semantics<parallel>], iteration_bounds = array<i64: 1>, scalar_prefetch = 0 : i64, scratch_operands = 0 : i64, tpu.core_type = #tpu.core_type<tc>, window_params = [{pipeline_mode = #tpu.pipeline_mode<synchronous>, transform_indices = @transform_0, window_bounds = array<i64: 32, 144>}, {transform_indices = @transform_1, window_bounds = array<i64: 144, 512>}, {pipeline_mode = #tpu.pipeline_mode<synchronous>, transform_indices = @transform_2, window_bounds = array<i64: 32, 1>}, {transform_indices = @transform_3, window_bounds = array<i64: 32, 512>}]} {
    %c0 = arith.constant 0 : index
    %c0_0 = arith.constant 0 : index
    %0 = vector.load %arg1[%c0, %c0_0] : memref<32x144xbf16, #tpu.memory_space<vmem>>, vector<32x144xbf16>
    %c0_1 = arith.constant 0 : index
    %c0_2 = arith.constant 0 : index
    %1 = vector.load %arg2[%c0_1, %c0_2] : memref<144x512xbf16, #tpu.memory_space<vmem>>, vector<144x512xbf16>
    %cst = arith.constant dense<0.000000e+00> : vector<32x512xf32>
    %2 = tpu.matmul %0, %1, %cst {dimension_numbers = #tpu.dot_dimension_numbers<[1], [0], [0], [1], [0, 0, 1, 1], [], []>} : vector<32x144xbf16>, vector<144x512xbf16>, vector<32x512xf32> -> vector<32x512xf32>
    %c0_3 = arith.constant 0 : index
    %c0_4 = arith.constant 0 : index
    %3 = vector.load %arg3[%c0_3, %c0_4] : memref<32x1xf32, #tpu.memory_space<vmem>>, vector<32x1xf32>
    %4 = vector.broadcast %3 : vector<32x1xf32> to vector<32x512xf32>
    %5 = arith.addf %2, %4 : vector<32x512xf32>
    %cst_5 = arith.constant 0.000000e+00 : f32
    %6 = vector.broadcast %cst_5 : f32 to vector<32x512xf32>
    %7 = arith.maximumf %5, %6 : vector<32x512xf32>
    %8 = arith.truncf %7 : vector<32x512xf32> to vector<32x512xbf16>
    %c0_6 = arith.constant 0 : index
    %c0_7 = arith.constant 0 : index
    %9 = vector.load %arg4[%c0_6, %c0_7] : memref<32x512xbf16, #tpu.memory_space<vmem>>, vector<32x512xbf16>
    tpu.vector_store %arg4[%c0_6, %c0_7], %8 {strides = array<i32>} : memref<32x512xbf16, #tpu.memory_space<vmem>>, vector<32x512xbf16>,
    return
  }
  func.func @transform_0(%arg0: i32) -> (i32, i32) {
    %c0_i32 = arith.constant 0 : i32
    %c0_i32_0 = arith.constant 0 : i32
    %c0_i32_1 = arith.constant 0 : i32
    return %c0_i32, %c0_i32_0 : i32, i32
  }
  func.func @transform_1(%arg0: i32) -> (i32, i32) {
    %c0_i32 = arith.constant 0 : i32
    %c0_i32_0 = arith.constant 0 : i32
    return %c0_i32, %arg0 : i32, i32
  }
  func.func @transform_2(%arg0: i32) -> (i32, i32) {
    %c0_i32 = arith.constant 0 : i32
    %c0_i32_0 = arith.constant 0 : i32
    %c0_i32_1 = arith.constant 0 : i32
    return %c0_i32, %c0_i32_0 : i32, i32
  }
  func.func @transform_3(%arg0: i32) -> (i32, i32) {
    %c0_i32 = arith.constant 0 : i32
    %c0_i32_0 = arith.constant 0 : i32
    return %c0_i32, %arg0 : i32, i32
  }
}

module attributes {stable_mosaic.version = 11 : i64} {
  func.func @_gemm_kernel(%arg0: i32, %arg1: memref<16x80xbf16, #tpu.memory_space<vmem>>, %arg2: memref<80x512xbf16, #tpu.memory_space<vmem>>, %arg3: memref<16x1xf32, #tpu.memory_space<vmem>>, %arg4: memref<16x512xf32, #tpu.memory_space<vmem>>) attributes {dimension_semantics = [#tpu.dimension_semantics<parallel>], iteration_bounds = array<i64: 4>, scalar_prefetch = 0 : i64, scratch_operands = 0 : i64, tpu.core_type = #tpu.core_type<tc>, window_params = [{pipeline_mode = #tpu.pipeline_mode<synchronous>, transform_indices = @transform_0, window_bounds = array<i64: 16, 80>}, {transform_indices = @transform_1, window_bounds = array<i64: 80, 512>}, {pipeline_mode = #tpu.pipeline_mode<synchronous>, transform_indices = @transform_2, window_bounds = array<i64: 16, 1>}, {transform_indices = @transform_3, window_bounds = array<i64: 16, 512>}]} {
    %c0 = arith.constant 0 : index
    %c0_0 = arith.constant 0 : index
    %0 = vector.load %arg1[%c0, %c0_0] : memref<16x80xbf16, #tpu.memory_space<vmem>>, vector<16x80xbf16>
    %c0_1 = arith.constant 0 : index
    %c0_2 = arith.constant 0 : index
    %1 = vector.load %arg2[%c0_1, %c0_2] : memref<80x512xbf16, #tpu.memory_space<vmem>>, vector<80x512xbf16>
    %cst = arith.constant dense<0.000000e+00> : vector<16x512xf32>
    %2 = tpu.matmul %0, %1, %cst {dimension_numbers = #tpu.dot_dimension_numbers<[1], [0], [0], [1], [0, 0, 1, 1], [], []>} : vector<16x80xbf16>, vector<80x512xbf16>, vector<16x512xf32> -> vector<16x512xf32>
    %c0_3 = arith.constant 0 : index
    %c0_4 = arith.constant 0 : index
    %3 = vector.load %arg3[%c0_3, %c0_4] : memref<16x1xf32, #tpu.memory_space<vmem>>, vector<16x1xf32>
    %4 = vector.broadcast %3 : vector<16x1xf32> to vector<16x512xf32>
    %5 = arith.addf %2, %4 : vector<16x512xf32>
    %cst_5 = arith.constant 5.000000e-01 : f32
    %6 = vector.broadcast %cst_5 : f32 to vector<16x512xf32>
    %7 = arith.mulf %6, %5 : vector<16x512xf32>
    %8 = math.tanh %7 : vector<16x512xf32>
    %cst_6 = arith.constant 1.000000e+00 : f32
    %9 = vector.broadcast %cst_6 : f32 to vector<16x512xf32>
    %10 = arith.addf %8, %9 : vector<16x512xf32>
    %cst_7 = arith.constant 5.000000e-01 : f32
    %11 = vector.broadcast %cst_7 : f32 to vector<16x512xf32>
    %12 = arith.mulf %11, %10 : vector<16x512xf32>
    %c0_8 = arith.constant 0 : index
    %c0_9 = arith.constant 0 : index
    %13 = vector.load %arg4[%c0_8, %c0_9] : memref<16x512xf32, #tpu.memory_space<vmem>>, vector<16x512xf32>
    tpu.vector_store %arg4[%c0_8, %c0_9], %12 {strides = array<i32>} : memref<16x512xf32, #tpu.memory_space<vmem>>, vector<16x512xf32>,
    return
  }
  func.func @transform_0(%arg0: i32) -> (i32, i32) {
    %c0_i32 = arith.constant 0 : i32
    %c0_i32_0 = arith.constant 0 : i32
    %c0_i32_1 = arith.constant 0 : i32
    return %c0_i32, %c0_i32_0 : i32, i32
  }
  func.func @transform_1(%arg0: i32) -> (i32, i32) {
    %c0_i32 = arith.constant 0 : i32
    %c0_i32_0 = arith.constant 0 : i32
    return %c0_i32, %arg0 : i32, i32
  }
  func.func @transform_2(%arg0: i32) -> (i32, i32) {
    %c0_i32 = arith.constant 0 : i32
    %c0_i32_0 = arith.constant 0 : i32
    %c0_i32_1 = arith.constant 0 : i32
    return %c0_i32, %c0_i32_0 : i32, i32
  }
  func.func @transform_3(%arg0: i32) -> (i32, i32) {
    %c0_i32 = arith.constant 0 : i32
    %c0_i32_0 = arith.constant 0 : i32
    return %c0_i32, %arg0 : i32, i32
  }
}

</mosaic_0001>

<llo_original>
// kernel: tile.28
$region0: #{tile.28}
  #allocation2 [shape = 's32[1]{0}', space=sflag, size = 0x4, scoped, tag = 'scoped memory for tile.28']
  %s0 = inlined_call_operand.hbm [shape: f32[16], index: 0, kind: input, shape index: {}]
  %s1 = inlined_call_operand.vmem [shape: f32[4,16], index: 1, kind: output, shape index: {}]
  $region1: #{tile.28} parent=0
    #allocation0 [shape = 'u8[512]{0}', space=vmem, size = 0x400, scoped, tag = 'operand span for operand 0']
    #allocation1 [shape = 's32[1]{0}', space=sflag, size = 0x4, scoped, tag = 'scoped memory for tile.28']
    %2 = vsyncpa [#allocation1], 0
    // Predicated region
    $region2: #{tile.28} parent=1 // pred_check
      _
    $region3: #{tile.28} parent=1 // pred_check_branch
      %4 = sbr.rel (0) target = $region5
    $region4: #{tile.28} parent=1 // pred_region
      %s6 = ssub.s32 16, 16
      %7 = vsyncadd [#allocation1], %s6
      %s9 = sshll.u32 [#allocation0], 4
      %s10 = int_to_ptr.vmem [resolvable:$true] %s9
      %12 = dma.hbm_to_vmem [thread:$0]  %s0, 16, %s10, [#allocation1]
    $region5: #{tile.28} parent=1 // pred_fallthru
      _
    // Predicated region
    $region6: #{tile.28} parent=1 // pred_check
      _
    $region7: #{tile.28} parent=1 // pred_check_branch
      %14 = sbr.rel (0) target = $region9
    $region8: #{tile.28} parent=1 // pred_region
      %15 = dma.done [#allocation1], 16
    $region9: #{tile.28} parent=1 // pred_fallthru
      _
    %v16 = vld [vmem:[#allocation0] ss:$0 sm:$0xff]
    %17 = vst [vmem:[%s1] sm:$0xf] %v16
    %18 = vsyncpa [#allocation1], 1

// kernel: tile.33
$region0: #{tile.33}
  #allocation2 [shape = 's32[1]{0}', space=sflag, size = 0x4, scoped, tag = 'scoped memory for tile.33']
  %s0 = inlined_call_operand.hbm [shape: f32[8], index: 0, kind: input, shape index: {}]
  %s1 = inlined_call_operand.vmem [shape: f32[4,8], index: 1, kind: output, shape index: {}]
  $region1: #{tile.33} parent=0
    #allocation0 [shape = 'u8[512]{0}', space=vmem, size = 0x400, scoped, tag = 'operand span for operand 0']
    #allocation1 [shape = 's32[1]{0}', space=sflag, size = 0x4, scoped, tag = 'scoped memory for tile.33']
    %2 = vsyncpa [#allocation1], 0
    // Predicated region
    $region2: #{tile.33} parent=1 // pred_check
      _
    $region3: #{tile.33} parent=1 // pred_check_branch
      %4 = sbr.rel (0) target = $region5
    $region4: #{tile.33} parent=1 // pred_region
      %s6 = ssub.s32 16, 16
      %7 = vsyncadd [#allocation1], %s6
      %s9 = sshll.u32 [#allocation0], 4
      %s10 = int_to_ptr.vmem [resolvable:$true] %s9
      %12 = dma.hbm_to_vmem [thread:$0]  %s0, 16, %s10, [#allocation1]
    $region5: #{tile.33} parent=1 // pred_fallthru
      _
    // Predicated region
    $region6: #{tile.33} parent=1 // pred_check
      _
    $region7: #{tile.33} parent=1 // pred_check_branch
      %14 = sbr.rel (0) target = $region9
    $region8: #{tile.33} parent=1 // pred_region
      %15 = dma.done [#allocation1], 16
    $region9: #{tile.33} parent=1 // pred_fallthru
      _
    %v16 = vld [vmem:[#allocation0] ss:$0 sm:$0xff]
    %17 = vst [vmem:[%s1] sm:$0xf] %v16
    %18 = vsyncpa [#allocation1], 1

// kernel: tile.23
$region0: #{tile.23}
  #allocation2 [shape = 's32[1]{0}', space=sflag, size = 0x4, scoped, tag = 'scoped memory for tile.23']
  %s0 = inlined_call_operand.hbm [shape: f32[32], index: 0, kind: input, shape index: {}]
  %s1 = inlined_call_operand.vmem [shape: f32[4,32], index: 1, kind: output, shape index: {}]
  $region1: #{tile.23} parent=0
    #allocation0 [shape = 'u8[512]{0}', space=vmem, size = 0x400, scoped, tag = 'operand span for operand 0']
    #allocation1 [shape = 's32[1]{0}', space=sflag, size = 0x4, scoped, tag = 'scoped memory for tile.23']
    %2 = vsyncpa [#allocation1], 0
    // Predicated region
    $region2: #{tile.23} parent=1 // pred_check
      _
    $region3: #{tile.23} parent=1 // pred_check_branch
      %4 = sbr.rel (0) target = $region5
    $region4: #{tile.23} parent=1 // pred_region
      %s6 = ssub.s32 16, 16
      %7 = vsyncadd [#allocation1], %s6
      %s9 = sshll.u32 [#allocation0], 4
      %s10 = int_to_ptr.vmem [resolvable:$true] %s9
      %12 = dma.hbm_to_vmem [thread:$0]  %s0, 16, %s10, [#allocation1]
    $region5: #{tile.23} parent=1 // pred_fallthru
      _
    // Predicated region
    $region6: #{tile.23} parent=1 // pred_check
      _
    $region7: #{tile.23} parent=1 // pred_check_branch
      %14 = sbr.rel (0) target = $region9
    $region8: #{tile.23} parent=1 // pred_region
      %15 = dma.done [#allocation1], 16
    $region9: #{tile.23} parent=1 // pred_fallthru
      _
    %v16 = vld [vmem:[#allocation0] ss:$0 sm:$0xff]
    %17 = vst [vmem:[%s1] sm:$0xf] %v16
    %18 = vsyncpa [#allocation1], 1

// kernel: tile.38
$region0: #{tile.38}
  #allocation2 [shape = 's32[1]{0}', space=sflag, size = 0x4, scoped, tag = 'scoped memory for tile.38']
  %s0 = inlined_call_operand.hbm [shape: f32[3], index: 0, kind: input, shape index: {}]
  %s1 = inlined_call_operand.vmem [shape: f32[4,3], index: 1, kind: output, shape index: {}]
  $region1: #{tile.38} parent=0
    #allocation0 [shape = 'u8[512]{0}', space=vmem, size = 0x400, scoped, tag = 'operand span for operand 0']
    #allocation1 [shape = 's32[1]{0}', space=sflag, size = 0x4, scoped, tag = 'scoped memory for tile.38']
    %2 = vsyncpa [#allocation1], 0
    // Predicated region
    $region2: #{tile.38} parent=1 // pred_check
      _
    $region3: #{tile.38} parent=1 // pred_check_branch
      %4 = sbr.rel (0) target = $region5
    $region4: #{tile.38} parent=1 // pred_region
      %s6 = ssub.s32 16, 16
      %7 = vsyncadd [#allocation1], %s6
      %s9 = sshll.u32 [#allocation0], 4
      %s10 = int_to_ptr.vmem [resolvable:$true] %s9
      %12 = dma.hbm_to_vmem [thread:$0]  %s0, 16, %s10, [#allocation1]
    $region5: #{tile.38} parent=1 // pred_fallthru
      _
    // Predicated region
    $region6: #{tile.38} parent=1 // pred_check
      _
    $region7: #{tile.38} parent=1 // pred_check_branch
      %14 = sbr.rel (0) target = $region9
    $region8: #{tile.38} parent=1 // pred_region
      %15 = dma.done [#allocation1], 16
    $region9: #{tile.38} parent=1 // pred_fallthru
      _
    %v16 = vld [vmem:[#allocation0] ss:$0 sm:$0xff]
    %17 = vst [vmem:[%s1] sm:$0xf] %v16
    %18 = vsyncpa [#allocation1], 1

// kernel: tile.39
$region0: #{tile.39}
  %s0 = inlined_call_operand.vmem [shape: f32[4,3], index: 0, kind: input, shape index: {}]
  %s1 = inlined_call_operand.vmem [shape: f32[12], index: 1, kind: output, shape index: {}]
  $region1: #{tile.39} parent=0
    #allocation0 [shape = 'u8[4096]{0}', space=vmem, size = 0x1000, scoped, tag = 'scoped mem for output reshape']
    #allocation1 [shape = 'u8[4096]{0}', space=vmem, size = 0x1000, scoped, tag = 'scoped mem for input reshape']
    %s3 = sshllo.u32 0, 4
    %v4 = vld [vmem:[%s0] sm:%s3]
    %5 = vst [vmem:[#allocation1] sm:%s3] %v4
    %v6 = vld [vmem:[#allocation1] sm:$0x1]
    %vm7 = vcmask 23552
    %8 = vst.msk [vmem:[#allocation0] sm:$0x1] %vm7, %v6
    %s9 = scalar_lea.vmem [#allocation1], 3
    %v10 = vld [vmem:[%s9] sm:$0x1]
    %11 = vrot.lane.b32.xlu0 %v10, 9
    %v12 = vpop.permute.xlu0 %11
    %vm13 = vcmask 97352
    %14 = vst.msk [vmem:[#allocation0] sm:$0x1] %vm13, %v12
    %s15 = scalar_lea.vmem [#allocation1], 2
    %v16 = vld [vmem:[%s15] sm:$0x1]
    %17 = vrot.lane.b32.xlu0 %v16, 6
    %v18 = vpop.permute.xlu0 %17
    %vm19 = vcmask 72752
    %20 = vst.msk [vmem:[#allocation0] sm:$0x1] %vm19, %v18
    %s21 = scalar_lea.vmem [#allocation1], 1
    %v22 = vld [vmem:[%s21] sm:$0x1]
    %23 = vrot.lane.b32.xlu0 %v22, 3
    %v24 = vpop.permute.xlu0 %23
    %vm25 = vcmask 48152
    %26 = vst.msk [vmem:[#allocation0] sm:$0x1] %vm25, %v24
    %s28 = sshllo.u32 0, 1
    %v30 = vld [vmem:[#allocation0] sm:%s28]
    %s31 = sshllo.u32 0, 1
    %32 = vst [vmem:[%s1] sm:%s31] %v30

// kernel: mmdvae_forward.10
$region0: #{mmdvae_forward.10}
  #allocation0 [shape = 'u32[]', space=smem, size = 0x4, offset = 0x4, fixed_abs, tag = 'smem constant byte address 0x4 - core index']
  #allocation1 [shape = 'u32[144,128]{1,0:T(1,128)}', space=vmem, size = 0x12000, scoped, tag = 'internal scratch']
  %s0 = inlined_call_operand.vmem [shape: bf16[8,48], index: 0, kind: input, shape index: {}]
  %s1 = inlined_call_operand.vmem [shape: bf16[48,2048], index: 1, kind: input, shape index: {}]
  %s2 = inlined_call_operand.vmem [shape: f32[8,1], index: 2, kind: input, shape index: {}]
  %s3 = inlined_call_operand.vmem [shape: bf16[8,2048], index: 3, kind: output, shape index: {}]
  %s4 = sld [smem:[#allocation0]]
  $region68: #{mmdvae_forward.10} parent=0
    _
  %s6 = ssub.s32 1, %s4
  %s7 = scalar_select 0, %s6, %s4
  $region1: #{mmdvae_forward.10} parent=0
    #allocation2 [shape = 'u8[98304]{0}', space=vmem, size = 0x18000, scoped, tag = 'input window, operand 1']
    loop: start=0, step=1, limit=6
    $region2: #{mmdvae_forward.10} parent=1 // loop_pre_header
      _
    $region3: #{mmdvae_forward.10} parent=1 // loop_header
      %s9 = sphi 0, %s13
      %p10 = scmp.ge.s32.totalorder %s9, 6
      %s17 = sphi 0, %s17
      %s19 = sphi 0, %s17
      %s20 = sphi 0, %s19
      %s34 = sphi 0, %s20
      %s40 = sphi 0, %s42
      %s43 = sphi 0, %s40
      %s44 = sphi 0, %s43
      %s60 = sphi 0, %s44
      %s64 = sphi 0, %s64
      %s66 = sphi 0, %s64
      %s67 = sphi 0, %s66
      %s81 = sphi 0, %s67
      %s87 = sphi 0, %s89
      %s90 = sphi 0, %s87
      %s91 = sphi 0, %s90
      %s107 = sphi 0, %s91
    $region4: #{mmdvae_forward.10} parent=1 // loop_header_branch
      %12 = sbr.rel (%p10) target = $region8
    $region5: #{mmdvae_forward.10} parent=1 // loop_body
      %s14 = ssub.s32 %s9, 1
      %s15 = ssub.s32 %s9, 2
      %s16 = sadd.s32 %s9, 1
      %s18 = sadd.s32 %s17, 1
      %p21 = scmp.eq.s32.totalorder %s9, 3
      %p22 = scmp.ne.s32.totalorder %s17, %s19
      %p23 = scmp.eq.s32.totalorder %s9, 0
      %p24 = por %p22, %p23
      %p25 = scmp.ne.s32.totalorder %s17, %s19
      %p26 = scmp.eq.s32.totalorder %s14, 3
      %p27 = por %p25, %p26
      %p28 = scmp.ne.s32.totalorder %s19, %s20
      %p29 = scmp.eq.s32.totalorder %s14, 0
      %p30 = por %p28, %p29
      %p31 = scmp.ne.s32.totalorder %s19, %s20
      %p32 = scmp.eq.s32.totalorder %s15, 3
      %p33 = por %p31, %p32
      %p35 = scmp.ne.s32.totalorder %s20, %s34
      %p36 = scmp.eq.s32.totalorder %s15, 0
      %p37 = por %p35, %p36
      %s38 = ssub.s32 %s9, %s16
      %p39 = scmp.eq.s32.totalorder %s38, 0
      %s41 = sadd.s32 %s40, 1
      %s42 = scalar_select %p39, %s40, %s41
      %p45 = pneg %p39
      %p46 = scmp.eq.s32.totalorder %s9, 3
      %p47 = por %p45, %p46
      %p48 = scmp.ne.s32.totalorder %s40, %s43
      %p49 = scmp.eq.s32.totalorder %s9, 0
      %p50 = por %p48, %p49
      %p51 = scmp.ne.s32.totalorder %s40, %s43
      %p52 = scmp.eq.s32.totalorder %s14, 3
      %p53 = por %p51, %p52
      %p54 = scmp.ne.s32.totalorder %s43, %s44
      %p55 = scmp.eq.s32.totalorder %s14, 0
      %p56 = por %p54, %p55
      %p57 = scmp.ne.s32.totalorder %s43, %s44
      %p58 = scmp.eq.s32.totalorder %s15, 3
      %p59 = por %p57, %p58
      %p61 = scmp.ne.s32.totalorder %s44, %s60
      %p62 = scmp.eq.s32.totalorder %s15, 0
      %p63 = por %p61, %p62
      %s65 = sadd.s32 %s64, 1
      %p68 = scmp.eq.s32.totalorder %s9, 3
      %p69 = scmp.ne.s32.totalorder %s64, %s66
      %p70 = scmp.eq.s32.totalorder %s9, 0
      %p71 = por %p69, %p70
      %p72 = scmp.ne.s32.totalorder %s64, %s66
      %p73 = scmp.eq.s32.totalorder %s14, 3
      %p74 = por %p72, %p73
      %p75 = scmp.ne.s32.totalorder %s66, %s67
      %p76 = scmp.eq.s32.totalorder %s14, 0
      %p77 = por %p75, %p76
      %p78 = scmp.ne.s32.totalorder %s66, %s67
      %p79 = scmp.eq.s32.totalorder %s15, 3
      %p80 = por %p78, %p79
      %p82 = scmp.ne.s32.totalorder %s67, %s81
      %p83 = scmp.eq.s32.totalorder %s15, 0
      %p84 = por %p82, %p83
      %s85 = ssub.s32 %s9, %s16
      %p86 = scmp.eq.s32.totalorder %s85, 0
      %s88 = sadd.s32 %s87, 1
      %s89 = scalar_select %p86, %s87, %s88
      %p92 = pneg %p86
      %p93 = scmp.eq.s32.totalorder %s9, 3
      %p94 = por %p92, %p93
      %p95 = scmp.ne.s32.totalorder %s87, %s90
      %p96 = scmp.eq.s32.totalorder %s9, 0
      %p97 = por %p95, %p96
      %p98 = scmp.ne.s32.totalorder %s87, %s90
      %p99 = scmp.eq.s32.totalorder %s14, 3
      %p100 = por %p98, %p99
      %p101 = scmp.ne.s32.totalorder %s90, %s91
      %p102 = scmp.eq.s32.totalorder %s14, 0
      %p103 = por %p101, %p102
      %p104 = scmp.ne.s32.totalorder %s90, %s91
      %p105 = scmp.eq.s32.totalorder %s15, 3
      %p106 = por %p104, %p105
      %p108 = scmp.ne.s32.totalorder %s91, %s107
      %p109 = scmp.eq.s32.totalorder %s15, 0
      %p110 = por %p108, %p109
      %p111 = scmp.le.s32.totalorder 1, %s9
      %p112 = scmp.lt.s32.totalorder %s9, 5
      %p113 = pnand %p111, %p112
      %p114 = pneg %p113
      // Predicated region
      $region9: #{mmdvae_forward.10} parent=5 // pred_check
        _
      $region10: #{mmdvae_forward.10} parent=5 // pred_check_branch
        %116 = sbr.rel (%p113) target = $region12
      $region11: #{mmdvae_forward.10} parent=5 // pred_region
        %s117 = ssub.s32 %s9, 1
        // Predicated region
        $region13: #{mmdvae_forward.10} parent=11 // pred_check
          %p118 = pneg %p30
        $region14: #{mmdvae_forward.10} parent=11 // pred_check_branch
          %120 = sbr.rel (%p118) target = $region16
        $region15: #{mmdvae_forward.10} parent=11 // pred_region
          _
        $region16: #{mmdvae_forward.10} parent=11 // pred_fallthru
          _
        // Predicated region
        $region17: #{mmdvae_forward.10} parent=11 // pred_check
          %p121 = pneg %p77
        $region18: #{mmdvae_forward.10} parent=11 // pred_check_branch
          %123 = sbr.rel (%p121) target = $region20
        $region19: #{mmdvae_forward.10} parent=11 // pred_region
          _
        $region20: #{mmdvae_forward.10} parent=11 // pred_fallthru
          _
      $region12: #{mmdvae_forward.10} parent=5 // pred_fallthru
        _
      %p124 = scmp.lt.s32.totalorder %s9, 4
      // Predicated region
      $region21: #{mmdvae_forward.10} parent=5 // pred_check
        %p125 = pneg %p124
      $region22: #{mmdvae_forward.10} parent=5 // pred_check_branch
        %127 = sbr.rel (%p125) target = $region24
      $region23: #{mmdvae_forward.10} parent=5 // pred_region
        // Predicated region
        $region25: #{mmdvae_forward.10} parent=23 // pred_check
          %p128 = pneg %p50
        $region26: #{mmdvae_forward.10} parent=23 // pred_check_branch
          %130 = sbr.rel (%p128) target = $region28
        $region27: #{mmdvae_forward.10} parent=23 // pred_region
          %s131 = sand.u32 %s40, 1
          %s132 = sand.u32 %s40, 1
          %s133 = smul.addr %s132, 96
          %s134 = scalar_lea.vmem [#allocation2], %s133
          %s135 = smul.u32 4, %s9
          %s136 = smul.addr %s135, 4
          %s137 = scalar_lea.vmem %s1, %s136
          // Predicated region
          $region29: #{mmdvae_forward.10} parent=27 // pred_check
            _
          $region30: #{mmdvae_forward.10} parent=27 // pred_check_branch
            %139 = sbr.rel (0) target = $region32
          $region31: #{mmdvae_forward.10} parent=27 // pred_region
            // Predicated region
            $region33: #{mmdvae_forward.10} parent=31 // pred_check
              _
            $region34: #{mmdvae_forward.10} parent=31 // pred_check_branch
              %141 = sbr.rel (0) target = $region36
            $region35: #{mmdvae_forward.10} parent=31 // pred_region
              loop: start=0, step=1, limit=1
              $region37: #{mmdvae_forward.10} parent=35 // loop_pre_header
                _
              $region38: #{mmdvae_forward.10} parent=35 // loop_header
                %s143 = sphi 0, %s147
                %p144 = scmp.ge.s32.totalorder %s143, 1
                %s148 = sphi %s137, %s137
                %s149 = sphi %s134, %s134
              $region39: #{mmdvae_forward.10} parent=35 // loop_header_branch
                %146 = sbr.rel (%p144) target = $region43
              $region40: #{mmdvae_forward.10} parent=35 // loop_body
                %v150 = vld [vmem:[%s148] sm:$0xff]
                %151 = vst [vmem:[%s149] sm:$0xff] %v150
                %v152 = vld [vmem:[%s148 + $0x8] sm:$0xff]
                %153 = vst [vmem:[%s149 + $0x8] sm:$0xff] %v152
                %v154 = vld [vmem:[%s148 + $0x40] sm:$0xff]
                %155 = vst [vmem:[%s149 + $0x10] sm:$0xff] %v154
                %v156 = vld [vmem:[%s148 + $0x48] sm:$0xff]
                %157 = vst [vmem:[%s149 + $0x18] sm:$0xff] %v156
                %v158 = vld [vmem:[%s148 + $0x80] sm:$0xff]
                %159 = vst [vmem:[%s149 + $0x20] sm:$0xff] %v158
                %v160 = vld [vmem:[%s148 + $0x88] sm:$0xff]
                %161 = vst [vmem:[%s149 + $0x28] sm:$0xff] %v160
                %v162 = vld [vmem:[%s148 + $0xc0] sm:$0xff]
                %163 = vst [vmem:[%s149 + $0x30] sm:$0xff] %v162
                %v164 = vld [vmem:[%s148 + $0xc8] sm:$0xff]
                %165 = vst [vmem:[%s149 + $0x38] sm:$0xff] %v164
                %v166 = vld [vmem:[%s148 + $0x100] sm:$0xff]
                %167 = vst [vmem:[%s149 + $0x40] sm:$0xff] %v166
                %v168 = vld [vmem:[%s148 + $0x108] sm:$0xff]
                %169 = vst [vmem:[%s149 + $0x48] sm:$0xff] %v168
                %v170 = vld [vmem:[%s148 + $0x140] sm:$0xff]
                %171 = vst [vmem:[%s149 + $0x50] sm:$0xff] %v170
                %v172 = vld [vmem:[%s148 + $0x148] sm:$0xff]
                %173 = vst [vmem:[%s149 + $0x58] sm:$0xff] %v172
              $region41: #{mmdvae_forward.10} parent=35 // loop_footer
                %s147 = sadd.s32 1, %s143
              $region42: #{mmdvae_forward.10} parent=35 // loop_footer_branch
                %142 = sbr.rel target = $region38
              $region43: #{mmdvae_forward.10} parent=35 // loop_exit
                _
            $region36: #{mmdvae_forward.10} parent=31 // pred_fallthru
              _
            // Predicated region
            $region44: #{mmdvae_forward.10} parent=31 // pred_check
              _
            $region45: #{mmdvae_forward.10} parent=31 // pred_check_branch
              %175 = sbr.rel target = $region47
            $region46: #{mmdvae_forward.10} parent=31 // pred_region
              _
            $region47: #{mmdvae_forward.10} parent=31 // pred_fallthru
              _
          $region32: #{mmdvae_forward.10} parent=27 // pred_fallthru
            _
          %176 = vnop
        $region28: #{mmdvae_forward.10} parent=23 // pred_fallthru
          _
      $region24: #{mmdvae_forward.10} parent=5 // pred_fallthru
        _
      %p177 = scmp.le.s32.totalorder 1, %s9
      %p178 = scmp.lt.s32.totalorder %s9, 5
      %p179 = pnand %p177, %p178
      %p180 = pneg %p179
      // Predicated region
      $region48: #{mmdvae_forward.10} parent=5 // pred_check
        _
      $region49: #{mmdvae_forward.10} parent=5 // pred_check_branch
        %182 = sbr.rel (%p179) target = $region51
      $region50: #{mmdvae_forward.10} parent=5 // pred_region
        %s183 = ssub.s32 %s9, 1
        %s184 = sand.u32 %s43, 1
        %s185 = sand.u32 %s43, 1
        %s186 = smul.addr %s185, 96
        %s187 = scalar_lea.vmem [#allocation2], %s186
        // Predicated region
        $region52: #{mmdvae_forward.10} parent=50 // pred_check
          %p188 = pneg %p56
        $region53: #{mmdvae_forward.10} parent=50 // pred_check_branch
          %190 = sbr.rel (%p188) target = $region55
        $region54: #{mmdvae_forward.10} parent=50 // pred_region
          _
        $region55: #{mmdvae_forward.10} parent=50 // pred_fallthru
          _
        %p191 = pneg %p30
        %p192 = pneg %p27
        %s193 = sand.u32 %s43, 1
        %s194 = sand.u32 %s43, 1
        %s195 = smul.addr %s194, 96
        %s196 = scalar_lea.vmem [#allocation2], %s195
        %p197 = pneg %p56
        %p198 = pneg %p53
        %p199 = pneg %p77
        %p200 = pneg %p74
        %p201 = pneg %p103
        %p202 = pneg %p100
        %s203 = smul.u32 4, %s14
        %p204 = scmp.lt.s32.totalorder %s203, 15
        %s205 = scalar_select %p204, %s203, 15
        %s206 = smul.addr %s205, 4
        %s207 = scalar_lea.vmem %s3, %s206
        %s208 = smul.u32 4, %s14
        %s209 = smul.u32 4, %s14
        %p210 = scmp.lt.s32.totalorder %s209, 15
        %s211 = scalar_select %p210, %s209, 15
        %s212 = smul.addr %s211, 4
        %s213 = scalar_lea.vmem %s3, %s212
        %s214 = smul.u32 4, %s14
        %v216 = vld [vmem:[%s0] sm:$0xf]
        %v217 = vld [vmem:[%s187] sm:$0xff]
        %v218 = vld [vmem:[%s187 + $0x8] sm:$0xff]
        %v219 = vld [vmem:[%s187 + $0x10] sm:$0xff]
        %v220 = vld [vmem:[%s187 + $0x18] sm:$0xff]
        %v221 = vld [vmem:[%s187 + $0x20] sm:$0xff]
        %v222 = vld [vmem:[%s187 + $0x28] sm:$0xff]
        %v223 = vld [vmem:[%s187 + $0x30] sm:$0xff]
        %v224 = vld [vmem:[%s187 + $0x38] sm:$0xff]
        %v225 = vld [vmem:[%s187 + $0x40] sm:$0xff]
        %v226 = vld [vmem:[%s187 + $0x48] sm:$0xff]
        %v227 = vld [vmem:[%s187 + $0x50] sm:$0xff]
        %v228 = vld [vmem:[%s187 + $0x58] sm:$0xff]
        %v229 = vld [vmem:[%s2] sm:$0xff]
        %231 = vset.pattern.permute.xlu0 0
        %232 = vperm.xlu0 %231, %v229
        %v233 = vpop.permute.xlu0 %232
        %v247 = vunpack.c.l.b16 %v217
        %v248 = vunpack.c.h.b16 %v217
        %v249 = vunpack.c.l.b16 %v218
        %v250 = vunpack.c.h.b16 %v218
        %v251 = vunpack.c.l.b16 %v219
        %v252 = vunpack.c.h.b16 %v219
        %v253 = vunpack.c.l.b16 %v220
        %v254 = vunpack.c.h.b16 %v220
        %v255 = vunpack.c.l.b16 %v221
        %v256 = vunpack.c.h.b16 %v221
        %v257 = vunpack.c.l.b16 %v222
        %v258 = vunpack.c.h.b16 %v222
        %v259 = vunpack.c.l.b16 %v223
        %v260 = vunpack.c.h.b16 %v223
        %v261 = vunpack.c.l.b16 %v224
        %v262 = vunpack.c.h.b16 %v224
        %v263 = vunpack.c.l.b16 %v225
        %v264 = vunpack.c.h.b16 %v225
        %v265 = vunpack.c.l.b16 %v226
        %v266 = vunpack.c.h.b16 %v226
        %v267 = vunpack.c.l.b16 %v227
        %v268 = vunpack.c.h.b16 %v227
        %v269 = vunpack.c.l.b16 %v228
        %v270 = vunpack.c.h.b16 %v228
        %v271 = vpack.c.b16 %v251, %v247
        %v272 = vpack.c.b16 %v252, %v248
        %v273 = vpack.c.b16 %v253, %v249
        %v274 = vpack.c.b16 %v254, %v250
        %v275 = vpack.c.b16 %v259, %v255
        %v276 = vpack.c.b16 %v260, %v256
        %v277 = vpack.c.b16 %v261, %v257
        %v278 = vpack.c.b16 %v262, %v258
        %v279 = vpack.c.b16 %v267, %v263
        %v280 = vpack.c.b16 %v268, %v264
        %v281 = vpack.c.b16 %v269, %v265
        %v282 = vpack.c.b16 %v270, %v266
        %vm295 = vcmask 392192
        %v297 = vsel %vm295, %v216, 0
        %299 = vmatprep.subr.bf16.mxu0 %v272
        %300 = vmatpush1.bf16.msra.mxu0 %v271
        %301 = vmatprep.subr.bf16.mxu0 %v276
        %302 = vmatpush1.bf16.msra.mxu0 %v275
        %303 = vmatprep.subr.bf16.mxu0 %v280
        %304 = vmatpush1.bf16.msra.mxu0 %v279
        %305 = vmatprep.subr.bf16.mxu0 0
        %306 = vmatpush1.bf16.msra.mxu0 0
        %307 = vmatprep.subr.bf16.mxu0 0
        %308 = vmatpush1.bf16.msra.mxu0 0
        %309 = vmatprep.subr.bf16.mxu0 0
        %310 = vmatpush1.bf16.msra.mxu0 0
        %311 = vmatprep.subr.bf16.mxu0 0
        %312 = vmatpush1.bf16.msra.mxu0 0
        %313 = vmatprep.subr.bf16.mxu0 0
        %314 = vmatpush1.bf16.msra.mxu0 0
        %315 = vmatprep.subr.bf16.mxu0 0
        %316 = vmatpush1.bf16.msra.mxu0 0
        %317 = vmatprep.subr.bf16.mxu0 0
        %318 = vmatpush1.bf16.msra.mxu0 0
        %319 = vmatprep.subr.bf16.mxu0 0
        %320 = vmatpush1.bf16.msra.mxu0 0
        %321 = vmatprep.subr.bf16.mxu0 0
        %322 = vmatpush1.bf16.msra.mxu0 0
        %323 = vmatprep.subr.bf16.mxu0 0
        %324 = vmatpush1.bf16.msra.mxu0 0
        %325 = vmatprep.subr.bf16.mxu0 0
        %326 = vmatpush1.bf16.msra.mxu0 0
        %327 = vmatprep.subr.bf16.mxu0 0
        %328 = vmatpush1.bf16.msra.mxu0 0
        %329 = vmatprep.subr.bf16.mxu0 0
        %330 = vmatpush1.bf16.msra.mxu0 0
        %331 = vmatprep.mubr.bf16.mxu0 0
        %332 = vmatmul.mubr.bf16.gmra.mrb[0].mxu0 %v297
        %v333 = vpop.f32.mrb[0].mxu0
        %v334 = vadd.f32 %v233, %v333
        %v335 = vpop.f32.mrb[0].mxu0
        %v336 = vadd.f32 %v233, %v335
        %v337 = vpop.f32.mrb[0].mxu0
        %v338 = vpop.f32.mrb[0].mxu0
        %339 = vdwg.mxu0
        %340 = vmatprep.subr.bf16.mxu0 %v274
        %341 = vmatpush1.bf16.msra.mxu0 %v273
        %342 = vmatprep.subr.bf16.mxu0 %v278
        %343 = vmatpush1.bf16.msra.mxu0 %v277
        %344 = vmatprep.subr.bf16.mxu0 %v282
        %345 = vmatpush1.bf16.msra.mxu0 %v281
        %346 = vmatprep.subr.bf16.mxu0 0
        %347 = vmatpush1.bf16.msra.mxu0 0
        %348 = vmatprep.subr.bf16.mxu0 0
        %349 = vmatpush1.bf16.msra.mxu0 0
        %350 = vmatprep.subr.bf16.mxu0 0
        %351 = vmatpush1.bf16.msra.mxu0 0
        %352 = vmatprep.subr.bf16.mxu0 0
        %353 = vmatpush1.bf16.msra.mxu0 0
        %354 = vmatprep.subr.bf16.mxu0 0
        %355 = vmatpush1.bf16.msra.mxu0 0
        %356 = vmatprep.subr.bf16.mxu0 0
        %357 = vmatpush1.bf16.msra.mxu0 0
        %358 = vmatprep.subr.bf16.mxu0 0
        %359 = vmatpush1.bf16.msra.mxu0 0
        %360 = vmatprep.subr.bf16.mxu0 0
        %361 = vmatpush1.bf16.msra.mxu0 0
        %362 = vmatprep.subr.bf16.mxu0 0
        %363 = vmatpush1.bf16.msra.mxu0 0
        %364 = vmatprep.subr.bf16.mxu0 0
        %365 = vmatpush1.bf16.msra.mxu0 0
        %366 = vmatprep.subr.bf16.mxu0 0
        %367 = vmatpush1.bf16.msra.mxu0 0
        %368 = vmatprep.subr.bf16.mxu0 0
        %369 = vmatpush1.bf16.msra.mxu0 0
        %370 = vmatprep.subr.bf16.mxu0 0
        %371 = vmatpush1.bf16.msra.mxu0 0
        %372 = vmatprep.mubr.bf16.mxu0 0
        %373 = vmatmul.mubr.bf16.gmra.mrb[0].mxu0 %v297
        %v374 = vpop.f32.mrb[0].mxu0
        %v375 = vadd.f32 %v233, %v374
        %v376 = vpop.f32.mrb[0].mxu0
        %v377 = vadd.f32 %v233, %v376
        %v378 = vpop.f32.mrb[0].mxu0
        %v379 = vpop.f32.mrb[0].mxu0
        %380 = vdwg.mxu0
        %v381 = vmax.f32 %v334, 0.0
        %v382 = vmax.f32 %v336, 0.0
        %v383 = vmax.f32 %v375, 0.0
        %v384 = vmax.f32 %v377, 0.0
        %v385 = vpack.c.bf16 %v381, %v381
        %v386 = vpack.c.bf16 %v382, %v382
        %v387 = vpack.c.bf16 %v383, %v383
        %v388 = vpack.c.bf16 %v384, %v384
        %v393 = vunpack.c.l.b16 %v385
        %v394 = vunpack.c.l.b16 %v386
        %v395 = vunpack.c.l.b16 %v387
        %v396 = vunpack.c.l.b16 %v388
        %v397 = vpack.c.b16 %v394, %v393
        %v398 = vpack.c.b16 %v396, %v395
        %401 = vst [vmem:[%s213] sm:$0xff] %v397
        %402 = vst [vmem:[%s213 + $0x8] sm:$0xff] %v398
        %s403 = smul.u32 4, %s14
        %p404 = scmp.lt.s32.totalorder %s403, 15
        %s405 = scalar_select %p404, %s403, 15
        %s406 = smul.addr %s405, 4
        %s407 = scalar_lea.vmem %s3, %s406
        // Predicated region
        $region56: #{mmdvae_forward.10} parent=50 // pred_check
          %p408 = pneg %p100
        $region57: #{mmdvae_forward.10} parent=50 // pred_check_branch
          %410 = sbr.rel (%p408) target = $region59
        $region58: #{mmdvae_forward.10} parent=50 // pred_region
          %s411 = smul.u32 4, %s14
        $region59: #{mmdvae_forward.10} parent=50 // pred_fallthru
          _
      $region51: #{mmdvae_forward.10} parent=5 // pred_fallthru
        _
      %p412 = scmp.le.s32.totalorder 2, %s9
      // Predicated region
      $region60: #{mmdvae_forward.10} parent=5 // pred_check
        %p413 = pneg %p412
      $region61: #{mmdvae_forward.10} parent=5 // pred_check_branch
        %415 = sbr.rel (%p413) target = $region63
      $region62: #{mmdvae_forward.10} parent=5 // pred_region
        %s416 = ssub.s32 %s9, 2
        // Predicated region
        $region64: #{mmdvae_forward.10} parent=62 // pred_check
          %p417 = pneg %p106
        $region65: #{mmdvae_forward.10} parent=62 // pred_check_branch
          %419 = sbr.rel (%p417) target = $region67
        $region66: #{mmdvae_forward.10} parent=62 // pred_region
          %s420 = smul.u32 4, %s15
          %p421 = scmp.lt.s32.totalorder %s420, 15
          %s422 = scalar_select %p421, %s420, 15
          %s423 = smul.addr %s422, 4
          %s424 = scalar_lea.vmem %s3, %s423
        $region67: #{mmdvae_forward.10} parent=62 // pred_fallthru
          _
      $region63: #{mmdvae_forward.10} parent=5 // pred_fallthru
        _
    $region6: #{mmdvae_forward.10} parent=1 // loop_footer
      %s13 = sadd.s32 1, %s9
    $region7: #{mmdvae_forward.10} parent=1 // loop_footer_branch
      %8 = sbr.rel target = $region3
    $region8: #{mmdvae_forward.10} parent=1 // loop_exit
      _

// kernel: mmdvae_forward.11
$region0: #{mmdvae_forward.11}
  #allocation0 [shape = 'u32[]', space=smem, size = 0x4, offset = 0x4, fixed_abs, tag = 'smem constant byte address 0x4 - core index']
  #allocation1 [shape = 'u32[144,128]{1,0:T(1,128)}', space=vmem, size = 0x12000, scoped, tag = 'internal scratch']
  %s0 = inlined_call_operand.vmem [shape: bf16[16,128], index: 0, kind: input, shape index: {}]
  %s1 = inlined_call_operand.vmem [shape: bf16[128,512], index: 1, kind: input, shape index: {}]
  %s2 = inlined_call_operand.vmem [shape: f32[16,1], index: 2, kind: input, shape index: {}]
  %s3 = inlined_call_operand.vmem [shape: bf16[16,512], index: 3, kind: output, shape index: {}]
  %s4 = sld [smem:[#allocation0]]
  $region22: #{mmdvae_forward.11} parent=0
    _
  %s6 = ssub.s32 1, %s4
  %s7 = scalar_select 0, %s6, %s4
  // Predicated region
  $region2: #{mmdvae_forward.11} parent=0 // pred_check
    _
  $region3: #{mmdvae_forward.11} parent=0 // pred_check_branch
    %9 = sbr.rel (0) target = $region5
  $region4: #{mmdvae_forward.11} parent=0 // pred_region
    _
  $region5: #{mmdvae_forward.11} parent=0 // pred_fallthru
    _
  // Predicated region
  $region6: #{mmdvae_forward.11} parent=0 // pred_check
    _
  $region7: #{mmdvae_forward.11} parent=0 // pred_check_branch
    %11 = sbr.rel (0) target = $region9
  $region8: #{mmdvae_forward.11} parent=0 // pred_region
    _
  $region9: #{mmdvae_forward.11} parent=0 // pred_fallthru
    _
  // Predicated region
  $region10: #{mmdvae_forward.11} parent=0 // pred_check
    _
  $region11: #{mmdvae_forward.11} parent=0 // pred_check_branch
    %13 = sbr.rel (0) target = $region13
  $region12: #{mmdvae_forward.11} parent=0 // pred_region
    _
  $region13: #{mmdvae_forward.11} parent=0 // pred_fallthru
    _
  %v15 = vld [vmem:[%s0] sm:$0xf]
  %v16 = vld [vmem:[%s0 + $0x4] sm:$0xf]
  %v17 = vld [vmem:[%s1] sm:$0xff]
  %v18 = vld [vmem:[%s1 + $0x8] sm:$0xff]
  %v19 = vld [vmem:[%s1 + $0x10] sm:$0xff]
  %v20 = vld [vmem:[%s1 + $0x18] sm:$0xff]
  %v21 = vld [vmem:[%s1 + $0x20] sm:$0xff]
  %v22 = vld [vmem:[%s1 + $0x28] sm:$0xff]
  %v23 = vld [vmem:[%s1 + $0x30] sm:$0xff]
  %v24 = vld [vmem:[%s1 + $0x38] sm:$0xff]
  %v25 = vld [vmem:[%s1 + $0x40] sm:$0xff]
  %v26 = vld [vmem:[%s1 + $0x48] sm:$0xff]
  %v27 = vld [vmem:[%s1 + $0x50] sm:$0xff]
  %v28 = vld [vmem:[%s1 + $0x58] sm:$0xff]
  %v29 = vld [vmem:[%s1 + $0x60] sm:$0xff]
  %v30 = vld [vmem:[%s1 + $0x68] sm:$0xff]
  %v31 = vld [vmem:[%s1 + $0x70] sm:$0xff]
  %v32 = vld [vmem:[%s1 + $0x78] sm:$0xff]
  %v33 = vld [vmem:[%s1 + $0x80] sm:$0xff]
  %v34 = vld [vmem:[%s1 + $0x88] sm:$0xff]
  %v35 = vld [vmem:[%s1 + $0x90] sm:$0xff]
  %v36 = vld [vmem:[%s1 + $0x98] sm:$0xff]
  %v37 = vld [vmem:[%s1 + $0xa0] sm:$0xff]
  %v38 = vld [vmem:[%s1 + $0xa8] sm:$0xff]
  %v39 = vld [vmem:[%s1 + $0xb0] sm:$0xff]
  %v40 = vld [vmem:[%s1 + $0xb8] sm:$0xff]
  %v41 = vld [vmem:[%s1 + $0xc0] sm:$0xff]
  %v42 = vld [vmem:[%s1 + $0xc8] sm:$0xff]
  %v43 = vld [vmem:[%s1 + $0xd0] sm:$0xff]
  %v44 = vld [vmem:[%s1 + $0xd8] sm:$0xff]
  %v45 = vld [vmem:[%s1 + $0xe0] sm:$0xff]
  %v46 = vld [vmem:[%s1 + $0xe8] sm:$0xff]
  %v47 = vld [vmem:[%s1 + $0xf0] sm:$0xff]
  %v48 = vld [vmem:[%s1 + $0xf8] sm:$0xff]
  %v49 = vld [vmem:[%s2] sm:$0xff]
  %v50 = vld [vmem:[%s2 + $0x8] sm:$0xff]
  %52 = vset.pattern.permute.xlu0 0
  %53 = vperm.xlu0 %52, %v49
  %v54 = vpop.permute.xlu0 %53
  %57 = vset.pattern.permute.xlu0 0
  %58 = vperm.xlu0 %57, %v50
  %v59 = vpop.permute.xlu0 %58
  %v63 = vunpack.c.l.b16 %v15
  %v64 = vunpack.c.l.b16 %v16
  %v65 = vpack.c.b16 %v64, %v63
  %v99 = vunpack.c.l.b16 %v17
  %v100 = vunpack.c.h.b16 %v17
  %v101 = vunpack.c.l.b16 %v18
  %v102 = vunpack.c.h.b16 %v18
  %v103 = vunpack.c.l.b16 %v19
  %v104 = vunpack.c.h.b16 %v19
  %v105 = vunpack.c.l.b16 %v20
  %v106 = vunpack.c.h.b16 %v20
  %v107 = vunpack.c.l.b16 %v21
  %v108 = vunpack.c.h.b16 %v21
  %v109 = vunpack.c.l.b16 %v22
  %v110 = vunpack.c.h.b16 %v22
  %v111 = vunpack.c.l.b16 %v23
  %v112 = vunpack.c.h.b16 %v23
  %v113 = vunpack.c.l.b16 %v24
  %v114 = vunpack.c.h.b16 %v24
  %v115 = vunpack.c.l.b16 %v25
  %v116 = vunpack.c.h.b16 %v25
  %v117 = vunpack.c.l.b16 %v26
  %v118 = vunpack.c.h.b16 %v26
  %v119 = vunpack.c.l.b16 %v27
  %v120 = vunpack.c.h.b16 %v27
  %v121 = vunpack.c.l.b16 %v28
  %v122 = vunpack.c.h.b16 %v28
  %v123 = vunpack.c.l.b16 %v29
  %v124 = vunpack.c.h.b16 %v29
  %v125 = vunpack.c.l.b16 %v30
  %v126 = vunpack.c.h.b16 %v30
  %v127 = vunpack.c.l.b16 %v31
  %v128 = vunpack.c.h.b16 %v31
  %v129 = vunpack.c.l.b16 %v32
  %v130 = vunpack.c.h.b16 %v32
  %v131 = vunpack.c.l.b16 %v33
  %v132 = vunpack.c.h.b16 %v33
  %v133 = vunpack.c.l.b16 %v34
  %v134 = vunpack.c.h.b16 %v34
  %v135 = vunpack.c.l.b16 %v35
  %v136 = vunpack.c.h.b16 %v35
  %v137 = vunpack.c.l.b16 %v36
  %v138 = vunpack.c.h.b16 %v36
  %v139 = vunpack.c.l.b16 %v37
  %v140 = vunpack.c.h.b16 %v37
  %v141 = vunpack.c.l.b16 %v38
  %v142 = vunpack.c.h.b16 %v38
  %v143 = vunpack.c.l.b16 %v39
  %v144 = vunpack.c.h.b16 %v39
  %v145 = vunpack.c.l.b16 %v40
  %v146 = vunpack.c.h.b16 %v40
  %v147 = vunpack.c.l.b16 %v41
  %v148 = vunpack.c.h.b16 %v41
  %v149 = vunpack.c.l.b16 %v42
  %v150 = vunpack.c.h.b16 %v42
  %v151 = vunpack.c.l.b16 %v43
  %v152 = vunpack.c.h.b16 %v43
  %v153 = vunpack.c.l.b16 %v44
  %v154 = vunpack.c.h.b16 %v44
  %v155 = vunpack.c.l.b16 %v45
  %v156 = vunpack.c.h.b16 %v45
  %v157 = vunpack.c.l.b16 %v46
  %v158 = vunpack.c.h.b16 %v46
  %v159 = vunpack.c.l.b16 %v47
  %v160 = vunpack.c.h.b16 %v47
  %v161 = vunpack.c.l.b16 %v48
  %v162 = vunpack.c.h.b16 %v48
  %v163 = vpack.c.b16 %v103, %v99
  %v164 = vpack.c.b16 %v104, %v100
  %v165 = vpack.c.b16 %v105, %v101
  %v166 = vpack.c.b16 %v106, %v102
  %v167 = vpack.c.b16 %v111, %v107
  %v168 = vpack.c.b16 %v112, %v108
  %v169 = vpack.c.b16 %v113, %v109
  %v170 = vpack.c.b16 %v114, %v110
  %v171 = vpack.c.b16 %v119, %v115
  %v172 = vpack.c.b16 %v120, %v116
  %v173 = vpack.c.b16 %v121, %v117
  %v174 = vpack.c.b16 %v122, %v118
  %v175 = vpack.c.b16 %v127, %v123
  %v176 = vpack.c.b16 %v128, %v124
  %v177 = vpack.c.b16 %v129, %v125
  %v178 = vpack.c.b16 %v130, %v126
  %v179 = vpack.c.b16 %v135, %v131
  %v180 = vpack.c.b16 %v136, %v132
  %v181 = vpack.c.b16 %v137, %v133
  %v182 = vpack.c.b16 %v138, %v134
  %v183 = vpack.c.b16 %v143, %v139
  %v184 = vpack.c.b16 %v144, %v140
  %v185 = vpack.c.b16 %v145, %v141
  %v186 = vpack.c.b16 %v146, %v142
  %v187 = vpack.c.b16 %v151, %v147
  %v188 = vpack.c.b16 %v152, %v148
  %v189 = vpack.c.b16 %v153, %v149
  %v190 = vpack.c.b16 %v154, %v150
  %v191 = vpack.c.b16 %v159, %v155
  %v192 = vpack.c.b16 %v160, %v156
  %v193 = vpack.c.b16 %v161, %v157
  %v194 = vpack.c.b16 %v162, %v158
  %227 = vmatprep.subr.bf16.mxu0 %v164
  %228 = vmatpush1.bf16.msra.mxu0 %v163
  %229 = vmatprep.subr.bf16.mxu0 %v168
  %230 = vmatpush1.bf16.msra.mxu0 %v167
  %231 = vmatprep.subr.bf16.mxu0 %v172
  %232 = vmatpush1.bf16.msra.mxu0 %v171
  %233 = vmatprep.subr.bf16.mxu0 %v176
  %234 = vmatpush1.bf16.msra.mxu0 %v175
  %235 = vmatprep.subr.bf16.mxu0 %v180
  %236 = vmatpush1.bf16.msra.mxu0 %v179
  %237 = vmatprep.subr.bf16.mxu0 %v184
  %238 = vmatpush1.bf16.msra.mxu0 %v183
  %239 = vmatprep.subr.bf16.mxu0 %v188
  %240 = vmatpush1.bf16.msra.mxu0 %v187
  %241 = vmatprep.subr.bf16.mxu0 %v192
  %242 = vmatpush1.bf16.msra.mxu0 %v191
  %243 = vmatprep.subr.bf16.mxu0 0
  %244 = vmatpush1.bf16.msra.mxu0 0
  %245 = vmatprep.subr.bf16.mxu0 0
  %246 = vmatpush1.bf16.msra.mxu0 0
  %247 = vmatprep.subr.bf16.mxu0 0
  %248 = vmatpush1.bf16.msra.mxu0 0
  %249 = vmatprep.subr.bf16.mxu0 0
  %250 = vmatpush1.bf16.msra.mxu0 0
  %251 = vmatprep.subr.bf16.mxu0 0
  %252 = vmatpush1.bf16.msra.mxu0 0
  %253 = vmatprep.subr.bf16.mxu0 0
  %254 = vmatpush1.bf16.msra.mxu0 0
  %255 = vmatprep.subr.bf16.mxu0 0
  %256 = vmatpush1.bf16.msra.mxu0 0
  %257 = vmatprep.subr.bf16.mxu0 0
  %258 = vmatpush1.bf16.msra.mxu0 0
  %259 = vmatprep.mubr.bf16.mxu0 0
  %260 = vmatmul.mubr.bf16.gmra.mrb[0].mxu0 %v65
  %v261 = vpop.f32.mrb[0].mxu0
  %v262 = vadd.f32 %v54, %v261
  %v263 = vpop.f32.mrb[0].mxu0
  %v264 = vadd.f32 %v54, %v263
  %v265 = vpop.f32.mrb[0].mxu0
  %v266 = vadd.f32 %v59, %v265
  %v267 = vpop.f32.mrb[0].mxu0
  %v268 = vadd.f32 %v59, %v267
  %269 = vdwg.mxu0
  %270 = vmatprep.subr.bf16.mxu0 %v166
  %271 = vmatpush1.bf16.msra.mxu0 %v165
  %272 = vmatprep.subr.bf16.mxu0 %v170
  %273 = vmatpush1.bf16.msra.mxu0 %v169
  %274 = vmatprep.subr.bf16.mxu0 %v174
  %275 = vmatpush1.bf16.msra.mxu0 %v173
  %276 = vmatprep.subr.bf16.mxu0 %v178
  %277 = vmatpush1.bf16.msra.mxu0 %v177
  %278 = vmatprep.subr.bf16.mxu0 %v182
  %279 = vmatpush1.bf16.msra.mxu0 %v181
  %280 = vmatprep.subr.bf16.mxu0 %v186
  %281 = vmatpush1.bf16.msra.mxu0 %v185
  %282 = vmatprep.subr.bf16.mxu0 %v190
  %283 = vmatpush1.bf16.msra.mxu0 %v189
  %284 = vmatprep.subr.bf16.mxu0 %v194
  %285 = vmatpush1.bf16.msra.mxu0 %v193
  %286 = vmatprep.subr.bf16.mxu0 0
  %287 = vmatpush1.bf16.msra.mxu0 0
  %288 = vmatprep.subr.bf16.mxu0 0
  %289 = vmatpush1.bf16.msra.mxu0 0
  %290 = vmatprep.subr.bf16.mxu0 0
  %291 = vmatpush1.bf16.msra.mxu0 0
  %292 = vmatprep.subr.bf16.mxu0 0
  %293 = vmatpush1.bf16.msra.mxu0 0
  %294 = vmatprep.subr.bf16.mxu0 0
  %295 = vmatpush1.bf16.msra.mxu0 0
  %296 = vmatprep.subr.bf16.mxu0 0
  %297 = vmatpush1.bf16.msra.mxu0 0
  %298 = vmatprep.subr.bf16.mxu0 0
  %299 = vmatpush1.bf16.msra.mxu0 0
  %300 = vmatprep.subr.bf16.mxu0 0
  %301 = vmatpush1.bf16.msra.mxu0 0
  %302 = vmatprep.mubr.bf16.mxu0 0
  %303 = vmatmul.mubr.bf16.gmra.mrb[0].mxu0 %v65
  %v304 = vpop.f32.mrb[0].mxu0
  %v305 = vadd.f32 %v54, %v304
  %v306 = vpop.f32.mrb[0].mxu0
  %v307 = vadd.f32 %v54, %v306
  %v308 = vpop.f32.mrb[0].mxu0
  %v309 = vadd.f32 %v59, %v308
  %v310 = vpop.f32.mrb[0].mxu0
  %v311 = vadd.f32 %v59, %v310
  %312 = vdwg.mxu0
  %v313 = vmax.f32 %v262, 0.0
  %v314 = vmax.f32 %v264, 0.0
  %v315 = vmax.f32 %v305, 0.0
  %v316 = vmax.f32 %v307, 0.0
  %v317 = vmax.f32 %v266, 0.0
  %v318 = vmax.f32 %v268, 0.0
  %v319 = vmax.f32 %v309, 0.0
  %v320 = vmax.f32 %v311, 0.0
  %v321 = vpack.c.bf16 %v317, %v313
  %v322 = vpack.c.bf16 %v318, %v314
  %v323 = vpack.c.bf16 %v319, %v315
  %v324 = vpack.c.bf16 %v320, %v316
  %v329 = vunpack.c.l.b16 %v321
  %v330 = vunpack.c.l.b16 %v322
  %v331 = vunpack.c.l.b16 %v323
  %v332 = vunpack.c.l.b16 %v324
  %v333 = vunpack.c.h.b16 %v321
  %v334 = vunpack.c.h.b16 %v322
  %v335 = vunpack.c.h.b16 %v323
  %v336 = vunpack.c.h.b16 %v324
  %v337 = vpack.c.b16 %v330, %v329
  %v338 = vpack.c.b16 %v332, %v331
  %v339 = vpack.c.b16 %v334, %v333
  %v340 = vpack.c.b16 %v336, %v335
  %345 = vst [vmem:[%s3] sm:$0xff] %v337
  %346 = vst [vmem:[%s3 + $0x8] sm:$0xff] %v338
  %347 = vst [vmem:[%s3 + $0x10] sm:$0xff] %v339
  %348 = vst [vmem:[%s3 + $0x18] sm:$0xff] %v340
  // Predicated region
  $region14: #{mmdvae_forward.11} parent=0 // pred_check
    _
  $region15: #{mmdvae_forward.11} parent=0 // pred_check_branch
    %350 = sbr.rel (0) target = $region17
  $region16: #{mmdvae_forward.11} parent=0 // pred_region
    _
  $region17: #{mmdvae_forward.11} parent=0 // pred_fallthru
    _
  // Predicated region
  $region18: #{mmdvae_forward.11} parent=0 // pred_check
    _
  $region19: #{mmdvae_forward.11} parent=0 // pred_check_branch
    %352 = sbr.rel (0) target = $region21
  $region20: #{mmdvae_forward.11} parent=0 // pred_region
    _
  $region21: #{mmdvae_forward.11} parent=0 // pred_fallthru
    _

// kernel: mmdvae_forward.12
$region0: #{mmdvae_forward.12}
  #allocation0 [shape = 'u32[]', space=smem, size = 0x4, offset = 0x4, fixed_abs, tag = 'smem constant byte address 0x4 - core index']
  #allocation1 [shape = 'u32[144,128]{1,0:T(1,128)}', space=vmem, size = 0x12000, scoped, tag = 'internal scratch']
  %s0 = inlined_call_operand.vmem [shape: bf16[32,256], index: 0, kind: input, shape index: {}]
  %s1 = inlined_call_operand.vmem [shape: bf16[256,128], index: 1, kind: input, shape index: {}]
  %s2 = inlined_call_operand.vmem [shape: f32[32,1], index: 2, kind: input, shape index: {}]
  %s3 = inlined_call_operand.vmem [shape: bf16[32,128], index: 3, kind: output, shape index: {}]
  %s4 = sld [smem:[#allocation0]]
  $region22: #{mmdvae_forward.12} parent=0
    _
  %s6 = ssub.s32 1, %s4
  %s7 = scalar_select 0, %s6, %s4
  // Predicated region
  $region2: #{mmdvae_forward.12} parent=0 // pred_check
    _
  $region3: #{mmdvae_forward.12} parent=0 // pred_check_branch
    %9 = sbr.rel (0) target = $region5
  $region4: #{mmdvae_forward.12} parent=0 // pred_region
    _
  $region5: #{mmdvae_forward.12} parent=0 // pred_fallthru
    _
  // Predicated region
  $region6: #{mmdvae_forward.12} parent=0 // pred_check
    _
  $region7: #{mmdvae_forward.12} parent=0 // pred_check_branch
    %11 = sbr.rel (0) target = $region9
  $region8: #{mmdvae_forward.12} parent=0 // pred_region
    _
  $region9: #{mmdvae_forward.12} parent=0 // pred_fallthru
    _
  // Predicated region
  $region10: #{mmdvae_forward.12} parent=0 // pred_check
    _
  $region11: #{mmdvae_forward.12} parent=0 // pred_check_branch
    %13 = sbr.rel (0) target = $region13
  $region12: #{mmdvae_forward.12} parent=0 // pred_region
    _
  $region13: #{mmdvae_forward.12} parent=0 // pred_fallthru
    _
  %v15 = vld [vmem:[%s0] sm:$0xff]
  %v16 = vld [vmem:[%s0 + $0x8] sm:$0xff]
  %v17 = vld [vmem:[%s0 + $0x10] sm:$0xff]
  %v18 = vld [vmem:[%s0 + $0x18] sm:$0xff]
  %v19 = vld [vmem:[%s1] sm:$0xf]
  %v20 = vld [vmem:[%s1 + $0x4] sm:$0xf]
  %v21 = vld [vmem:[%s1 + $0x8] sm:$0xf]
  %v22 = vld [vmem:[%s1 + $0xc] sm:$0xf]
  %v23 = vld [vmem:[%s1 + $0x10] sm:$0xf]
  %v24 = vld [vmem:[%s1 + $0x14] sm:$0xf]
  %v25 = vld [vmem:[%s1 + $0x18] sm:$0xf]
  %v26 = vld [vmem:[%s1 + $0x1c] sm:$0xf]
  %v27 = vld [vmem:[%s1 + $0x20] sm:$0xf]
  %v28 = vld [vmem:[%s1 + $0x24] sm:$0xf]
  %v29 = vld [vmem:[%s1 + $0x28] sm:$0xf]
  %v30 = vld [vmem:[%s1 + $0x2c] sm:$0xf]
  %v31 = vld [vmem:[%s1 + $0x30] sm:$0xf]
  %v32 = vld [vmem:[%s1 + $0x34] sm:$0xf]
  %v33 = vld [vmem:[%s1 + $0x38] sm:$0xf]
  %v34 = vld [vmem:[%s1 + $0x3c] sm:$0xf]
  %v35 = vld [vmem:[%s1 + $0x40] sm:$0xf]
  %v36 = vld [vmem:[%s1 + $0x44] sm:$0xf]
  %v37 = vld [vmem:[%s1 + $0x48] sm:$0xf]
  %v38 = vld [vmem:[%s1 + $0x4c] sm:$0xf]
  %v39 = vld [vmem:[%s1 + $0x50] sm:$0xf]
  %v40 = vld [vmem:[%s1 + $0x54] sm:$0xf]
  %v41 = vld [vmem:[%s1 + $0x58] sm:$0xf]
  %v42 = vld [vmem:[%s1 + $0x5c] sm:$0xf]
  %v43 = vld [vmem:[%s1 + $0x60] sm:$0xf]
  %v44 = vld [vmem:[%s1 + $0x64] sm:$0xf]
  %v45 = vld [vmem:[%s1 + $0x68] sm:$0xf]
  %v46 = vld [vmem:[%s1 + $0x6c] sm:$0xf]
  %v47 = vld [vmem:[%s1 + $0x70] sm:$0xf]
  %v48 = vld [vmem:[%s1 + $0x74] sm:$0xf]
  %v49 = vld [vmem:[%s1 + $0x78] sm:$0xf]
  %v50 = vld [vmem:[%s1 + $0x7c] sm:$0xf]
  %v51 = vld [vmem:[%s2] sm:$0xff]
  %v52 = vld [vmem:[%s2 + $0x8] sm:$0xff]
  %v53 = vld [vmem:[%s2 + $0x10] sm:$0xff]
  %v54 = vld [vmem:[%s2 + $0x18] sm:$0xff]
  %56 = vset.pattern.permute.xlu0 0
  %57 = vperm.xlu0 %56, %v51
  %v58 = vpop.permute.xlu0 %57
  %61 = vset.pattern.permute.xlu0 0
  %62 = vperm.xlu0 %61, %v52
  %v63 = vpop.permute.xlu0 %62
  %66 = vset.pattern.permute.xlu0 0
  %67 = vperm.xlu0 %66, %v53
  %v68 = vpop.permute.xlu0 %67
  %71 = vset.pattern.permute.xlu0 0
  %72 = vperm.xlu0 %71, %v54
  %v73 = vpop.permute.xlu0 %72
  %v79 = vunpack.c.l.b16 %v15
  %v80 = vunpack.c.h.b16 %v15
  %v81 = vunpack.c.l.b16 %v16
  %v82 = vunpack.c.h.b16 %v16
  %v83 = vunpack.c.l.b16 %v17
  %v84 = vunpack.c.h.b16 %v17
  %v85 = vunpack.c.l.b16 %v18
  %v86 = vunpack.c.h.b16 %v18
  %v87 = vpack.c.b16 %v81, %v79
  %v88 = vpack.c.b16 %v82, %v80
  %v89 = vpack.c.b16 %v85, %v83
  %v90 = vpack.c.b16 %v86, %v84
  %v127 = vunpack.c.l.b16 %v19
  %v128 = vunpack.c.l.b16 %v20
  %v129 = vunpack.c.l.b16 %v21
  %v130 = vunpack.c.l.b16 %v22
  %v131 = vunpack.c.l.b16 %v23
  %v132 = vunpack.c.l.b16 %v24
  %v133 = vunpack.c.l.b16 %v25
  %v134 = vunpack.c.l.b16 %v26
  %v135 = vunpack.c.l.b16 %v27
  %v136 = vunpack.c.l.b16 %v28
  %v137 = vunpack.c.l.b16 %v29
  %v138 = vunpack.c.l.b16 %v30
  %v139 = vunpack.c.l.b16 %v31
  %v140 = vunpack.c.l.b16 %v32
  %v141 = vunpack.c.l.b16 %v33
  %v142 = vunpack.c.l.b16 %v34
  %v143 = vunpack.c.l.b16 %v35
  %v144 = vunpack.c.l.b16 %v36
  %v145 = vunpack.c.l.b16 %v37
  %v146 = vunpack.c.l.b16 %v38
  %v147 = vunpack.c.l.b16 %v39
  %v148 = vunpack.c.l.b16 %v40
  %v149 = vunpack.c.l.b16 %v41
  %v150 = vunpack.c.l.b16 %v42
  %v151 = vunpack.c.l.b16 %v43
  %v152 = vunpack.c.l.b16 %v44
  %v153 = vunpack.c.l.b16 %v45
  %v154 = vunpack.c.l.b16 %v46
  %v155 = vunpack.c.l.b16 %v47
  %v156 = vunpack.c.l.b16 %v48
  %v157 = vunpack.c.l.b16 %v49
  %v158 = vunpack.c.l.b16 %v50
  %v159 = vpack.c.b16 %v128, %v127
  %v160 = vpack.c.b16 %v130, %v129
  %v161 = vpack.c.b16 %v132, %v131
  %v162 = vpack.c.b16 %v134, %v133
  %v163 = vpack.c.b16 %v136, %v135
  %v164 = vpack.c.b16 %v138, %v137
  %v165 = vpack.c.b16 %v140, %v139
  %v166 = vpack.c.b16 %v142, %v141
  %v167 = vpack.c.b16 %v144, %v143
  %v168 = vpack.c.b16 %v146, %v145
  %v169 = vpack.c.b16 %v148, %v147
  %v170 = vpack.c.b16 %v150, %v149
  %v171 = vpack.c.b16 %v152, %v151
  %v172 = vpack.c.b16 %v154, %v153
  %v173 = vpack.c.b16 %v156, %v155
  %v174 = vpack.c.b16 %v158, %v157
  %191 = vmatprep.subr.bf16.mxu0 0
  %192 = vmatpush1.bf16.msra.mxu0 %v159
  %193 = vmatprep.subr.bf16.mxu0 0
  %194 = vmatpush1.bf16.msra.mxu0 %v160
  %195 = vmatprep.subr.bf16.mxu0 0
  %196 = vmatpush1.bf16.msra.mxu0 %v161
  %197 = vmatprep.subr.bf16.mxu0 0
  %198 = vmatpush1.bf16.msra.mxu0 %v162
  %199 = vmatprep.subr.bf16.mxu0 0
  %200 = vmatpush1.bf16.msra.mxu0 %v163
  %201 = vmatprep.subr.bf16.mxu0 0
  %202 = vmatpush1.bf16.msra.mxu0 %v164
  %203 = vmatprep.subr.bf16.mxu0 0
  %204 = vmatpush1.bf16.msra.mxu0 %v165
  %205 = vmatprep.subr.bf16.mxu0 0
  %206 = vmatpush1.bf16.msra.mxu0 %v166
  %207 = vmatprep.subr.bf16.mxu0 0
  %208 = vmatpush1.bf16.msra.mxu0 %v167
  %209 = vmatprep.subr.bf16.mxu0 0
  %210 = vmatpush1.bf16.msra.mxu0 %v168
  %211 = vmatprep.subr.bf16.mxu0 0
  %212 = vmatpush1.bf16.msra.mxu0 %v169
  %213 = vmatprep.subr.bf16.mxu0 0
  %214 = vmatpush1.bf16.msra.mxu0 %v170
  %215 = vmatprep.subr.bf16.mxu0 0
  %216 = vmatpush1.bf16.msra.mxu0 %v171
  %217 = vmatprep.subr.bf16.mxu0 0
  %218 = vmatpush1.bf16.msra.mxu0 %v172
  %219 = vmatprep.subr.bf16.mxu0 0
  %220 = vmatpush1.bf16.msra.mxu0 %v173
  %221 = vmatprep.subr.bf16.mxu0 0
  %222 = vmatpush1.bf16.msra.mxu0 %v174
  %223 = vmatprep.mubr.bf16.mxu0 %v88
  %224 = vmatmul.mubr.bf16.gmra.mrb[0].mxu0 %v87
  %v225 = vpop.f32.mrb[0].mxu0
  %v226 = vadd.f32 %v58, %v225
  %v227 = vpop.f32.mrb[0].mxu0
  %v228 = vpop.f32.mrb[0].mxu0
  %v229 = vadd.f32 %v63, %v228
  %v230 = vpop.f32.mrb[0].mxu0
  %231 = vmatprep.mubr.bf16.mxu0 %v90
  %232 = vmatmul.mubr.bf16.gmra.mrb[0].mxu0 %v89
  %v233 = vpop.f32.mrb[0].mxu0
  %v234 = vadd.f32 %v68, %v233
  %v235 = vpop.f32.mrb[0].mxu0
  %v236 = vpop.f32.mrb[0].mxu0
  %v237 = vadd.f32 %v73, %v236
  %v238 = vpop.f32.mrb[0].mxu0
  %239 = vdwg.mxu0
  %v240 = vmax.f32 %v226, 0.0
  %v241 = vmax.f32 %v229, 0.0
  %v242 = vmax.f32 %v234, 0.0
  %v243 = vmax.f32 %v237, 0.0
  %v244 = vpack.c.bf16 %v241, %v240
  %v245 = vpack.c.bf16 %v243, %v242
  %v248 = vunpack.c.l.b16 %v244
  %v249 = vunpack.c.h.b16 %v244
  %v250 = vunpack.c.l.b16 %v245
  %v251 = vunpack.c.h.b16 %v245
  %v252 = vpack.c.b16 %v248, %v248
  %v253 = vpack.c.b16 %v249, %v249
  %v254 = vpack.c.b16 %v250, %v250
  %v255 = vpack.c.b16 %v251, %v251
  %260 = vst [vmem:[%s3] sm:$0xf] %v252
  %261 = vst [vmem:[%s3 + $0x4] sm:$0xf] %v253
  %262 = vst [vmem:[%s3 + $0x8] sm:$0xf] %v254
  %263 = vst [vmem:[%s3 + $0xc] sm:$0xf] %v255
  // Predicated region
  $region14: #{mmdvae_forward.12} parent=0 // pred_check
    _
  $region15: #{mmdvae_forward.12} parent=0 // pred_check_branch
    %265 = sbr.rel (0) target = $region17
  $region16: #{mmdvae_forward.12} parent=0 // pred_region
    _
  $region17: #{mmdvae_forward.12} parent=0 // pred_fallthru
    _
  // Predicated region
  $region18: #{mmdvae_forward.12} parent=0 // pred_check
    _
  $region19: #{mmdvae_forward.12} parent=0 // pred_check_branch
    %267 = sbr.rel (0) target = $region21
  $region20: #{mmdvae_forward.12} parent=0 // pred_region
    _
  $region21: #{mmdvae_forward.12} parent=0 // pred_fallthru
    _

// kernel: mmdvae_forward.13
$region0: #{mmdvae_forward.13}
  #allocation0 [shape = 'u32[]', space=smem, size = 0x4, offset = 0x4, fixed_abs, tag = 'smem constant byte address 0x4 - core index']
  #allocation1 [shape = 'u32[144,128]{1,0:T(1,128)}', space=vmem, size = 0x12000, scoped, tag = 'internal scratch']
  %s0 = inlined_call_operand.vmem [shape: bf16[64,512], index: 0, kind: input, shape index: {}]
  %s1 = inlined_call_operand.vmem [shape: bf16[512,128], index: 1, kind: input, shape index: {}]
  %s2 = inlined_call_operand.vmem [shape: f32[64,1], index: 2, kind: input, shape index: {}]
  %s3 = inlined_call_operand.vmem [shape: bf16[64,128], index: 3, kind: output, shape index: {}]
  %s4 = sld [smem:[#allocation0]]
  $region22: #{mmdvae_forward.13} parent=0
    _
  %s6 = ssub.s32 1, %s4
  %s7 = scalar_select 0, %s6, %s4
  // Predicated region
  $region2: #{mmdvae_forward.13} parent=0 // pred_check
    _
  $region3: #{mmdvae_forward.13} parent=0 // pred_check_branch
    %9 = sbr.rel (0) target = $region5
  $region4: #{mmdvae_forward.13} parent=0 // pred_region
    _
  $region5: #{mmdvae_forward.13} parent=0 // pred_fallthru
    _
  // Predicated region
  $region6: #{mmdvae_forward.13} parent=0 // pred_check
    _
  $region7: #{mmdvae_forward.13} parent=0 // pred_check_branch
    %11 = sbr.rel (0) target = $region9
  $region8: #{mmdvae_forward.13} parent=0 // pred_region
    _
  $region9: #{mmdvae_forward.13} parent=0 // pred_fallthru
    _
  // Predicated region
  $region10: #{mmdvae_forward.13} parent=0 // pred_check
    _
  $region11: #{mmdvae_forward.13} parent=0 // pred_check_branch
    %13 = sbr.rel (0) target = $region13
  $region12: #{mmdvae_forward.13} parent=0 // pred_region
    _
  $region13: #{mmdvae_forward.13} parent=0 // pred_fallthru
    _
  %v15 = vld [vmem:[%s0] sm:$0xff]
  %v16 = vld [vmem:[%s0 + $0x8] sm:$0xff]
  %v17 = vld [vmem:[%s0 + $0x10] sm:$0xff]
  %v18 = vld [vmem:[%s0 + $0x18] sm:$0xff]
  %v19 = vld [vmem:[%s0 + $0x20] sm:$0xff]
  %v20 = vld [vmem:[%s0 + $0x28] sm:$0xff]
  %v21 = vld [vmem:[%s0 + $0x30] sm:$0xff]
  %v22 = vld [vmem:[%s0 + $0x38] sm:$0xff]
  %v23 = vld [vmem:[%s0 + $0x40] sm:$0xff]
  %v24 = vld [vmem:[%s0 + $0x48] sm:$0xff]
  %v25 = vld [vmem:[%s0 + $0x50] sm:$0xff]
  %v26 = vld [vmem:[%s0 + $0x58] sm:$0xff]
  %v27 = vld [vmem:[%s0 + $0x60] sm:$0xff]
  %v28 = vld [vmem:[%s0 + $0x68] sm:$0xff]
  %v29 = vld [vmem:[%s0 + $0x70] sm:$0xff]
  %v30 = vld [vmem:[%s0 + $0x78] sm:$0xff]
  %v31 = vld [vmem:[%s1] sm:$0xf]
  %v32 = vld [vmem:[%s1 + $0x4] sm:$0xf]
  %v33 = vld [vmem:[%s1 + $0x8] sm:$0xf]
  %v34 = vld [vmem:[%s1 + $0xc] sm:$0xf]
  %v35 = vld [vmem:[%s1 + $0x10] sm:$0xf]
  %v36 = vld [vmem:[%s1 + $0x14] sm:$0xf]
  %v37 = vld [vmem:[%s1 + $0x18] sm:$0xf]
  %v38 = vld [vmem:[%s1 + $0x1c] sm:$0xf]
  %v39 = vld [vmem:[%s1 + $0x20] sm:$0xf]
  %v40 = vld [vmem:[%s1 + $0x24] sm:$0xf]
  %v41 = vld [vmem:[%s1 + $0x28] sm:$0xf]
  %v42 = vld [vmem:[%s1 + $0x2c] sm:$0xf]
  %v43 = vld [vmem:[%s1 + $0x30] sm:$0xf]
  %v44 = vld [vmem:[%s1 + $0x34] sm:$0xf]
  %v45 = vld [vmem:[%s1 + $0x38] sm:$0xf]
  %v46 = vld [vmem:[%s1 + $0x3c] sm:$0xf]
  %v47 = vld [vmem:[%s1 + $0x40] sm:$0xf]
  %v48 = vld [vmem:[%s1 + $0x44] sm:$0xf]
  %v49 = vld [vmem:[%s1 + $0x48] sm:$0xf]
  %v50 = vld [vmem:[%s1 + $0x4c] sm:$0xf]
  %v51 = vld [vmem:[%s1 + $0x50] sm:$0xf]
  %v52 = vld [vmem:[%s1 + $0x54] sm:$0xf]
  %v53 = vld [vmem:[%s1 + $0x58] sm:$0xf]
  %v54 = vld [vmem:[%s1 + $0x5c] sm:$0xf]
  %v55 = vld [vmem:[%s1 + $0x60] sm:$0xf]
  %v56 = vld [vmem:[%s1 + $0x64] sm:$0xf]
  %v57 = vld [vmem:[%s1 + $0x68] sm:$0xf]
  %v58 = vld [vmem:[%s1 + $0x6c] sm:$0xf]
  %v59 = vld [vmem:[%s1 + $0x70] sm:$0xf]
  %v60 = vld [vmem:[%s1 + $0x74] sm:$0xf]
  %v61 = vld [vmem:[%s1 + $0x78] sm:$0xf]
  %v62 = vld [vmem:[%s1 + $0x7c] sm:$0xf]
  %v63 = vld [vmem:[%s1 + $0x80] sm:$0xf]
  %v64 = vld [vmem:[%s1 + $0x84] sm:$0xf]
  %v65 = vld [vmem:[%s1 + $0x88] sm:$0xf]
  %v66 = vld [vmem:[%s1 + $0x8c] sm:$0xf]
  %v67 = vld [vmem:[%s1 + $0x90] sm:$0xf]
  %v68 = vld [vmem:[%s1 + $0x94] sm:$0xf]
  %v69 = vld [vmem:[%s1 + $0x98] sm:$0xf]
  %v70 = vld [vmem:[%s1 + $0x9c] sm:$0xf]
  %v71 = vld [vmem:[%s1 + $0xa0] sm:$0xf]
  %v72 = vld [vmem:[%s1 + $0xa4] sm:$0xf]
  %v73 = vld [vmem:[%s1 + $0xa8] sm:$0xf]
  %v74 = vld [vmem:[%s1 + $0xac] sm:$0xf]
  %v75 = vld [vmem:[%s1 + $0xb0] sm:$0xf]
  %v76 = vld [vmem:[%s1 + $0xb4] sm:$0xf]
  %v77 = vld [vmem:[%s1 + $0xb8] sm:$0xf]
  %v78 = vld [vmem:[%s1 + $0xbc] sm:$0xf]
  %v79 = vld [vmem:[%s1 + $0xc0] sm:$0xf]
  %v80 = vld [vmem:[%s1 + $0xc4] sm:$0xf]
  %v81 = vld [vmem:[%s1 + $0xc8] sm:$0xf]
  %v82 = vld [vmem:[%s1 + $0xcc] sm:$0xf]
  %v83 = vld [vmem:[%s1 + $0xd0] sm:$0xf]
  %v84 = vld [vmem:[%s1 + $0xd4] sm:$0xf]
  %v85 = vld [vmem:[%s1 + $0xd8] sm:$0xf]
  %v86 = vld [vmem:[%s1 + $0xdc] sm:$0xf]
  %v87 = vld [vmem:[%s1 + $0xe0] sm:$0xf]
  %v88 = vld [vmem:[%s1 + $0xe4] sm:$0xf]
  %v89 = vld [vmem:[%s1 + $0xe8] sm:$0xf]
  %v90 = vld [vmem:[%s1 + $0xec] sm:$0xf]
  %v91 = vld [vmem:[%s1 + $0xf0] sm:$0xf]
  %v92 = vld [vmem:[%s1 + $0xf4] sm:$0xf]
  %v93 = vld [vmem:[%s1 + $0xf8] sm:$0xf]
  %v94 = vld [vmem:[%s1 + $0xfc] sm:$0xf]
  %v95 = vld [vmem:[%s2] sm:$0xff]
  %v96 = vld [vmem:[%s2 + $0x8] sm:$0xff]
  %v97 = vld [vmem:[%s2 + $0x10] sm:$0xff]
  %v98 = vld [vmem:[%s2 + $0x18] sm:$0xff]
  %v99 = vld [vmem:[%s2 + $0x20] sm:$0xff]
  %v100 = vld [vmem:[%s2 + $0x28] sm:$0xff]
  %v101 = vld [vmem:[%s2 + $0x30] sm:$0xff]
  %v102 = vld [vmem:[%s2 + $0x38] sm:$0xff]
  %104 = vset.pattern.permute.xlu0 0
  %105 = vperm.xlu0 %104, %v95
  %v106 = vpop.permute.xlu0 %105
  %109 = vset.pattern.permute.xlu0 0
  %110 = vperm.xlu0 %109, %v96
  %v111 = vpop.permute.xlu0 %110
  %114 = vset.pattern.permute.xlu0 0
  %115 = vperm.xlu0 %114, %v97
  %v116 = vpop.permute.xlu0 %115
  %119 = vset.pattern.permute.xlu0 0
  %120 = vperm.xlu0 %119, %v98
  %v121 = vpop.permute.xlu0 %120
  %124 = vset.pattern.permute.xlu0 0
  %125 = vperm.xlu0 %124, %v99
  %v126 = vpop.permute.xlu0 %125
  %129 = vset.pattern.permute.xlu0 0
  %130 = vperm.xlu0 %129, %v100
  %v131 = vpop.permute.xlu0 %130
  %134 = vset.pattern.permute.xlu0 0
  %135 = vperm.xlu0 %134, %v101
  %v136 = vpop.permute.xlu0 %135
  %139 = vset.pattern.permute.xlu0 0
  %140 = vperm.xlu0 %139, %v102
  %v141 = vpop.permute.xlu0 %140
  %v159 = vunpack.c.l.b16 %v15
  %v160 = vunpack.c.h.b16 %v15
  %v161 = vunpack.c.l.b16 %v16
  %v162 = vunpack.c.h.b16 %v16
  %v163 = vunpack.c.l.b16 %v17
  %v164 = vunpack.c.h.b16 %v17
  %v165 = vunpack.c.l.b16 %v18
  %v166 = vunpack.c.h.b16 %v18
  %v167 = vunpack.c.l.b16 %v19
  %v168 = vunpack.c.h.b16 %v19
  %v169 = vunpack.c.l.b16 %v20
  %v170 = vunpack.c.h.b16 %v20
  %v171 = vunpack.c.l.b16 %v21
  %v172 = vunpack.c.h.b16 %v21
  %v173 = vunpack.c.l.b16 %v22
  %v174 = vunpack.c.h.b16 %v22
  %v175 = vunpack.c.l.b16 %v23
  %v176 = vunpack.c.h.b16 %v23
  %v177 = vunpack.c.l.b16 %v24
  %v178 = vunpack.c.h.b16 %v24
  %v179 = vunpack.c.l.b16 %v25
  %v180 = vunpack.c.h.b16 %v25
  %v181 = vunpack.c.l.b16 %v26
  %v182 = vunpack.c.h.b16 %v26
  %v183 = vunpack.c.l.b16 %v27
  %v184 = vunpack.c.h.b16 %v27
  %v185 = vunpack.c.l.b16 %v28
  %v186 = vunpack.c.h.b16 %v28
  %v187 = vunpack.c.l.b16 %v29
  %v188 = vunpack.c.h.b16 %v29
  %v189 = vunpack.c.l.b16 %v30
  %v190 = vunpack.c.h.b16 %v30
  %v191 = vpack.c.b16 %v163, %v159
  %v192 = vpack.c.b16 %v164, %v160
  %v193 = vpack.c.b16 %v165, %v161
  %v194 = vpack.c.b16 %v166, %v162
  %v195 = vpack.c.b16 %v171, %v167
  %v196 = vpack.c.b16 %v172, %v168
  %v197 = vpack.c.b16 %v173, %v169
  %v198 = vpack.c.b16 %v174, %v170
  %v199 = vpack.c.b16 %v179, %v175
  %v200 = vpack.c.b16 %v180, %v176
  %v201 = vpack.c.b16 %v181, %v177
  %v202 = vpack.c.b16 %v182, %v178
  %v203 = vpack.c.b16 %v187, %v183
  %v204 = vpack.c.b16 %v188, %v184
  %v205 = vpack.c.b16 %v189, %v185
  %v206 = vpack.c.b16 %v190, %v186
  %v287 = vunpack.c.l.b16 %v31
  %v288 = vunpack.c.l.b16 %v32
  %v289 = vunpack.c.l.b16 %v33
  %v290 = vunpack.c.l.b16 %v34
  %v291 = vunpack.c.l.b16 %v35
  %v292 = vunpack.c.l.b16 %v36
  %v293 = vunpack.c.l.b16 %v37
  %v294 = vunpack.c.l.b16 %v38
  %v295 = vunpack.c.l.b16 %v39
  %v296 = vunpack.c.l.b16 %v40
  %v297 = vunpack.c.l.b16 %v41
  %v298 = vunpack.c.l.b16 %v42
  %v299 = vunpack.c.l.b16 %v43
  %v300 = vunpack.c.l.b16 %v44
  %v301 = vunpack.c.l.b16 %v45
  %v302 = vunpack.c.l.b16 %v46
  %v303 = vunpack.c.l.b16 %v47
  %v304 = vunpack.c.l.b16 %v48
  %v305 = vunpack.c.l.b16 %v49
  %v306 = vunpack.c.l.b16 %v50
  %v307 = vunpack.c.l.b16 %v51
  %v308 = vunpack.c.l.b16 %v52
  %v309 = vunpack.c.l.b16 %v53
  %v310 = vunpack.c.l.b16 %v54
  %v311 = vunpack.c.l.b16 %v55
  %v312 = vunpack.c.l.b16 %v56
  %v313 = vunpack.c.l.b16 %v57
  %v314 = vunpack.c.l.b16 %v58
  %v315 = vunpack.c.l.b16 %v59
  %v316 = vunpack.c.l.b16 %v60
  %v317 = vunpack.c.l.b16 %v61
  %v318 = vunpack.c.l.b16 %v62
  %v319 = vunpack.c.l.b16 %v63
  %v320 = vunpack.c.l.b16 %v64
  %v321 = vunpack.c.l.b16 %v65
  %v322 = vunpack.c.l.b16 %v66
  %v323 = vunpack.c.l.b16 %v67
  %v324 = vunpack.c.l.b16 %v68
  %v325 = vunpack.c.l.b16 %v69
  %v326 = vunpack.c.l.b16 %v70
  %v327 = vunpack.c.l.b16 %v71
  %v328 = vunpack.c.l.b16 %v72
  %v329 = vunpack.c.l.b16 %v73
  %v330 = vunpack.c.l.b16 %v74
  %v331 = vunpack.c.l.b16 %v75
  %v332 = vunpack.c.l.b16 %v76
  %v333 = vunpack.c.l.b16 %v77
  %v334 = vunpack.c.l.b16 %v78
  %v335 = vunpack.c.l.b16 %v79
  %v336 = vunpack.c.l.b16 %v80
  %v337 = vunpack.c.l.b16 %v81
  %v338 = vunpack.c.l.b16 %v82
  %v339 = vunpack.c.l.b16 %v83
  %v340 = vunpack.c.l.b16 %v84
  %v341 = vunpack.c.l.b16 %v85
  %v342 = vunpack.c.l.b16 %v86
  %v343 = vunpack.c.l.b16 %v87
  %v344 = vunpack.c.l.b16 %v88
  %v345 = vunpack.c.l.b16 %v89
  %v346 = vunpack.c.l.b16 %v90
  %v347 = vunpack.c.l.b16 %v91
  %v348 = vunpack.c.l.b16 %v92
  %v349 = vunpack.c.l.b16 %v93
  %v350 = vunpack.c.l.b16 %v94
  %v351 = vpack.c.b16 %v288, %v287
  %v352 = vpack.c.b16 %v290, %v289
  %v353 = vpack.c.b16 %v292, %v291
  %v354 = vpack.c.b16 %v294, %v293
  %v355 = vpack.c.b16 %v296, %v295
  %v356 = vpack.c.b16 %v298, %v297
  %v357 = vpack.c.b16 %v300, %v299
  %v358 = vpack.c.b16 %v302, %v301
  %v359 = vpack.c.b16 %v304, %v303
  %v360 = vpack.c.b16 %v306, %v305
  %v361 = vpack.c.b16 %v308, %v307
  %v362 = vpack.c.b16 %v310, %v309
  %v363 = vpack.c.b16 %v312, %v311
  %v364 = vpack.c.b16 %v314, %v313
  %v365 = vpack.c.b16 %v316, %v315
  %v366 = vpack.c.b16 %v318, %v317
  %v367 = vpack.c.b16 %v320, %v319
  %v368 = vpack.c.b16 %v322, %v321
  %v369 = vpack.c.b16 %v324, %v323
  %v370 = vpack.c.b16 %v326, %v325
  %v371 = vpack.c.b16 %v328, %v327
  %v372 = vpack.c.b16 %v330, %v329
  %v373 = vpack.c.b16 %v332, %v331
  %v374 = vpack.c.b16 %v334, %v333
  %v375 = vpack.c.b16 %v336, %v335
  %v376 = vpack.c.b16 %v338, %v337
  %v377 = vpack.c.b16 %v340, %v339
  %v378 = vpack.c.b16 %v342, %v341
  %v379 = vpack.c.b16 %v344, %v343
  %v380 = vpack.c.b16 %v346, %v345
  %v381 = vpack.c.b16 %v348, %v347
  %v382 = vpack.c.b16 %v350, %v349
  %415 = vmatprep.subr.bf16.mxu0 0
  %416 = vmatpush1.bf16.msra.mxu0 %v351
  %417 = vmatprep.subr.bf16.mxu0 0
  %418 = vmatpush1.bf16.msra.mxu0 %v352
  %419 = vmatprep.subr.bf16.mxu0 0
  %420 = vmatpush1.bf16.msra.mxu0 %v353
  %421 = vmatprep.subr.bf16.mxu0 0
  %422 = vmatpush1.bf16.msra.mxu0 %v354
  %423 = vmatprep.subr.bf16.mxu0 0
  %424 = vmatpush1.bf16.msra.mxu0 %v355
  %425 = vmatprep.subr.bf16.mxu0 0
  %426 = vmatpush1.bf16.msra.mxu0 %v356
  %427 = vmatprep.subr.bf16.mxu0 0
  %428 = vmatpush1.bf16.msra.mxu0 %v357
  %429 = vmatprep.subr.bf16.mxu0 0
  %430 = vmatpush1.bf16.msra.mxu0 %v358
  %431 = vmatprep.subr.bf16.mxu0 0
  %432 = vmatpush1.bf16.msra.mxu0 %v359
  %433 = vmatprep.subr.bf16.mxu0 0
  %434 = vmatpush1.bf16.msra.mxu0 %v360
  %435 = vmatprep.subr.bf16.mxu0 0
  %436 = vmatpush1.bf16.msra.mxu0 %v361
  %437 = vmatprep.subr.bf16.mxu0 0
  %438 = vmatpush1.bf16.msra.mxu0 %v362
  %439 = vmatprep.subr.bf16.mxu0 0
  %440 = vmatpush1.bf16.msra.mxu0 %v363
  %441 = vmatprep.subr.bf16.mxu0 0
  %442 = vmatpush1.bf16.msra.mxu0 %v364
  %443 = vmatprep.subr.bf16.mxu0 0
  %444 = vmatpush1.bf16.msra.mxu0 %v365
  %445 = vmatprep.subr.bf16.mxu0 0
  %446 = vmatpush1.bf16.msra.mxu0 %v366
  %447 = vmatprep.mubr.bf16.mxu0 %v192
  %448 = vmatmul.mubr.bf16.gmra.mrb[0].mxu0 %v191
  %v449 = vpop.f32.mrb[0].mxu0
  %v450 = vadd.f32 %v106, %v449
  %v451 = vpop.f32.mrb[0].mxu0
  %v452 = vpop.f32.mrb[0].mxu0
  %v453 = vadd.f32 %v111, %v452
  %v454 = vpop.f32.mrb[0].mxu0
  %455 = vmatprep.mubr.bf16.mxu0 %v196
  %456 = vmatmul.mubr.bf16.gmra.mrb[0].mxu0 %v195
  %v457 = vpop.f32.mrb[0].mxu0
  %v458 = vadd.f32 %v116, %v457
  %v459 = vpop.f32.mrb[0].mxu0
  %v460 = vpop.f32.mrb[0].mxu0
  %v461 = vadd.f32 %v121, %v460
  %v462 = vpop.f32.mrb[0].mxu0
  %463 = vmatprep.mubr.bf16.mxu0 %v200
  %464 = vmatmul.mubr.bf16.gmra.mrb[0].mxu0 %v199
  %v465 = vpop.f32.mrb[0].mxu0
  %v466 = vadd.f32 %v126, %v465
  %v467 = vpop.f32.mrb[0].mxu0
  %v468 = vpop.f32.mrb[0].mxu0
  %v469 = vadd.f32 %v131, %v468
  %v470 = vpop.f32.mrb[0].mxu0
  %471 = vmatprep.mubr.bf16.mxu0 %v204
  %472 = vmatmul.mubr.bf16.gmra.mrb[0].mxu0 %v203
  %v473 = vpop.f32.mrb[0].mxu0
  %v474 = vadd.f32 %v136, %v473
  %v475 = vpop.f32.mrb[0].mxu0
  %v476 = vpop.f32.mrb[0].mxu0
  %v477 = vadd.f32 %v141, %v476
  %v478 = vpop.f32.mrb[0].mxu0
  %479 = vdwg.mxu0
  %480 = vmatprep.subr.bf16.mxu0 0
  %481 = vmatpush1.bf16.msra.mxu0 %v367
  %482 = vmatprep.subr.bf16.mxu0 0
  %483 = vmatpush1.bf16.msra.mxu0 %v368
  %484 = vmatprep.subr.bf16.mxu0 0
  %485 = vmatpush1.bf16.msra.mxu0 %v369
  %486 = vmatprep.subr.bf16.mxu0 0
  %487 = vmatpush1.bf16.msra.mxu0 %v370
  %488 = vmatprep.subr.bf16.mxu0 0
  %489 = vmatpush1.bf16.msra.mxu0 %v371
  %490 = vmatprep.subr.bf16.mxu0 0
  %491 = vmatpush1.bf16.msra.mxu0 %v372
  %492 = vmatprep.subr.bf16.mxu0 0
  %493 = vmatpush1.bf16.msra.mxu0 %v373
  %494 = vmatprep.subr.bf16.mxu0 0
  %495 = vmatpush1.bf16.msra.mxu0 %v374
  %496 = vmatprep.subr.bf16.mxu0 0
  %497 = vmatpush1.bf16.msra.mxu0 %v375
  %498 = vmatprep.subr.bf16.mxu0 0
  %499 = vmatpush1.bf16.msra.mxu0 %v376
  %500 = vmatprep.subr.bf16.mxu0 0
  %501 = vmatpush1.bf16.msra.mxu0 %v377
  %502 = vmatprep.subr.bf16.mxu0 0
  %503 = vmatpush1.bf16.msra.mxu0 %v378
  %504 = vmatprep.subr.bf16.mxu0 0
  %505 = vmatpush1.bf16.msra.mxu0 %v379
  %506 = vmatprep.subr.bf16.mxu0 0
  %507 = vmatpush1.bf16.msra.mxu0 %v380
  %508 = vmatprep.subr.bf16.mxu0 0
  %509 = vmatpush1.bf16.msra.mxu0 %v381
  %510 = vmatprep.subr.bf16.mxu0 0
  %511 = vmatpush1.bf16.msra.mxu0 %v382
  %512 = vmatprep.mubr.bf16.mxu0 %v194
  %513 = vmatmul.mubr.bf16.gmra.mrb[0].mxu0 %v193
  %v514 = vpop.f32.mrb[0].mxu0
  %v515 = vadd.f32 %v450, %v514
  %v516 = vpop.f32.mrb[0].mxu0
  %v517 = vpop.f32.mrb[0].mxu0
  %v518 = vadd.f32 %v453, %v517
  %v519 = vpop.f32.mrb[0].mxu0
  %520 = vmatprep.mubr.bf16.mxu0 %v198
  %521 = vmatmul.mubr.bf16.gmra.mrb[0].mxu0 %v197
  %v522 = vpop.f32.mrb[0].mxu0
  %v523 = vadd.f32 %v458, %v522
  %v524 = vpop.f32.mrb[0].mxu0
  %v525 = vpop.f32.mrb[0].mxu0
  %v526 = vadd.f32 %v461, %v525
  %v527 = vpop.f32.mrb[0].mxu0
  %528 = vmatprep.mubr.bf16.mxu0 %v202
  %529 = vmatmul.mubr.bf16.gmra.mrb[0].mxu0 %v201
  %v530 = vpop.f32.mrb[0].mxu0
  %v531 = vadd.f32 %v466, %v530
  %v532 = vpop.f32.mrb[0].mxu0
  %v533 = vpop.f32.mrb[0].mxu0
  %v534 = vadd.f32 %v469, %v533
  %v535 = vpop.f32.mrb[0].mxu0
  %536 = vmatprep.mubr.bf16.mxu0 %v206
  %537 = vmatmul.mubr.bf16.gmra.mrb[0].mxu0 %v205
  %v538 = vpop.f32.mrb[0].mxu0
  %v539 = vadd.f32 %v474, %v538
  %v540 = vpop.f32.mrb[0].mxu0
  %v541 = vpop.f32.mrb[0].mxu0
  %v542 = vadd.f32 %v477, %v541
  %v543 = vpop.f32.mrb[0].mxu0
  %544 = vdwg.mxu0
  %v545 = vmax.f32 %v515, 0.0
  %v546 = vmax.f32 %v518, 0.0
  %v547 = vmax.f32 %v523, 0.0
  %v548 = vmax.f32 %v526, 0.0
  %v549 = vmax.f32 %v531, 0.0
  %v550 = vmax.f32 %v534, 0.0
  %v551 = vmax.f32 %v539, 0.0
  %v552 = vmax.f32 %v542, 0.0
  %v553 = vpack.c.bf16 %v546, %v545
  %v554 = vpack.c.bf16 %v548, %v547
  %v555 = vpack.c.bf16 %v550, %v549
  %v556 = vpack.c.bf16 %v552, %v551
  %v561 = vunpack.c.l.b16 %v553
  %v562 = vunpack.c.h.b16 %v553
  %v563 = vunpack.c.l.b16 %v554
  %v564 = vunpack.c.h.b16 %v554
  %v565 = vunpack.c.l.b16 %v555
  %v566 = vunpack.c.h.b16 %v555
  %v567 = vunpack.c.l.b16 %v556
  %v568 = vunpack.c.h.b16 %v556
  %v569 = vpack.c.b16 %v561, %v561
  %v570 = vpack.c.b16 %v562, %v562
  %v571 = vpack.c.b16 %v563, %v563
  %v572 = vpack.c.b16 %v564, %v564
  %v573 = vpack.c.b16 %v565, %v565
  %v574 = vpack.c.b16 %v566, %v566
  %v575 = vpack.c.b16 %v567, %v567
  %v576 = vpack.c.b16 %v568, %v568
  %585 = vst [vmem:[%s3] sm:$0xf] %v569
  %586 = vst [vmem:[%s3 + $0x4] sm:$0xf] %v570
  %587 = vst [vmem:[%s3 + $0x8] sm:$0xf] %v571
  %588 = vst [vmem:[%s3 + $0xc] sm:$0xf] %v572
  %589 = vst [vmem:[%s3 + $0x10] sm:$0xf] %v573
  %590 = vst [vmem:[%s3 + $0x14] sm:$0xf] %v574
  %591 = vst [vmem:[%s3 + $0x18] sm:$0xf] %v575
  %592 = vst [vmem:[%s3 + $0x1c] sm:$0xf] %v576
  // Predicated region
  $region14: #{mmdvae_forward.13} parent=0 // pred_check
    _
  $region15: #{mmdvae_forward.13} parent=0 // pred_check_branch
    %594 = sbr.rel (0) target = $region17
  $region16: #{mmdvae_forward.13} parent=0 // pred_region
    _
  $region17: #{mmdvae_forward.13} parent=0 // pred_fallthru
    _
  // Predicated region
  $region18: #{mmdvae_forward.13} parent=0 // pred_check
    _
  $region19: #{mmdvae_forward.13} parent=0 // pred_check_branch
    %596 = sbr.rel (0) target = $region21
  $region20: #{mmdvae_forward.13} parent=0 // pred_region
    _
  $region21: #{mmdvae_forward.13} parent=0 // pred_fallthru
    _

// kernel: mmdvae_forward.15
$region0: #{mmdvae_forward.15}
  #allocation0 [shape = 'u32[]', space=smem, size = 0x4, offset = 0x4, fixed_abs, tag = 'smem constant byte address 0x4 - core index']
  #allocation1 [shape = 'u32[144,128]{1,0:T(1,128)}', space=vmem, size = 0x12000, scoped, tag = 'internal scratch']
  %s0 = inlined_call_operand.vmem [shape: bf16[8,32], index: 0, kind: input, shape index: {}]
  %s1 = inlined_call_operand.vmem [shape: bf16[32,1024], index: 1, kind: input, shape index: {}]
  %s2 = inlined_call_operand.vmem [shape: f32[1,1024], index: 2, kind: input, shape index: {}]
  %s3 = inlined_call_operand.vmem [shape: bf16[8,1024], index: 3, kind: output, shape index: {}]
  %s4 = sld [smem:[#allocation0]]
  $region68: #{mmdvae_forward.15} parent=0
    _
  %s6 = ssub.s32 1, %s4
  %s7 = scalar_select 0, %s6, %s4
  $region1: #{mmdvae_forward.15} parent=0
    #allocation2 [shape = 'u8[65536]{0}', space=vmem, size = 0x10000, scoped, tag = 'input window, operand 1']
    loop: start=0, step=1, limit=4
    $region2: #{mmdvae_forward.15} parent=1 // loop_pre_header
      _
    $region3: #{mmdvae_forward.15} parent=1 // loop_header
      %s9 = sphi 0, %s13
      %p10 = scmp.ge.s32.totalorder %s9, 4
      %s17 = sphi 0, %s17
      %s19 = sphi 0, %s17
      %s20 = sphi 0, %s19
      %s34 = sphi 0, %s20
      %s40 = sphi 0, %s42
      %s43 = sphi 0, %s40
      %s44 = sphi 0, %s43
      %s60 = sphi 0, %s44
      %s66 = sphi 0, %s68
      %s69 = sphi 0, %s66
      %s70 = sphi 0, %s69
      %s86 = sphi 0, %s70
      %s92 = sphi 0, %s94
      %s95 = sphi 0, %s92
      %s96 = sphi 0, %s95
      %s112 = sphi 0, %s96
    $region4: #{mmdvae_forward.15} parent=1 // loop_header_branch
      %12 = sbr.rel (%p10) target = $region8
    $region5: #{mmdvae_forward.15} parent=1 // loop_body
      %s14 = ssub.s32 %s9, 1
      %s15 = ssub.s32 %s9, 2
      %s16 = sadd.s32 %s9, 1
      %s18 = sadd.s32 %s17, 1
      %p21 = scmp.eq.s32.totalorder %s9, 1
      %p22 = scmp.ne.s32.totalorder %s17, %s19
      %p23 = scmp.eq.s32.totalorder %s9, 0
      %p24 = por %p22, %p23
      %p25 = scmp.ne.s32.totalorder %s17, %s19
      %p26 = scmp.eq.s32.totalorder %s14, 1
      %p27 = por %p25, %p26
      %p28 = scmp.ne.s32.totalorder %s19, %s20
      %p29 = scmp.eq.s32.totalorder %s14, 0
      %p30 = por %p28, %p29
      %p31 = scmp.ne.s32.totalorder %s19, %s20
      %p32 = scmp.eq.s32.totalorder %s15, 1
      %p33 = por %p31, %p32
      %p35 = scmp.ne.s32.totalorder %s20, %s34
      %p36 = scmp.eq.s32.totalorder %s15, 0
      %p37 = por %p35, %p36
      %s38 = ssub.s32 %s9, %s16
      %p39 = scmp.eq.s32.totalorder %s38, 0
      %s41 = sadd.s32 %s40, 1
      %s42 = scalar_select %p39, %s40, %s41
      %p45 = pneg %p39
      %p46 = scmp.eq.s32.totalorder %s9, 1
      %p47 = por %p45, %p46
      %p48 = scmp.ne.s32.totalorder %s40, %s43
      %p49 = scmp.eq.s32.totalorder %s9, 0
      %p50 = por %p48, %p49
      %p51 = scmp.ne.s32.totalorder %s40, %s43
      %p52 = scmp.eq.s32.totalorder %s14, 1
      %p53 = por %p51, %p52
      %p54 = scmp.ne.s32.totalorder %s43, %s44
      %p55 = scmp.eq.s32.totalorder %s14, 0
      %p56 = por %p54, %p55
      %p57 = scmp.ne.s32.totalorder %s43, %s44
      %p58 = scmp.eq.s32.totalorder %s15, 1
      %p59 = por %p57, %p58
      %p61 = scmp.ne.s32.totalorder %s44, %s60
      %p62 = scmp.eq.s32.totalorder %s15, 0
      %p63 = por %p61, %p62
      %s64 = ssub.s32 %s9, %s16
      %p65 = scmp.eq.s32.totalorder %s64, 0
      %s67 = sadd.s32 %s66, 1
      %s68 = scalar_select %p65, %s66, %s67
      %p71 = pneg %p65
      %p72 = scmp.eq.s32.totalorder %s9, 1
      %p73 = por %p71, %p72
      %p74 = scmp.ne.s32.totalorder %s66, %s69
      %p75 = scmp.eq.s32.totalorder %s9, 0
      %p76 = por %p74, %p75
      %p77 = scmp.ne.s32.totalorder %s66, %s69
      %p78 = scmp.eq.s32.totalorder %s14, 1
      %p79 = por %p77, %p78
      %p80 = scmp.ne.s32.totalorder %s69, %s70
      %p81 = scmp.eq.s32.totalorder %s14, 0
      %p82 = por %p80, %p81
      %p83 = scmp.ne.s32.totalorder %s69, %s70
      %p84 = scmp.eq.s32.totalorder %s15, 1
      %p85 = por %p83, %p84
      %p87 = scmp.ne.s32.totalorder %s70, %s86
      %p88 = scmp.eq.s32.totalorder %s15, 0
      %p89 = por %p87, %p88
      %s90 = ssub.s32 %s9, %s16
      %p91 = scmp.eq.s32.totalorder %s90, 0
      %s93 = sadd.s32 %s92, 1
      %s94 = scalar_select %p91, %s92, %s93
      %p97 = pneg %p91
      %p98 = scmp.eq.s32.totalorder %s9, 1
      %p99 = por %p97, %p98
      %p100 = scmp.ne.s32.totalorder %s92, %s95
      %p101 = scmp.eq.s32.totalorder %s9, 0
      %p102 = por %p100, %p101
      %p103 = scmp.ne.s32.totalorder %s92, %s95
      %p104 = scmp.eq.s32.totalorder %s14, 1
      %p105 = por %p103, %p104
      %p106 = scmp.ne.s32.totalorder %s95, %s96
      %p107 = scmp.eq.s32.totalorder %s14, 0
      %p108 = por %p106, %p107
      %p109 = scmp.ne.s32.totalorder %s95, %s96
      %p110 = scmp.eq.s32.totalorder %s15, 1
      %p111 = por %p109, %p110
      %p113 = scmp.ne.s32.totalorder %s96, %s112
      %p114 = scmp.eq.s32.totalorder %s15, 0
      %p115 = por %p113, %p114
      %p116 = scmp.le.s32.totalorder 1, %s9
      %p117 = scmp.lt.s32.totalorder %s9, 3
      %p118 = pnand %p116, %p117
      %p119 = pneg %p118
      // Predicated region
      $region9: #{mmdvae_forward.15} parent=5 // pred_check
        _
      $region10: #{mmdvae_forward.15} parent=5 // pred_check_branch
        %121 = sbr.rel (%p118) target = $region12
      $region11: #{mmdvae_forward.15} parent=5 // pred_region
        %s122 = ssub.s32 %s9, 1
        // Predicated region
        $region13: #{mmdvae_forward.15} parent=11 // pred_check
          %p123 = pneg %p30
        $region14: #{mmdvae_forward.15} parent=11 // pred_check_branch
          %125 = sbr.rel (%p123) target = $region16
        $region15: #{mmdvae_forward.15} parent=11 // pred_region
          _
        $region16: #{mmdvae_forward.15} parent=11 // pred_fallthru
          _
      $region12: #{mmdvae_forward.15} parent=5 // pred_fallthru
        _
      %p126 = scmp.lt.s32.totalorder %s9, 2
      // Predicated region
      $region17: #{mmdvae_forward.15} parent=5 // pred_check
        %p127 = pneg %p126
      $region18: #{mmdvae_forward.15} parent=5 // pred_check_branch
        %129 = sbr.rel (%p127) target = $region20
      $region19: #{mmdvae_forward.15} parent=5 // pred_region
        // Predicated region
        $region21: #{mmdvae_forward.15} parent=19 // pred_check
          %p130 = pneg %p50
        $region22: #{mmdvae_forward.15} parent=19 // pred_check_branch
          %132 = sbr.rel (%p130) target = $region24
        $region23: #{mmdvae_forward.15} parent=19 // pred_region
          %s133 = sand.u32 %s40, 1
          %s134 = sand.u32 %s40, 1
          %s135 = smul.addr %s134, 64
          %s136 = scalar_lea.vmem [#allocation2], %s135
          %s137 = smul.u32 4, %s9
          %s138 = smul.addr %s137, 4
          %s139 = scalar_lea.vmem %s1, %s138
          // Predicated region
          $region25: #{mmdvae_forward.15} parent=23 // pred_check
            _
          $region26: #{mmdvae_forward.15} parent=23 // pred_check_branch
            %141 = sbr.rel (0) target = $region28
          $region27: #{mmdvae_forward.15} parent=23 // pred_region
            // Predicated region
            $region29: #{mmdvae_forward.15} parent=27 // pred_check
              _
            $region30: #{mmdvae_forward.15} parent=27 // pred_check_branch
              %143 = sbr.rel (0) target = $region32
            $region31: #{mmdvae_forward.15} parent=27 // pred_region
              loop: start=0, step=1, limit=1
              $region33: #{mmdvae_forward.15} parent=31 // loop_pre_header
                _
              $region34: #{mmdvae_forward.15} parent=31 // loop_header
                %s145 = sphi 0, %s149
                %p146 = scmp.ge.s32.totalorder %s145, 1
                %s150 = sphi %s139, %s139
                %s151 = sphi %s136, %s136
              $region35: #{mmdvae_forward.15} parent=31 // loop_header_branch
                %148 = sbr.rel (%p146) target = $region39
              $region36: #{mmdvae_forward.15} parent=31 // loop_body
                %v152 = vld [vmem:[%s150] sm:$0xff]
                %153 = vst [vmem:[%s151] sm:$0xff] %v152
                %v154 = vld [vmem:[%s150 + $0x8] sm:$0xff]
                %155 = vst [vmem:[%s151 + $0x8] sm:$0xff] %v154
                %v156 = vld [vmem:[%s150 + $0x20] sm:$0xff]
                %157 = vst [vmem:[%s151 + $0x10] sm:$0xff] %v156
                %v158 = vld [vmem:[%s150 + $0x28] sm:$0xff]
                %159 = vst [vmem:[%s151 + $0x18] sm:$0xff] %v158
                %v160 = vld [vmem:[%s150 + $0x40] sm:$0xff]
                %161 = vst [vmem:[%s151 + $0x20] sm:$0xff] %v160
                %v162 = vld [vmem:[%s150 + $0x48] sm:$0xff]
                %163 = vst [vmem:[%s151 + $0x28] sm:$0xff] %v162
                %v164 = vld [vmem:[%s150 + $0x60] sm:$0xff]
                %165 = vst [vmem:[%s151 + $0x30] sm:$0xff] %v164
                %v166 = vld [vmem:[%s150 + $0x68] sm:$0xff]
                %167 = vst [vmem:[%s151 + $0x38] sm:$0xff] %v166
              $region37: #{mmdvae_forward.15} parent=31 // loop_footer
                %s149 = sadd.s32 1, %s145
              $region38: #{mmdvae_forward.15} parent=31 // loop_footer_branch
                %144 = sbr.rel target = $region34
              $region39: #{mmdvae_forward.15} parent=31 // loop_exit
                _
            $region32: #{mmdvae_forward.15} parent=27 // pred_fallthru
              _
            // Predicated region
            $region40: #{mmdvae_forward.15} parent=27 // pred_check
              _
            $region41: #{mmdvae_forward.15} parent=27 // pred_check_branch
              %169 = sbr.rel target = $region43
            $region42: #{mmdvae_forward.15} parent=27 // pred_region
              _
            $region43: #{mmdvae_forward.15} parent=27 // pred_fallthru
              _
          $region28: #{mmdvae_forward.15} parent=23 // pred_fallthru
            _
          %170 = vnop
        $region24: #{mmdvae_forward.15} parent=19 // pred_fallthru
          _
        // Predicated region
        $region44: #{mmdvae_forward.15} parent=19 // pred_check
          %p171 = pneg %p76
        $region45: #{mmdvae_forward.15} parent=19 // pred_check_branch
          %173 = sbr.rel (%p171) target = $region47
        $region46: #{mmdvae_forward.15} parent=19 // pred_region
          %s174 = smul.u32 4, %s9
          %p175 = scmp.lt.s32.totalorder %s174, 7
          %s176 = scalar_select %p175, %s174, 7
          %s177 = scalar_lea.vmem %s2, %s176
          %s178 = smul.u32 4, %s9
        $region47: #{mmdvae_forward.15} parent=19 // pred_fallthru
          _
      $region20: #{mmdvae_forward.15} parent=5 // pred_fallthru
        _
      %p179 = scmp.le.s32.totalorder 1, %s9
      %p180 = scmp.lt.s32.totalorder %s9, 3
      %p181 = pnand %p179, %p180
      %p182 = pneg %p181
      // Predicated region
      $region48: #{mmdvae_forward.15} parent=5 // pred_check
        _
      $region49: #{mmdvae_forward.15} parent=5 // pred_check_branch
        %184 = sbr.rel (%p181) target = $region51
      $region50: #{mmdvae_forward.15} parent=5 // pred_region
        %s185 = ssub.s32 %s9, 1
        %s186 = sand.u32 %s43, 1
        %s187 = sand.u32 %s43, 1
        %s188 = smul.addr %s187, 64
        %s189 = scalar_lea.vmem [#allocation2], %s188
        // Predicated region
        $region52: #{mmdvae_forward.15} parent=50 // pred_check
          %p190 = pneg %p56
        $region53: #{mmdvae_forward.15} parent=50 // pred_check_branch
          %192 = sbr.rel (%p190) target = $region55
        $region54: #{mmdvae_forward.15} parent=50 // pred_region
          _
        $region55: #{mmdvae_forward.15} parent=50 // pred_fallthru
          _
        %p193 = pneg %p30
        %p194 = pneg %p27
        %s195 = sand.u32 %s43, 1
        %s196 = sand.u32 %s43, 1
        %s197 = smul.addr %s196, 64
        %s198 = scalar_lea.vmem [#allocation2], %s197
        %p199 = pneg %p56
        %p200 = pneg %p53
        %s201 = smul.u32 4, %s14
        %p202 = scmp.lt.s32.totalorder %s201, 7
        %s203 = scalar_select %p202, %s201, 7
        %s204 = scalar_lea.vmem %s2, %s203
        %p205 = pneg %p82
        %p206 = pneg %p79
        %p207 = pneg %p108
        %p208 = pneg %p105
        %s209 = smul.u32 4, %s14
        %p210 = scmp.lt.s32.totalorder %s209, 7
        %s211 = scalar_select %p210, %s209, 7
        %s212 = smul.addr %s211, 4
        %s213 = scalar_lea.vmem %s3, %s212
        %s214 = smul.u32 4, %s14
        %s215 = smul.u32 4, %s14
        %p216 = scmp.lt.s32.totalorder %s215, 7
        %s217 = scalar_select %p216, %s215, 7
        %s218 = scalar_lea.vmem %s2, %s217
        %s219 = smul.u32 4, %s14
        %s220 = smul.u32 4, %s14
        %p221 = scmp.lt.s32.totalorder %s220, 7
        %s222 = scalar_select %p221, %s220, 7
        %s223 = smul.addr %s222, 4
        %s224 = scalar_lea.vmem %s3, %s223
        %s225 = smul.u32 4, %s14
        %v227 = vld [vmem:[%s0] sm:$0xf]
        %v228 = vld [vmem:[%s189] sm:$0xff]
        %v229 = vld [vmem:[%s189 + $0x8] sm:$0xff]
        %v230 = vld [vmem:[%s189 + $0x10] sm:$0xff]
        %v231 = vld [vmem:[%s189 + $0x18] sm:$0xff]
        %v232 = vld [vmem:[%s189 + $0x20] sm:$0xff]
        %v233 = vld [vmem:[%s189 + $0x28] sm:$0xff]
        %v234 = vld [vmem:[%s189 + $0x30] sm:$0xff]
        %v235 = vld [vmem:[%s189 + $0x38] sm:$0xff]
        %v236 = vld [vmem:[%s218] sm:$0xf]
        %v238 = vlaneseq
        %v239 = vshrl.u32 %v238, 7
        %v240 = vsub.s32 0, %v239
        %v241 = vrot.slane %v236, %v240
        %v242 = vlaneseq
        %v243 = vshrl.u32 %v242, 7
        %v244 = vsub.s32 1, %v243
        %v245 = vrot.slane %v236, %v244
        %v246 = vlaneseq
        %v247 = vshrl.u32 %v246, 7
        %v248 = vsub.s32 2, %v247
        %v249 = vrot.slane %v236, %v248
        %v250 = vlaneseq
        %v251 = vshrl.u32 %v250, 7
        %v252 = vsub.s32 3, %v251
        %v253 = vrot.slane %v236, %v252
        %v266 = vunpack.c.l.b16 %v228
        %v267 = vunpack.c.h.b16 %v228
        %v268 = vunpack.c.l.b16 %v229
        %v269 = vunpack.c.h.b16 %v229
        %v270 = vunpack.c.l.b16 %v230
        %v271 = vunpack.c.h.b16 %v230
        %v272 = vunpack.c.l.b16 %v231
        %v273 = vunpack.c.h.b16 %v231
        %v274 = vunpack.c.l.b16 %v232
        %v275 = vunpack.c.h.b16 %v232
        %v276 = vunpack.c.l.b16 %v233
        %v277 = vunpack.c.h.b16 %v233
        %v278 = vunpack.c.l.b16 %v234
        %v279 = vunpack.c.h.b16 %v234
        %v280 = vunpack.c.l.b16 %v235
        %v281 = vunpack.c.h.b16 %v235
        %v282 = vpack.c.b16 %v270, %v266
        %v283 = vpack.c.b16 %v271, %v267
        %v284 = vpack.c.b16 %v272, %v268
        %v285 = vpack.c.b16 %v273, %v269
        %v286 = vpack.c.b16 %v278, %v274
        %v287 = vpack.c.b16 %v279, %v275
        %v288 = vpack.c.b16 %v280, %v276
        %v289 = vpack.c.b16 %v281, %v277
        %vm298 = vcmask 261120
        %v300 = vsel %vm298, %v227, 0
        %302 = vmatprep.subr.bf16.mxu0 %v283
        %303 = vmatpush1.bf16.msra.mxu0 %v282
        %304 = vmatprep.subr.bf16.mxu0 %v287
        %305 = vmatpush1.bf16.msra.mxu0 %v286
        %306 = vmatprep.subr.bf16.mxu0 0
        %307 = vmatpush1.bf16.msra.mxu0 0
        %308 = vmatprep.subr.bf16.mxu0 0
        %309 = vmatpush1.bf16.msra.mxu0 0
        %310 = vmatprep.subr.bf16.mxu0 0
        %311 = vmatpush1.bf16.msra.mxu0 0
        %312 = vmatprep.subr.bf16.mxu0 0
        %313 = vmatpush1.bf16.msra.mxu0 0
        %314 = vmatprep.subr.bf16.mxu0 0
        %315 = vmatpush1.bf16.msra.mxu0 0
        %316 = vmatprep.subr.bf16.mxu0 0
        %317 = vmatpush1.bf16.msra.mxu0 0
        %318 = vmatprep.subr.bf16.mxu0 0
        %319 = vmatpush1.bf16.msra.mxu0 0
        %320 = vmatprep.subr.bf16.mxu0 0
        %321 = vmatpush1.bf16.msra.mxu0 0
        %322 = vmatprep.subr.bf16.mxu0 0
        %323 = vmatpush1.bf16.msra.mxu0 0
        %324 = vmatprep.subr.bf16.mxu0 0
        %325 = vmatpush1.bf16.msra.mxu0 0
        %326 = vmatprep.subr.bf16.mxu0 0
        %327 = vmatpush1.bf16.msra.mxu0 0
        %328 = vmatprep.subr.bf16.mxu0 0
        %329 = vmatpush1.bf16.msra.mxu0 0
        %330 = vmatprep.subr.bf16.mxu0 0
        %331 = vmatpush1.bf16.msra.mxu0 0
        %332 = vmatprep.subr.bf16.mxu0 0
        %333 = vmatpush1.bf16.msra.mxu0 0
        %334 = vmatprep.mubr.bf16.mxu0 0
        %335 = vmatmul.mubr.bf16.gmra.mrb[0].mxu0 %v300
        %v336 = vpop.f32.mrb[0].mxu0
        %v337 = vadd.f32 %v241, %v336
        %v338 = vpop.f32.mrb[0].mxu0
        %v339 = vadd.f32 %v245, %v338
        %v340 = vpop.f32.mrb[0].mxu0
        %v341 = vpop.f32.mrb[0].mxu0
        %342 = vdwg.mxu0
        %343 = vmatprep.subr.bf16.mxu0 %v285
        %344 = vmatpush1.bf16.msra.mxu0 %v284
        %345 = vmatprep.subr.bf16.mxu0 %v289
        %346 = vmatpush1.bf16.msra.mxu0 %v288
        %347 = vmatprep.subr.bf16.mxu0 0
        %348 = vmatpush1.bf16.msra.mxu0 0
        %349 = vmatprep.subr.bf16.mxu0 0
        %350 = vmatpush1.bf16.msra.mxu0 0
        %351 = vmatprep.subr.bf16.mxu0 0
        %352 = vmatpush1.bf16.msra.mxu0 0
        %353 = vmatprep.subr.bf16.mxu0 0
        %354 = vmatpush1.bf16.msra.mxu0 0
        %355 = vmatprep.subr.bf16.mxu0 0
        %356 = vmatpush1.bf16.msra.mxu0 0
        %357 = vmatprep.subr.bf16.mxu0 0
        %358 = vmatpush1.bf16.msra.mxu0 0
        %359 = vmatprep.subr.bf16.mxu0 0
        %360 = vmatpush1.bf16.msra.mxu0 0
        %361 = vmatprep.subr.bf16.mxu0 0
        %362 = vmatpush1.bf16.msra.mxu0 0
        %363 = vmatprep.subr.bf16.mxu0 0
        %364 = vmatpush1.bf16.msra.mxu0 0
        %365 = vmatprep.subr.bf16.mxu0 0
        %366 = vmatpush1.bf16.msra.mxu0 0
        %367 = vmatprep.subr.bf16.mxu0 0
        %368 = vmatpush1.bf16.msra.mxu0 0
        %369 = vmatprep.subr.bf16.mxu0 0
        %370 = vmatpush1.bf16.msra.mxu0 0
        %371 = vmatprep.subr.bf16.mxu0 0
        %372 = vmatpush1.bf16.msra.mxu0 0
        %373 = vmatprep.subr.bf16.mxu0 0
        %374 = vmatpush1.bf16.msra.mxu0 0
        %375 = vmatprep.mubr.bf16.mxu0 0
        %376 = vmatmul.mubr.bf16.gmra.mrb[0].mxu0 %v300
        %v377 = vpop.f32.mrb[0].mxu0
        %v378 = vadd.f32 %v249, %v377
        %v379 = vpop.f32.mrb[0].mxu0
        %v380 = vadd.f32 %v253, %v379
        %v381 = vpop.f32.mrb[0].mxu0
        %v382 = vpop.f32.mrb[0].mxu0
        %383 = vdwg.mxu0
        %v384 = vmax.f32 %v337, 0.0
        %v385 = vmax.f32 %v339, 0.0
        %v386 = vmax.f32 %v378, 0.0
        %v387 = vmax.f32 %v380, 0.0
        %v388 = vpack.c.bf16 %v384, %v384
        %v389 = vpack.c.bf16 %v385, %v385
        %v390 = vpack.c.bf16 %v386, %v386
        %v391 = vpack.c.bf16 %v387, %v387
        %v396 = vunpack.c.l.b16 %v388
        %v397 = vunpack.c.l.b16 %v389
        %v398 = vunpack.c.l.b16 %v390
        %v399 = vunpack.c.l.b16 %v391
        %v400 = vpack.c.b16 %v397, %v396
        %v401 = vpack.c.b16 %v399, %v398
        %404 = vst [vmem:[%s224] sm:$0xff] %v400
        %405 = vst [vmem:[%s224 + $0x8] sm:$0xff] %v401
        %s406 = smul.u32 4, %s14
        %p407 = scmp.lt.s32.totalorder %s406, 7
        %s408 = scalar_select %p407, %s406, 7
        %s409 = smul.addr %s408, 4
        %s410 = scalar_lea.vmem %s3, %s409
        // Predicated region
        $region56: #{mmdvae_forward.15} parent=50 // pred_check
          %p411 = pneg %p105
        $region57: #{mmdvae_forward.15} parent=50 // pred_check_branch
          %413 = sbr.rel (%p411) target = $region59
        $region58: #{mmdvae_forward.15} parent=50 // pred_region
          %s414 = smul.u32 4, %s14
        $region59: #{mmdvae_forward.15} parent=50 // pred_fallthru
          _
      $region51: #{mmdvae_forward.15} parent=5 // pred_fallthru
        _
      %p415 = scmp.le.s32.totalorder 2, %s9
      // Predicated region
      $region60: #{mmdvae_forward.15} parent=5 // pred_check
        %p416 = pneg %p415
      $region61: #{mmdvae_forward.15} parent=5 // pred_check_branch
        %418 = sbr.rel (%p416) target = $region63
      $region62: #{mmdvae_forward.15} parent=5 // pred_region
        %s419 = ssub.s32 %s9, 2
        // Predicated region
        $region64: #{mmdvae_forward.15} parent=62 // pred_check
          %p420 = pneg %p111
        $region65: #{mmdvae_forward.15} parent=62 // pred_check_branch
          %422 = sbr.rel (%p420) target = $region67
        $region66: #{mmdvae_forward.15} parent=62 // pred_region
          %s423 = smul.u32 4, %s15
          %p424 = scmp.lt.s32.totalorder %s423, 7
          %s425 = scalar_select %p424, %s423, 7
          %s426 = smul.addr %s425, 4
          %s427 = scalar_lea.vmem %s3, %s426
        $region67: #{mmdvae_forward.15} parent=62 // pred_fallthru
          _
      $region63: #{mmdvae_forward.15} parent=5 // pred_fallthru
        _
    $region6: #{mmdvae_forward.15} parent=1 // loop_footer
      %s13 = sadd.s32 1, %s9
    $region7: #{mmdvae_forward.15} parent=1 // loop_footer_branch
      %8 = sbr.rel target = $region3
    $region8: #{mmdvae_forward.15} parent=1 // loop_exit
      _

// kernel: mmdvae_forward.14
$region0: #{mmdvae_forward.14}
  #allocation0 [shape = 'u32[]', space=smem, size = 0x4, offset = 0x4, fixed_abs, tag = 'smem constant byte address 0x4 - core index']
  #allocation1 [shape = 'u32[144,128]{1,0:T(1,128)}', space=vmem, size = 0x12000, scoped, tag = 'internal scratch']
  %s0 = inlined_call_operand.vmem [shape: bf16[8,1024], index: 0, kind: input, shape index: {}]
  %s1 = inlined_call_operand.vmem [shape: bf16[1024,128], index: 1, kind: input, shape index: {}]
  %s2 = inlined_call_operand.vmem [shape: f32[1,128], index: 2, kind: input, shape index: {}]
  %s3 = inlined_call_operand.vmem [shape: f32[8,128], index: 3, kind: output, shape index: {}]
  %s4 = sld [smem:[#allocation0]]
  $region22: #{mmdvae_forward.14} parent=0
    _
  %s6 = ssub.s32 1, %s4
  %s7 = scalar_select 0, %s6, %s4
  // Predicated region
  $region2: #{mmdvae_forward.14} parent=0 // pred_check
    _
  $region3: #{mmdvae_forward.14} parent=0 // pred_check_branch
    %9 = sbr.rel (0) target = $region5
  $region4: #{mmdvae_forward.14} parent=0 // pred_region
    _
  $region5: #{mmdvae_forward.14} parent=0 // pred_fallthru
    _
  // Predicated region
  $region6: #{mmdvae_forward.14} parent=0 // pred_check
    _
  $region7: #{mmdvae_forward.14} parent=0 // pred_check_branch
    %11 = sbr.rel (0) target = $region9
  $region8: #{mmdvae_forward.14} parent=0 // pred_region
    _
  $region9: #{mmdvae_forward.14} parent=0 // pred_fallthru
    _
  // Predicated region
  $region10: #{mmdvae_forward.14} parent=0 // pred_check
    _
  $region11: #{mmdvae_forward.14} parent=0 // pred_check_branch
    %13 = sbr.rel (0) target = $region13
  $region12: #{mmdvae_forward.14} parent=0 // pred_region
    _
  $region13: #{mmdvae_forward.14} parent=0 // pred_fallthru
    _
  %v15 = vld [vmem:[%s0] sm:$0xff]
  %v16 = vld [vmem:[%s0 + $0x8] sm:$0xff]
  %v17 = vld [vmem:[%s0 + $0x10] sm:$0xff]
  %v18 = vld [vmem:[%s0 + $0x18] sm:$0xff]
  %v19 = vld [vmem:[%s1] sm:$0xf]
  %v20 = vld [vmem:[%s1 + $0x4] sm:$0xf]
  %v21 = vld [vmem:[%s1 + $0x8] sm:$0xf]
  %v22 = vld [vmem:[%s1 + $0xc] sm:$0xf]
  %v23 = vld [vmem:[%s1 + $0x10] sm:$0xf]
  %v24 = vld [vmem:[%s1 + $0x14] sm:$0xf]
  %v25 = vld [vmem:[%s1 + $0x18] sm:$0xf]
  %v26 = vld [vmem:[%s1 + $0x1c] sm:$0xf]
  %v27 = vld [vmem:[%s1 + $0x20] sm:$0xf]
  %v28 = vld [vmem:[%s1 + $0x24] sm:$0xf]
  %v29 = vld [vmem:[%s1 + $0x28] sm:$0xf]
  %v30 = vld [vmem:[%s1 + $0x2c] sm:$0xf]
  %v31 = vld [vmem:[%s1 + $0x30] sm:$0xf]
  %v32 = vld [vmem:[%s1 + $0x34] sm:$0xf]
  %v33 = vld [vmem:[%s1 + $0x38] sm:$0xf]
  %v34 = vld [vmem:[%s1 + $0x3c] sm:$0xf]
  %v35 = vld [vmem:[%s1 + $0x40] sm:$0xf]
  %v36 = vld [vmem:[%s1 + $0x44] sm:$0xf]
  %v37 = vld [vmem:[%s1 + $0x48] sm:$0xf]
  %v38 = vld [vmem:[%s1 + $0x4c] sm:$0xf]
  %v39 = vld [vmem:[%s1 + $0x50] sm:$0xf]
  %v40 = vld [vmem:[%s1 + $0x54] sm:$0xf]
  %v41 = vld [vmem:[%s1 + $0x58] sm:$0xf]
  %v42 = vld [vmem:[%s1 + $0x5c] sm:$0xf]
  %v43 = vld [vmem:[%s1 + $0x60] sm:$0xf]
  %v44 = vld [vmem:[%s1 + $0x64] sm:$0xf]
  %v45 = vld [vmem:[%s1 + $0x68] sm:$0xf]
  %v46 = vld [vmem:[%s1 + $0x6c] sm:$0xf]
  %v47 = vld [vmem:[%s1 + $0x70] sm:$0xf]
  %v48 = vld [vmem:[%s1 + $0x74] sm:$0xf]
  %v49 = vld [vmem:[%s1 + $0x78] sm:$0xf]
  %v50 = vld [vmem:[%s1 + $0x7c] sm:$0xf]
  %v51 = vld [vmem:[%s1 + $0x80] sm:$0xf]
  %v52 = vld [vmem:[%s1 + $0x84] sm:$0xf]
  %v53 = vld [vmem:[%s1 + $0x88] sm:$0xf]
  %v54 = vld [vmem:[%s1 + $0x8c] sm:$0xf]
  %v55 = vld [vmem:[%s1 + $0x90] sm:$0xf]
  %v56 = vld [vmem:[%s1 + $0x94] sm:$0xf]
  %v57 = vld [vmem:[%s1 + $0x98] sm:$0xf]
  %v58 = vld [vmem:[%s1 + $0x9c] sm:$0xf]
  %v59 = vld [vmem:[%s1 + $0xa0] sm:$0xf]
  %v60 = vld [vmem:[%s1 + $0xa4] sm:$0xf]
  %v61 = vld [vmem:[%s1 + $0xa8] sm:$0xf]
  %v62 = vld [vmem:[%s1 + $0xac] sm:$0xf]
  %v63 = vld [vmem:[%s1 + $0xb0] sm:$0xf]
  %v64 = vld [vmem:[%s1 + $0xb4] sm:$0xf]
  %v65 = vld [vmem:[%s1 + $0xb8] sm:$0xf]
  %v66 = vld [vmem:[%s1 + $0xbc] sm:$0xf]
  %v67 = vld [vmem:[%s1 + $0xc0] sm:$0xf]
  %v68 = vld [vmem:[%s1 + $0xc4] sm:$0xf]
  %v69 = vld [vmem:[%s1 + $0xc8] sm:$0xf]
  %v70 = vld [vmem:[%s1 + $0xcc] sm:$0xf]
  %v71 = vld [vmem:[%s1 + $0xd0] sm:$0xf]
  %v72 = vld [vmem:[%s1 + $0xd4] sm:$0xf]
  %v73 = vld [vmem:[%s1 + $0xd8] sm:$0xf]
  %v74 = vld [vmem:[%s1 + $0xdc] sm:$0xf]
  %v75 = vld [vmem:[%s1 + $0xe0] sm:$0xf]
  %v76 = vld [vmem:[%s1 + $0xe4] sm:$0xf]
  %v77 = vld [vmem:[%s1 + $0xe8] sm:$0xf]
  %v78 = vld [vmem:[%s1 + $0xec] sm:$0xf]
  %v79 = vld [vmem:[%s1 + $0xf0] sm:$0xf]
  %v80 = vld [vmem:[%s1 + $0xf4] sm:$0xf]
  %v81 = vld [vmem:[%s1 + $0xf8] sm:$0xf]
  %v82 = vld [vmem:[%s1 + $0xfc] sm:$0xf]
  %v83 = vld [vmem:[%s1 + $0x100] sm:$0xf]
  %v84 = vld [vmem:[%s1 + $0x104] sm:$0xf]
  %v85 = vld [vmem:[%s1 + $0x108] sm:$0xf]
  %v86 = vld [vmem:[%s1 + $0x10c] sm:$0xf]
  %v87 = vld [vmem:[%s1 + $0x110] sm:$0xf]
  %v88 = vld [vmem:[%s1 + $0x114] sm:$0xf]
  %v89 = vld [vmem:[%s1 + $0x118] sm:$0xf]
  %v90 = vld [vmem:[%s1 + $0x11c] sm:$0xf]
  %v91 = vld [vmem:[%s1 + $0x120] sm:$0xf]
  %v92 = vld [vmem:[%s1 + $0x124] sm:$0xf]
  %v93 = vld [vmem:[%s1 + $0x128] sm:$0xf]
  %v94 = vld [vmem:[%s1 + $0x12c] sm:$0xf]
  %v95 = vld [vmem:[%s1 + $0x130] sm:$0xf]
  %v96 = vld [vmem:[%s1 + $0x134] sm:$0xf]
  %v97 = vld [vmem:[%s1 + $0x138] sm:$0xf]
  %v98 = vld [vmem:[%s1 + $0x13c] sm:$0xf]
  %v99 = vld [vmem:[%s1 + $0x140] sm:$0xf]
  %v100 = vld [vmem:[%s1 + $0x144] sm:$0xf]
  %v101 = vld [vmem:[%s1 + $0x148] sm:$0xf]
  %v102 = vld [vmem:[%s1 + $0x14c] sm:$0xf]
  %v103 = vld [vmem:[%s1 + $0x150] sm:$0xf]
  %v104 = vld [vmem:[%s1 + $0x154] sm:$0xf]
  %v105 = vld [vmem:[%s1 + $0x158] sm:$0xf]
  %v106 = vld [vmem:[%s1 + $0x15c] sm:$0xf]
  %v107 = vld [vmem:[%s1 + $0x160] sm:$0xf]
  %v108 = vld [vmem:[%s1 + $0x164] sm:$0xf]
  %v109 = vld [vmem:[%s1 + $0x168] sm:$0xf]
  %v110 = vld [vmem:[%s1 + $0x16c] sm:$0xf]
  %v111 = vld [vmem:[%s1 + $0x170] sm:$0xf]
  %v112 = vld [vmem:[%s1 + $0x174] sm:$0xf]
  %v113 = vld [vmem:[%s1 + $0x178] sm:$0xf]
  %v114 = vld [vmem:[%s1 + $0x17c] sm:$0xf]
  %v115 = vld [vmem:[%s1 + $0x180] sm:$0xf]
  %v116 = vld [vmem:[%s1 + $0x184] sm:$0xf]
  %v117 = vld [vmem:[%s1 + $0x188] sm:$0xf]
  %v118 = vld [vmem:[%s1 + $0x18c] sm:$0xf]
  %v119 = vld [vmem:[%s1 + $0x190] sm:$0xf]
  %v120 = vld [vmem:[%s1 + $0x194] sm:$0xf]
  %v121 = vld [vmem:[%s1 + $0x198] sm:$0xf]
  %v122 = vld [vmem:[%s1 + $0x19c] sm:$0xf]
  %v123 = vld [vmem:[%s1 + $0x1a0] sm:$0xf]
  %v124 = vld [vmem:[%s1 + $0x1a4] sm:$0xf]
  %v125 = vld [vmem:[%s1 + $0x1a8] sm:$0xf]
  %v126 = vld [vmem:[%s1 + $0x1ac] sm:$0xf]
  %v127 = vld [vmem:[%s1 + $0x1b0] sm:$0xf]
  %v128 = vld [vmem:[%s1 + $0x1b4] sm:$0xf]
  %v129 = vld [vmem:[%s1 + $0x1b8] sm:$0xf]
  %v130 = vld [vmem:[%s1 + $0x1bc] sm:$0xf]
  %v131 = vld [vmem:[%s1 + $0x1c0] sm:$0xf]
  %v132 = vld [vmem:[%s1 + $0x1c4] sm:$0xf]
  %v133 = vld [vmem:[%s1 + $0x1c8] sm:$0xf]
  %v134 = vld [vmem:[%s1 + $0x1cc] sm:$0xf]
  %v135 = vld [vmem:[%s1 + $0x1d0] sm:$0xf]
  %v136 = vld [vmem:[%s1 + $0x1d4] sm:$0xf]
  %v137 = vld [vmem:[%s1 + $0x1d8] sm:$0xf]
  %v138 = vld [vmem:[%s1 + $0x1dc] sm:$0xf]
  %v139 = vld [vmem:[%s1 + $0x1e0] sm:$0xf]
  %v140 = vld [vmem:[%s1 + $0x1e4] sm:$0xf]
  %v141 = vld [vmem:[%s1 + $0x1e8] sm:$0xf]
  %v142 = vld [vmem:[%s1 + $0x1ec] sm:$0xf]
  %v143 = vld [vmem:[%s1 + $0x1f0] sm:$0xf]
  %v144 = vld [vmem:[%s1 + $0x1f4] sm:$0xf]
  %v145 = vld [vmem:[%s1 + $0x1f8] sm:$0xf]
  %v146 = vld [vmem:[%s1 + $0x1fc] sm:$0xf]
  %v147 = vld [vmem:[%s2] sm:$0x1]
  %v149 = vlaneseq
  %v150 = vshrl.u32 %v149, 7
  %v151 = vsub.s32 0, %v150
  %v152 = vrot.slane %v147, %v151
  %v158 = vunpack.c.l.b16 %v15
  %v159 = vunpack.c.h.b16 %v15
  %v160 = vunpack.c.l.b16 %v16
  %v161 = vunpack.c.h.b16 %v16
  %v162 = vunpack.c.l.b16 %v17
  %v163 = vunpack.c.h.b16 %v17
  %v164 = vunpack.c.l.b16 %v18
  %v165 = vunpack.c.h.b16 %v18
  %v166 = vpack.c.b16 %v158, %v158
  %v167 = vpack.c.b16 %v159, %v159
  %v168 = vpack.c.b16 %v160, %v160
  %v169 = vpack.c.b16 %v161, %v161
  %v170 = vpack.c.b16 %v162, %v162
  %v171 = vpack.c.b16 %v163, %v163
  %v172 = vpack.c.b16 %v164, %v164
  %v173 = vpack.c.b16 %v165, %v165
  %v310 = vunpack.c.l.b16 %v19
  %v311 = vunpack.c.l.b16 %v20
  %v312 = vunpack.c.l.b16 %v21
  %v313 = vunpack.c.l.b16 %v22
  %v314 = vunpack.c.l.b16 %v23
  %v315 = vunpack.c.l.b16 %v24
  %v316 = vunpack.c.l.b16 %v25
  %v317 = vunpack.c.l.b16 %v26
  %v318 = vunpack.c.l.b16 %v27
  %v319 = vunpack.c.l.b16 %v28
  %v320 = vunpack.c.l.b16 %v29
  %v321 = vunpack.c.l.b16 %v30
  %v322 = vunpack.c.l.b16 %v31
  %v323 = vunpack.c.l.b16 %v32
  %v324 = vunpack.c.l.b16 %v33
  %v325 = vunpack.c.l.b16 %v34
  %v326 = vunpack.c.l.b16 %v35
  %v327 = vunpack.c.l.b16 %v36
  %v328 = vunpack.c.l.b16 %v37
  %v329 = vunpack.c.l.b16 %v38
  %v330 = vunpack.c.l.b16 %v39
  %v331 = vunpack.c.l.b16 %v40
  %v332 = vunpack.c.l.b16 %v41
  %v333 = vunpack.c.l.b16 %v42
  %v334 = vunpack.c.l.b16 %v43
  %v335 = vunpack.c.l.b16 %v44
  %v336 = vunpack.c.l.b16 %v45
  %v337 = vunpack.c.l.b16 %v46
  %v338 = vunpack.c.l.b16 %v47
  %v339 = vunpack.c.l.b16 %v48
  %v340 = vunpack.c.l.b16 %v49
  %v341 = vunpack.c.l.b16 %v50
  %v342 = vunpack.c.l.b16 %v51
  %v343 = vunpack.c.l.b16 %v52
  %v344 = vunpack.c.l.b16 %v53
  %v345 = vunpack.c.l.b16 %v54
  %v346 = vunpack.c.l.b16 %v55
  %v347 = vunpack.c.l.b16 %v56
  %v348 = vunpack.c.l.b16 %v57
  %v349 = vunpack.c.l.b16 %v58
  %v350 = vunpack.c.l.b16 %v59
  %v351 = vunpack.c.l.b16 %v60
  %v352 = vunpack.c.l.b16 %v61
  %v353 = vunpack.c.l.b16 %v62
  %v354 = vunpack.c.l.b16 %v63
  %v355 = vunpack.c.l.b16 %v64
  %v356 = vunpack.c.l.b16 %v65
  %v357 = vunpack.c.l.b16 %v66
  %v358 = vunpack.c.l.b16 %v67
  %v359 = vunpack.c.l.b16 %v68
  %v360 = vunpack.c.l.b16 %v69
  %v361 = vunpack.c.l.b16 %v70
  %v362 = vunpack.c.l.b16 %v71
  %v363 = vunpack.c.l.b16 %v72
  %v364 = vunpack.c.l.b16 %v73
  %v365 = vunpack.c.l.b16 %v74
  %v366 = vunpack.c.l.b16 %v75
  %v367 = vunpack.c.l.b16 %v76
  %v368 = vunpack.c.l.b16 %v77
  %v369 = vunpack.c.l.b16 %v78
  %v370 = vunpack.c.l.b16 %v79
  %v371 = vunpack.c.l.b16 %v80
  %v372 = vunpack.c.l.b16 %v81
  %v373 = vunpack.c.l.b16 %v82
  %v374 = vunpack.c.l.b16 %v83
  %v375 = vunpack.c.l.b16 %v84
  %v376 = vunpack.c.l.b16 %v85
  %v377 = vunpack.c.l.b16 %v86
  %v378 = vunpack.c.l.b16 %v87
  %v379 = vunpack.c.l.b16 %v88
  %v380 = vunpack.c.l.b16 %v89
  %v381 = vunpack.c.l.b16 %v90
  %v382 = vunpack.c.l.b16 %v91
  %v383 = vunpack.c.l.b16 %v92
  %v384 = vunpack.c.l.b16 %v93
  %v385 = vunpack.c.l.b16 %v94
  %v386 = vunpack.c.l.b16 %v95
  %v387 = vunpack.c.l.b16 %v96
  %v388 = vunpack.c.l.b16 %v97
  %v389 = vunpack.c.l.b16 %v98
  %v390 = vunpack.c.l.b16 %v99
  %v391 = vunpack.c.l.b16 %v100
  %v392 = vunpack.c.l.b16 %v101
  %v393 = vunpack.c.l.b16 %v102
  %v394 = vunpack.c.l.b16 %v103
  %v395 = vunpack.c.l.b16 %v104
  %v396 = vunpack.c.l.b16 %v105
  %v397 = vunpack.c.l.b16 %v106
  %v398 = vunpack.c.l.b16 %v107
  %v399 = vunpack.c.l.b16 %v108
  %v400 = vunpack.c.l.b16 %v109
  %v401 = vunpack.c.l.b16 %v110
  %v402 = vunpack.c.l.b16 %v111
  %v403 = vunpack.c.l.b16 %v112
  %v404 = vunpack.c.l.b16 %v113
  %v405 = vunpack.c.l.b16 %v114
  %v406 = vunpack.c.l.b16 %v115
  %v407 = vunpack.c.l.b16 %v116
  %v408 = vunpack.c.l.b16 %v117
  %v409 = vunpack.c.l.b16 %v118
  %v410 = vunpack.c.l.b16 %v119
  %v411 = vunpack.c.l.b16 %v120
  %v412 = vunpack.c.l.b16 %v121
  %v413 = vunpack.c.l.b16 %v122
  %v414 = vunpack.c.l.b16 %v123
  %v415 = vunpack.c.l.b16 %v124
  %v416 = vunpack.c.l.b16 %v125
  %v417 = vunpack.c.l.b16 %v126
  %v418 = vunpack.c.l.b16 %v127
  %v419 = vunpack.c.l.b16 %v128
  %v420 = vunpack.c.l.b16 %v129
  %v421 = vunpack.c.l.b16 %v130
  %v422 = vunpack.c.l.b16 %v131
  %v423 = vunpack.c.l.b16 %v132
  %v424 = vunpack.c.l.b16 %v133
  %v425 = vunpack.c.l.b16 %v134
  %v426 = vunpack.c.l.b16 %v135
  %v427 = vunpack.c.l.b16 %v136
  %v428 = vunpack.c.l.b16 %v137
  %v429 = vunpack.c.l.b16 %v138
  %v430 = vunpack.c.l.b16 %v139
  %v431 = vunpack.c.l.b16 %v140
  %v432 = vunpack.c.l.b16 %v141
  %v433 = vunpack.c.l.b16 %v142
  %v434 = vunpack.c.l.b16 %v143
  %v435 = vunpack.c.l.b16 %v144
  %v436 = vunpack.c.l.b16 %v145
  %v437 = vunpack.c.l.b16 %v146
  %v438 = vpack.c.b16 %v311, %v310
  %v439 = vpack.c.b16 %v313, %v312
  %v440 = vpack.c.b16 %v315, %v314
  %v441 = vpack.c.b16 %v317, %v316
  %v442 = vpack.c.b16 %v319, %v318
  %v443 = vpack.c.b16 %v321, %v320
  %v444 = vpack.c.b16 %v323, %v322
  %v445 = vpack.c.b16 %v325, %v324
  %v446 = vpack.c.b16 %v327, %v326
  %v447 = vpack.c.b16 %v329, %v328
  %v448 = vpack.c.b16 %v331, %v330
  %v449 = vpack.c.b16 %v333, %v332
  %v450 = vpack.c.b16 %v335, %v334
  %v451 = vpack.c.b16 %v337, %v336
  %v452 = vpack.c.b16 %v339, %v338
  %v453 = vpack.c.b16 %v341, %v340
  %v454 = vpack.c.b16 %v343, %v342
  %v455 = vpack.c.b16 %v345, %v344
  %v456 = vpack.c.b16 %v347, %v346
  %v457 = vpack.c.b16 %v349, %v348
  %v458 = vpack.c.b16 %v351, %v350
  %v459 = vpack.c.b16 %v353, %v352
  %v460 = vpack.c.b16 %v355, %v354
  %v461 = vpack.c.b16 %v357, %v356
  %v462 = vpack.c.b16 %v359, %v358
  %v463 = vpack.c.b16 %v361, %v360
  %v464 = vpack.c.b16 %v363, %v362
  %v465 = vpack.c.b16 %v365, %v364
  %v466 = vpack.c.b16 %v367, %v366
  %v467 = vpack.c.b16 %v369, %v368
  %v468 = vpack.c.b16 %v371, %v370
  %v469 = vpack.c.b16 %v373, %v372
  %v470 = vpack.c.b16 %v375, %v374
  %v471 = vpack.c.b16 %v377, %v376
  %v472 = vpack.c.b16 %v379, %v378
  %v473 = vpack.c.b16 %v381, %v380
  %v474 = vpack.c.b16 %v383, %v382
  %v475 = vpack.c.b16 %v385, %v384
  %v476 = vpack.c.b16 %v387, %v386
  %v477 = vpack.c.b16 %v389, %v388
  %v478 = vpack.c.b16 %v391, %v390
  %v479 = vpack.c.b16 %v393, %v392
  %v480 = vpack.c.b16 %v395, %v394
  %v481 = vpack.c.b16 %v397, %v396
  %v482 = vpack.c.b16 %v399, %v398
  %v483 = vpack.c.b16 %v401, %v400
  %v484 = vpack.c.b16 %v403, %v402
  %v485 = vpack.c.b16 %v405, %v404
  %v486 = vpack.c.b16 %v407, %v406
  %v487 = vpack.c.b16 %v409, %v408
  %v488 = vpack.c.b16 %v411, %v410
  %v489 = vpack.c.b16 %v413, %v412
  %v490 = vpack.c.b16 %v415, %v414
  %v491 = vpack.c.b16 %v417, %v416
  %v492 = vpack.c.b16 %v419, %v418
  %v493 = vpack.c.b16 %v421, %v420
  %v494 = vpack.c.b16 %v423, %v422
  %v495 = vpack.c.b16 %v425, %v424
  %v496 = vpack.c.b16 %v427, %v426
  %v497 = vpack.c.b16 %v429, %v428
  %v498 = vpack.c.b16 %v431, %v430
  %v499 = vpack.c.b16 %v433, %v432
  %v500 = vpack.c.b16 %v435, %v434
  %v501 = vpack.c.b16 %v437, %v436
  %566 = vmatprep.subr.bf16.mxu0 0
  %567 = vmatpush1.bf16.msra.mxu0 %v438
  %568 = vmatprep.subr.bf16.mxu0 0
  %569 = vmatpush1.bf16.msra.mxu0 %v439
  %570 = vmatprep.subr.bf16.mxu0 0
  %571 = vmatpush1.bf16.msra.mxu0 %v440
  %572 = vmatprep.subr.bf16.mxu0 0
  %573 = vmatpush1.bf16.msra.mxu0 %v441
  %574 = vmatprep.subr.bf16.mxu0 0
  %575 = vmatpush1.bf16.msra.mxu0 %v442
  %576 = vmatprep.subr.bf16.mxu0 0
  %577 = vmatpush1.bf16.msra.mxu0 %v443
  %578 = vmatprep.subr.bf16.mxu0 0
  %579 = vmatpush1.bf16.msra.mxu0 %v444
  %580 = vmatprep.subr.bf16.mxu0 0
  %581 = vmatpush1.bf16.msra.mxu0 %v445
  %582 = vmatprep.subr.bf16.mxu0 0
  %583 = vmatpush1.bf16.msra.mxu0 %v446
  %584 = vmatprep.subr.bf16.mxu0 0
  %585 = vmatpush1.bf16.msra.mxu0 %v447
  %586 = vmatprep.subr.bf16.mxu0 0
  %587 = vmatpush1.bf16.msra.mxu0 %v448
  %588 = vmatprep.subr.bf16.mxu0 0
  %589 = vmatpush1.bf16.msra.mxu0 %v449
  %590 = vmatprep.subr.bf16.mxu0 0
  %591 = vmatpush1.bf16.msra.mxu0 %v450
  %592 = vmatprep.subr.bf16.mxu0 0
  %593 = vmatpush1.bf16.msra.mxu0 %v451
  %594 = vmatprep.subr.bf16.mxu0 0
  %595 = vmatpush1.bf16.msra.mxu0 %v452
  %596 = vmatprep.subr.bf16.mxu0 0
  %597 = vmatpush1.bf16.msra.mxu0 %v453
  %598 = vmatprep.mubr.bf16.mxu0 %v167
  %599 = vmatmul.mubr.bf16.gmra.mrb[0].mxu0 %v166
  %v600 = vpop.f32.mrb[0].mxu0
  %v601 = vadd.f32 %v152, %v600
  %v602 = vpop.f32.mrb[0].mxu0
  %v603 = vpop.f32.mrb[0].mxu0
  %v604 = vpop.f32.mrb[0].mxu0
  %605 = vdwg.mxu0
  %606 = vmatprep.subr.bf16.mxu0 0
  %607 = vmatpush1.bf16.msra.mxu0 %v454
  %608 = vmatprep.subr.bf16.mxu0 0
  %609 = vmatpush1.bf16.msra.mxu0 %v455
  %610 = vmatprep.subr.bf16.mxu0 0
  %611 = vmatpush1.bf16.msra.mxu0 %v456
  %612 = vmatprep.subr.bf16.mxu0 0
  %613 = vmatpush1.bf16.msra.mxu0 %v457
  %614 = vmatprep.subr.bf16.mxu0 0
  %615 = vmatpush1.bf16.msra.mxu0 %v458
  %616 = vmatprep.subr.bf16.mxu0 0
  %617 = vmatpush1.bf16.msra.mxu0 %v459
  %618 = vmatprep.subr.bf16.mxu0 0
  %619 = vmatpush1.bf16.msra.mxu0 %v460
  %620 = vmatprep.subr.bf16.mxu0 0
  %621 = vmatpush1.bf16.msra.mxu0 %v461
  %622 = vmatprep.subr.bf16.mxu0 0
  %623 = vmatpush1.bf16.msra.mxu0 %v462
  %624 = vmatprep.subr.bf16.mxu0 0
  %625 = vmatpush1.bf16.msra.mxu0 %v463
  %626 = vmatprep.subr.bf16.mxu0 0
  %627 = vmatpush1.bf16.msra.mxu0 %v464
  %628 = vmatprep.subr.bf16.mxu0 0
  %629 = vmatpush1.bf16.msra.mxu0 %v465
  %630 = vmatprep.subr.bf16.mxu0 0
  %631 = vmatpush1.bf16.msra.mxu0 %v466
  %632 = vmatprep.subr.bf16.mxu0 0
  %633 = vmatpush1.bf16.msra.mxu0 %v467
  %634 = vmatprep.subr.bf16.mxu0 0
  %635 = vmatpush1.bf16.msra.mxu0 %v468
  %636 = vmatprep.subr.bf16.mxu0 0
  %637 = vmatpush1.bf16.msra.mxu0 %v469
  %638 = vmatprep.mubr.bf16.mxu0 %v169
  %639 = vmatmul.mubr.bf16.gmra.mrb[0].mxu0 %v168
  %v640 = vpop.f32.mrb[0].mxu0
  %v641 = vadd.f32 %v601, %v640
  %v642 = vpop.f32.mrb[0].mxu0
  %v643 = vpop.f32.mrb[0].mxu0
  %v644 = vpop.f32.mrb[0].mxu0
  %645 = vdwg.mxu0
  %646 = vmatprep.subr.bf16.mxu0 0
  %647 = vmatpush1.bf16.msra.mxu0 %v470
  %648 = vmatprep.subr.bf16.mxu0 0
  %649 = vmatpush1.bf16.msra.mxu0 %v471
  %650 = vmatprep.subr.bf16.mxu0 0
  %651 = vmatpush1.bf16.msra.mxu0 %v472
  %652 = vmatprep.subr.bf16.mxu0 0
  %653 = vmatpush1.bf16.msra.mxu0 %v473
  %654 = vmatprep.subr.bf16.mxu0 0
  %655 = vmatpush1.bf16.msra.mxu0 %v474
  %656 = vmatprep.subr.bf16.mxu0 0
  %657 = vmatpush1.bf16.msra.mxu0 %v475
  %658 = vmatprep.subr.bf16.mxu0 0
  %659 = vmatpush1.bf16.msra.mxu0 %v476
  %660 = vmatprep.subr.bf16.mxu0 0
  %661 = vmatpush1.bf16.msra.mxu0 %v477
  %662 = vmatprep.subr.bf16.mxu0 0
  %663 = vmatpush1.bf16.msra.mxu0 %v478
  %664 = vmatprep.subr.bf16.mxu0 0
  %665 = vmatpush1.bf16.msra.mxu0 %v479
  %666 = vmatprep.subr.bf16.mxu0 0
  %667 = vmatpush1.bf16.msra.mxu0 %v480
  %668 = vmatprep.subr.bf16.mxu0 0
  %669 = vmatpush1.bf16.msra.mxu0 %v481
  %670 = vmatprep.subr.bf16.mxu0 0
  %671 = vmatpush1.bf16.msra.mxu0 %v482
  %672 = vmatprep.subr.bf16.mxu0 0
  %673 = vmatpush1.bf16.msra.mxu0 %v483
  %674 = vmatprep.subr.bf16.mxu0 0
  %675 = vmatpush1.bf16.msra.mxu0 %v484
  %676 = vmatprep.subr.bf16.mxu0 0
  %677 = vmatpush1.bf16.msra.mxu0 %v485
  %678 = vmatprep.mubr.bf16.mxu0 %v171
  %679 = vmatmul.mubr.bf16.gmra.mrb[0].mxu0 %v170
  %v680 = vpop.f32.mrb[0].mxu0
  %v681 = vadd.f32 %v641, %v680
  %v682 = vpop.f32.mrb[0].mxu0
  %v683 = vpop.f32.mrb[0].mxu0
  %v684 = vpop.f32.mrb[0].mxu0
  %685 = vdwg.mxu0
  %686 = vmatprep.subr.bf16.mxu0 0
  %687 = vmatpush1.bf16.msra.mxu0 %v486
  %688 = vmatprep.subr.bf16.mxu0 0
  %689 = vmatpush1.bf16.msra.mxu0 %v487
  %690 = vmatprep.subr.bf16.mxu0 0
  %691 = vmatpush1.bf16.msra.mxu0 %v488
  %692 = vmatprep.subr.bf16.mxu0 0
  %693 = vmatpush1.bf16.msra.mxu0 %v489
  %694 = vmatprep.subr.bf16.mxu0 0
  %695 = vmatpush1.bf16.msra.mxu0 %v490
  %696 = vmatprep.subr.bf16.mxu0 0
  %697 = vmatpush1.bf16.msra.mxu0 %v491
  %698 = vmatprep.subr.bf16.mxu0 0
  %699 = vmatpush1.bf16.msra.mxu0 %v492
  %700 = vmatprep.subr.bf16.mxu0 0
  %701 = vmatpush1.bf16.msra.mxu0 %v493
  %702 = vmatprep.subr.bf16.mxu0 0
  %703 = vmatpush1.bf16.msra.mxu0 %v494
  %704 = vmatprep.subr.bf16.mxu0 0
  %705 = vmatpush1.bf16.msra.mxu0 %v495
  %706 = vmatprep.subr.bf16.mxu0 0
  %707 = vmatpush1.bf16.msra.mxu0 %v496
  %708 = vmatprep.subr.bf16.mxu0 0
  %709 = vmatpush1.bf16.msra.mxu0 %v497
  %710 = vmatprep.subr.bf16.mxu0 0
  %711 = vmatpush1.bf16.msra.mxu0 %v498
  %712 = vmatprep.subr.bf16.mxu0 0
  %713 = vmatpush1.bf16.msra.mxu0 %v499
  %714 = vmatprep.subr.bf16.mxu0 0
  %715 = vmatpush1.bf16.msra.mxu0 %v500
  %716 = vmatprep.subr.bf16.mxu0 0
  %717 = vmatpush1.bf16.msra.mxu0 %v501
  %718 = vmatprep.mubr.bf16.mxu0 %v173
  %719 = vmatmul.mubr.bf16.gmra.mrb[0].mxu0 %v172
  %v720 = vpop.f32.mrb[0].mxu0
  %v721 = vadd.f32 %v681, %v720
  %v722 = vpop.f32.mrb[0].mxu0
  %v723 = vpop.f32.mrb[0].mxu0
  %v724 = vpop.f32.mrb[0].mxu0
  %725 = vdwg.mxu0
  %726 = vst [vmem:[%s3] sm:$0xff] %v721
  // Predicated region
  $region14: #{mmdvae_forward.14} parent=0 // pred_check
    _
  $region15: #{mmdvae_forward.14} parent=0 // pred_check_branch
    %728 = sbr.rel (0) target = $region17
  $region16: #{mmdvae_forward.14} parent=0 // pred_region
    _
  $region17: #{mmdvae_forward.14} parent=0 // pred_fallthru
    _
  // Predicated region
  $region18: #{mmdvae_forward.14} parent=0 // pred_check
    _
  $region19: #{mmdvae_forward.14} parent=0 // pred_check_branch
    %730 = sbr.rel (0) target = $region21
  $region20: #{mmdvae_forward.14} parent=0 // pred_region
    _
  $region21: #{mmdvae_forward.14} parent=0 // pred_fallthru
    _

// kernel: mmdvae_forward.16
$region0: #{mmdvae_forward.16}
  #allocation0 [shape = 'u32[]', space=smem, size = 0x4, offset = 0x4, fixed_abs, tag = 'smem constant byte address 0x4 - core index']
  #allocation1 [shape = 'u32[144,128]{1,0:T(1,128)}', space=vmem, size = 0x12000, scoped, tag = 'internal scratch']
  %s0 = inlined_call_operand.vmem [shape: bf16[128,576], index: 0, kind: input, shape index: {}]
  %s1 = inlined_call_operand.vmem [shape: bf16[576,128], index: 1, kind: input, shape index: {}]
  %s2 = inlined_call_operand.vmem [shape: f32[128,1], index: 2, kind: input, shape index: {}]
  %s3 = inlined_call_operand.vmem [shape: bf16[128,128], index: 3, kind: output, shape index: {}]
  %s4 = sld [smem:[#allocation0]]
  $region22: #{mmdvae_forward.16} parent=0
    _
  %s6 = ssub.s32 1, %s4
  %s7 = scalar_select 0, %s6, %s4
  // Predicated region
  $region2: #{mmdvae_forward.16} parent=0 // pred_check
    _
  $region3: #{mmdvae_forward.16} parent=0 // pred_check_branch
    %9 = sbr.rel (0) target = $region5
  $region4: #{mmdvae_forward.16} parent=0 // pred_region
    _
  $region5: #{mmdvae_forward.16} parent=0 // pred_fallthru
    _
  // Predicated region
  $region6: #{mmdvae_forward.16} parent=0 // pred_check
    _
  $region7: #{mmdvae_forward.16} parent=0 // pred_check_branch
    %11 = sbr.rel (0) target = $region9
  $region8: #{mmdvae_forward.16} parent=0 // pred_region
    _
  $region9: #{mmdvae_forward.16} parent=0 // pred_fallthru
    _
  // Predicated region
  $region10: #{mmdvae_forward.16} parent=0 // pred_check
    _
  $region11: #{mmdvae_forward.16} parent=0 // pred_check_branch
    %13 = sbr.rel (0) target = $region13
  $region12: #{mmdvae_forward.16} parent=0 // pred_region
    _
  $region13: #{mmdvae_forward.16} parent=0 // pred_fallthru
    _
  %v15 = vld [vmem:[%s0] sm:$0xff]
  %v16 = vld [vmem:[%s0 + $0x8] sm:$0xff]
  %v17 = vld [vmem:[%s0 + $0x10] sm:$0xf]
  %v18 = vld [vmem:[%s0 + $0x14] sm:$0xff]
  %v19 = vld [vmem:[%s0 + $0x1c] sm:$0xff]
  %v20 = vld [vmem:[%s0 + $0x24] sm:$0xf]
  %v21 = vld [vmem:[%s0 + $0x28] sm:$0xff]
  %v22 = vld [vmem:[%s0 + $0x30] sm:$0xff]
  %v23 = vld [vmem:[%s0 + $0x38] sm:$0xf]
  %v24 = vld [vmem:[%s0 + $0x3c] sm:$0xff]
  %v25 = vld [vmem:[%s0 + $0x44] sm:$0xff]
  %v26 = vld [vmem:[%s0 + $0x4c] sm:$0xf]
  %v27 = vld [vmem:[%s0 + $0x50] sm:$0xff]
  %v28 = vld [vmem:[%s0 + $0x58] sm:$0xff]
  %v29 = vld [vmem:[%s0 + $0x60] sm:$0xf]
  %v30 = vld [vmem:[%s0 + $0x64] sm:$0xff]
  %v31 = vld [vmem:[%s0 + $0x6c] sm:$0xff]
  %v32 = vld [vmem:[%s0 + $0x74] sm:$0xf]
  %v33 = vld [vmem:[%s0 + $0x78] sm:$0xff]
  %v34 = vld [vmem:[%s0 + $0x80] sm:$0xff]
  %v35 = vld [vmem:[%s0 + $0x88] sm:$0xf]
  %v36 = vld [vmem:[%s0 + $0x8c] sm:$0xff]
  %v37 = vld [vmem:[%s0 + $0x94] sm:$0xff]
  %v38 = vld [vmem:[%s0 + $0x9c] sm:$0xf]
  %v39 = vld [vmem:[%s0 + $0xa0] sm:$0xff]
  %v40 = vld [vmem:[%s0 + $0xa8] sm:$0xff]
  %v41 = vld [vmem:[%s0 + $0xb0] sm:$0xf]
  %v42 = vld [vmem:[%s0 + $0xb4] sm:$0xff]
  %v43 = vld [vmem:[%s0 + $0xbc] sm:$0xff]
  %v44 = vld [vmem:[%s0 + $0xc4] sm:$0xf]
  %v45 = vld [vmem:[%s0 + $0xc8] sm:$0xff]
  %v46 = vld [vmem:[%s0 + $0xd0] sm:$0xff]
  %v47 = vld [vmem:[%s0 + $0xd8] sm:$0xf]
  %v48 = vld [vmem:[%s0 + $0xdc] sm:$0xff]
  %v49 = vld [vmem:[%s0 + $0xe4] sm:$0xff]
  %v50 = vld [vmem:[%s0 + $0xec] sm:$0xf]
  %v51 = vld [vmem:[%s0 + $0xf0] sm:$0xff]
  %v52 = vld [vmem:[%s0 + $0xf8] sm:$0xff]
  %v53 = vld [vmem:[%s0 + $0x100] sm:$0xf]
  %v54 = vld [vmem:[%s0 + $0x104] sm:$0xff]
  %v55 = vld [vmem:[%s0 + $0x10c] sm:$0xff]
  %v56 = vld [vmem:[%s0 + $0x114] sm:$0xf]
  %v57 = vld [vmem:[%s0 + $0x118] sm:$0xff]
  %v58 = vld [vmem:[%s0 + $0x120] sm:$0xff]
  %v59 = vld [vmem:[%s0 + $0x128] sm:$0xf]
  %v60 = vld [vmem:[%s0 + $0x12c] sm:$0xff]
  %v61 = vld [vmem:[%s0 + $0x134] sm:$0xff]
  %v62 = vld [vmem:[%s0 + $0x13c] sm:$0xf]
  %v63 = vld [vmem:[%s1] sm:$0xf]
  %v64 = vld [vmem:[%s1 + $0x4] sm:$0xf]
  %v65 = vld [vmem:[%s1 + $0x8] sm:$0xf]
  %v66 = vld [vmem:[%s1 + $0xc] sm:$0xf]
  %v67 = vld [vmem:[%s1 + $0x10] sm:$0xf]
  %v68 = vld [vmem:[%s1 + $0x14] sm:$0xf]
  %v69 = vld [vmem:[%s1 + $0x18] sm:$0xf]
  %v70 = vld [vmem:[%s1 + $0x1c] sm:$0xf]
  %v71 = vld [vmem:[%s1 + $0x20] sm:$0xf]
  %v72 = vld [vmem:[%s1 + $0x24] sm:$0xf]
  %v73 = vld [vmem:[%s1 + $0x28] sm:$0xf]
  %v74 = vld [vmem:[%s1 + $0x2c] sm:$0xf]
  %v75 = vld [vmem:[%s1 + $0x30] sm:$0xf]
  %v76 = vld [vmem:[%s1 + $0x34] sm:$0xf]
  %v77 = vld [vmem:[%s1 + $0x38] sm:$0xf]
  %v78 = vld [vmem:[%s1 + $0x3c] sm:$0xf]
  %v79 = vld [vmem:[%s1 + $0x40] sm:$0xf]
  %v80 = vld [vmem:[%s1 + $0x44] sm:$0xf]
  %v81 = vld [vmem:[%s1 + $0x48] sm:$0xf]
  %v82 = vld [vmem:[%s1 + $0x4c] sm:$0xf]
  %v83 = vld [vmem:[%s1 + $0x50] sm:$0xf]
  %v84 = vld [vmem:[%s1 + $0x54] sm:$0xf]
  %v85 = vld [vmem:[%s1 + $0x58] sm:$0xf]
  %v86 = vld [vmem:[%s1 + $0x5c] sm:$0xf]
  %v87 = vld [vmem:[%s1 + $0x60] sm:$0xf]
  %v88 = vld [vmem:[%s1 + $0x64] sm:$0xf]
  %v89 = vld [vmem:[%s1 + $0x68] sm:$0xf]
  %v90 = vld [vmem:[%s1 + $0x6c] sm:$0xf]
  %v91 = vld [vmem:[%s1 + $0x70] sm:$0xf]
  %v92 = vld [vmem:[%s1 + $0x74] sm:$0xf]
  %v93 = vld [vmem:[%s1 + $0x78] sm:$0xf]
  %v94 = vld [vmem:[%s1 + $0x7c] sm:$0xf]
  %v95 = vld [vmem:[%s1 + $0x80] sm:$0xf]
  %v96 = vld [vmem:[%s1 + $0x84] sm:$0xf]
  %v97 = vld [vmem:[%s1 + $0x88] sm:$0xf]
  %v98 = vld [vmem:[%s1 + $0x8c] sm:$0xf]
  %v99 = vld [vmem:[%s1 + $0x90] sm:$0xf]
  %v100 = vld [vmem:[%s1 + $0x94] sm:$0xf]
  %v101 = vld [vmem:[%s1 + $0x98] sm:$0xf]
  %v102 = vld [vmem:[%s1 + $0x9c] sm:$0xf]
  %v103 = vld [vmem:[%s1 + $0xa0] sm:$0xf]
  %v104 = vld [vmem:[%s1 + $0xa4] sm:$0xf]
  %v105 = vld [vmem:[%s1 + $0xa8] sm:$0xf]
  %v106 = vld [vmem:[%s1 + $0xac] sm:$0xf]
  %v107 = vld [vmem:[%s1 + $0xb0] sm:$0xf]
  %v108 = vld [vmem:[%s1 + $0xb4] sm:$0xf]
  %v109 = vld [vmem:[%s1 + $0xb8] sm:$0xf]
  %v110 = vld [vmem:[%s1 + $0xbc] sm:$0xf]
  %v111 = vld [vmem:[%s1 + $0xc0] sm:$0xf]
  %v112 = vld [vmem:[%s1 + $0xc4] sm:$0xf]
  %v113 = vld [vmem:[%s1 + $0xc8] sm:$0xf]
  %v114 = vld [vmem:[%s1 + $0xcc] sm:$0xf]
  %v115 = vld [vmem:[%s1 + $0xd0] sm:$0xf]
  %v116 = vld [vmem:[%s1 + $0xd4] sm:$0xf]
  %v117 = vld [vmem:[%s1 + $0xd8] sm:$0xf]
  %v118 = vld [vmem:[%s1 + $0xdc] sm:$0xf]
  %v119 = vld [vmem:[%s1 + $0xe0] sm:$0xf]
  %v120 = vld [vmem:[%s1 + $0xe4] sm:$0xf]
  %v121 = vld [vmem:[%s1 + $0xe8] sm:$0xf]
  %v122 = vld [vmem:[%s1 + $0xec] sm:$0xf]
  %v123 = vld [vmem:[%s1 + $0xf0] sm:$0xf]
  %v124 = vld [vmem:[%s1 + $0xf4] sm:$0xf]
  %v125 = vld [vmem:[%s1 + $0xf8] sm:$0xf]
  %v126 = vld [vmem:[%s1 + $0xfc] sm:$0xf]
  %v127 = vld [vmem:[%s1 + $0x100] sm:$0xf]
  %v128 = vld [vmem:[%s1 + $0x104] sm:$0xf]
  %v129 = vld [vmem:[%s1 + $0x108] sm:$0xf]
  %v130 = vld [vmem:[%s1 + $0x10c] sm:$0xf]
  %v131 = vld [vmem:[%s1 + $0x110] sm:$0xf]
  %v132 = vld [vmem:[%s1 + $0x114] sm:$0xf]
  %v133 = vld [vmem:[%s1 + $0x118] sm:$0xf]
  %v134 = vld [vmem:[%s1 + $0x11c] sm:$0xf]
  %v135 = vld [vmem:[%s2] sm:$0xff]
  %v136 = vld [vmem:[%s2 + $0x8] sm:$0xff]
  %v137 = vld [vmem:[%s2 + $0x10] sm:$0xff]
  %v138 = vld [vmem:[%s2 + $0x18] sm:$0xff]
  %v139 = vld [vmem:[%s2 + $0x20] sm:$0xff]
  %v140 = vld [vmem:[%s2 + $0x28] sm:$0xff]
  %v141 = vld [vmem:[%s2 + $0x30] sm:$0xff]
  %v142 = vld [vmem:[%s2 + $0x38] sm:$0xff]
  %v143 = vld [vmem:[%s2 + $0x40] sm:$0xff]
  %v144 = vld [vmem:[%s2 + $0x48] sm:$0xff]
  %v145 = vld [vmem:[%s2 + $0x50] sm:$0xff]
  %v146 = vld [vmem:[%s2 + $0x58] sm:$0xff]
  %v147 = vld [vmem:[%s2 + $0x60] sm:$0xff]
  %v148 = vld [vmem:[%s2 + $0x68] sm:$0xff]
  %v149 = vld [vmem:[%s2 + $0x70] sm:$0xff]
  %v150 = vld [vmem:[%s2 + $0x78] sm:$0xff]
  %152 = vset.pattern.permute.xlu0 0
  %153 = vperm.xlu0 %152, %v135
  %v154 = vpop.permute.xlu0 %153
  %157 = vset.pattern.permute.xlu0 0
  %158 = vperm.xlu0 %157, %v136
  %v159 = vpop.permute.xlu0 %158
  %162 = vset.pattern.permute.xlu0 0
  %163 = vperm.xlu0 %162, %v137
  %v164 = vpop.permute.xlu0 %163
  %167 = vset.pattern.permute.xlu0 0
  %168 = vperm.xlu0 %167, %v138
  %v169 = vpop.permute.xlu0 %168
  %172 = vset.pattern.permute.xlu0 0
  %173 = vperm.xlu0 %172, %v139
  %v174 = vpop.permute.xlu0 %173
  %177 = vset.pattern.permute.xlu0 0
  %178 = vperm.xlu0 %177, %v140
  %v179 = vpop.permute.xlu0 %178
  %182 = vset.pattern.permute.xlu0 0
  %183 = vperm.xlu0 %182, %v141
  %v184 = vpop.permute.xlu0 %183
  %187 = vset.pattern.permute.xlu0 0
  %188 = vperm.xlu0 %187, %v142
  %v189 = vpop.permute.xlu0 %188
  %192 = vset.pattern.permute.xlu0 0
  %193 = vperm.xlu0 %192, %v143
  %v194 = vpop.permute.xlu0 %193
  %197 = vset.pattern.permute.xlu0 0
  %198 = vperm.xlu0 %197, %v144
  %v199 = vpop.permute.xlu0 %198
  %202 = vset.pattern.permute.xlu0 0
  %203 = vperm.xlu0 %202, %v145
  %v204 = vpop.permute.xlu0 %203
  %207 = vset.pattern.permute.xlu0 0
  %208 = vperm.xlu0 %207, %v146
  %v209 = vpop.permute.xlu0 %208
  %212 = vset.pattern.permute.xlu0 0
  %213 = vperm.xlu0 %212, %v147
  %v214 = vpop.permute.xlu0 %213
  %217 = vset.pattern.permute.xlu0 0
  %218 = vperm.xlu0 %217, %v148
  %v219 = vpop.permute.xlu0 %218
  %222 = vset.pattern.permute.xlu0 0
  %223 = vperm.xlu0 %222, %v149
  %v224 = vpop.permute.xlu0 %223
  %227 = vset.pattern.permute.xlu0 0
  %228 = vperm.xlu0 %227, %v150
  %v229 = vpop.permute.xlu0 %228
  %v279 = vunpack.c.l.b16 %v15
  %v280 = vunpack.c.h.b16 %v15
  %v281 = vunpack.c.l.b16 %v16
  %v282 = vunpack.c.h.b16 %v16
  %v283 = vunpack.c.l.b16 %v17
  %v284 = vunpack.c.l.b16 %v18
  %v285 = vunpack.c.h.b16 %v18
  %v286 = vunpack.c.l.b16 %v19
  %v287 = vunpack.c.h.b16 %v19
  %v288 = vunpack.c.l.b16 %v20
  %v289 = vunpack.c.l.b16 %v21
  %v290 = vunpack.c.h.b16 %v21
  %v291 = vunpack.c.l.b16 %v22
  %v292 = vunpack.c.h.b16 %v22
  %v293 = vunpack.c.l.b16 %v23
  %v294 = vunpack.c.l.b16 %v24
  %v295 = vunpack.c.h.b16 %v24
  %v296 = vunpack.c.l.b16 %v25
  %v297 = vunpack.c.h.b16 %v25
  %v298 = vunpack.c.l.b16 %v26
  %v299 = vunpack.c.l.b16 %v27
  %v300 = vunpack.c.h.b16 %v27
  %v301 = vunpack.c.l.b16 %v28
  %v302 = vunpack.c.h.b16 %v28
  %v303 = vunpack.c.l.b16 %v29
  %v304 = vunpack.c.l.b16 %v30
  %v305 = vunpack.c.h.b16 %v30
  %v306 = vunpack.c.l.b16 %v31
  %v307 = vunpack.c.h.b16 %v31
  %v308 = vunpack.c.l.b16 %v32
  %v309 = vunpack.c.l.b16 %v33
  %v310 = vunpack.c.h.b16 %v33
  %v311 = vunpack.c.l.b16 %v34
  %v312 = vunpack.c.h.b16 %v34
  %v313 = vunpack.c.l.b16 %v35
  %v314 = vunpack.c.l.b16 %v36
  %v315 = vunpack.c.h.b16 %v36
  %v316 = vunpack.c.l.b16 %v37
  %v317 = vunpack.c.h.b16 %v37
  %v318 = vunpack.c.l.b16 %v38
  %v319 = vunpack.c.l.b16 %v39
  %v320 = vunpack.c.h.b16 %v39
  %v321 = vunpack.c.l.b16 %v40
  %v322 = vunpack.c.h.b16 %v40
  %v323 = vunpack.c.l.b16 %v41
  %v324 = vunpack.c.l.b16 %v42
  %v325 = vunpack.c.h.b16 %v42
  %v326 = vunpack.c.l.b16 %v43
  %v327 = vunpack.c.h.b16 %v43
  %v328 = vunpack.c.l.b16 %v44
  %v329 = vunpack.c.l.b16 %v45
  %v330 = vunpack.c.h.b16 %v45
  %v331 = vunpack.c.l.b16 %v46
  %v332 = vunpack.c.h.b16 %v46
  %v333 = vunpack.c.l.b16 %v47
  %v334 = vunpack.c.l.b16 %v48
  %v335 = vunpack.c.h.b16 %v48
  %v336 = vunpack.c.l.b16 %v49
  %v337 = vunpack.c.h.b16 %v49
  %v338 = vunpack.c.l.b16 %v50
  %v339 = vunpack.c.l.b16 %v51
  %v340 = vunpack.c.h.b16 %v51
  %v341 = vunpack.c.l.b16 %v52
  %v342 = vunpack.c.h.b16 %v52
  %v343 = vunpack.c.l.b16 %v53
  %v344 = vunpack.c.l.b16 %v54
  %v345 = vunpack.c.h.b16 %v54
  %v346 = vunpack.c.l.b16 %v55
  %v347 = vunpack.c.h.b16 %v55
  %v348 = vunpack.c.l.b16 %v56
  %v349 = vunpack.c.l.b16 %v57
  %v350 = vunpack.c.h.b16 %v57
  %v351 = vunpack.c.l.b16 %v58
  %v352 = vunpack.c.h.b16 %v58
  %v353 = vunpack.c.l.b16 %v59
  %v354 = vunpack.c.l.b16 %v60
  %v355 = vunpack.c.h.b16 %v60
  %v356 = vunpack.c.l.b16 %v61
  %v357 = vunpack.c.h.b16 %v61
  %v358 = vunpack.c.l.b16 %v62
  %v359 = vpack.c.b16 %v284, %v279
  %v360 = vpack.c.b16 %v285, %v280
  %v361 = vpack.c.b16 %v286, %v281
  %v362 = vpack.c.b16 %v287, %v282
  %v363 = vpack.c.b16 %v288, %v283
  %v364 = vpack.c.b16 %v294, %v289
  %v365 = vpack.c.b16 %v295, %v290
  %v366 = vpack.c.b16 %v296, %v291
  %v367 = vpack.c.b16 %v297, %v292
  %v368 = vpack.c.b16 %v298, %v293
  %v369 = vpack.c.b16 %v304, %v299
  %v370 = vpack.c.b16 %v305, %v300
  %v371 = vpack.c.b16 %v306, %v301
  %v372 = vpack.c.b16 %v307, %v302
  %v373 = vpack.c.b16 %v308, %v303
  %v374 = vpack.c.b16 %v314, %v309
  %v375 = vpack.c.b16 %v315, %v310
  %v376 = vpack.c.b16 %v316, %v311
  %v377 = vpack.c.b16 %v317, %v312
  %v378 = vpack.c.b16 %v318, %v313
  %v379 = vpack.c.b16 %v324, %v319
  %v380 = vpack.c.b16 %v325, %v320
  %v381 = vpack.c.b16 %v326, %v321
  %v382 = vpack.c.b16 %v327, %v322
  %v383 = vpack.c.b16 %v328, %v323
  %v384 = vpack.c.b16 %v334, %v329
  %v385 = vpack.c.b16 %v335, %v330
  %v386 = vpack.c.b16 %v336, %v331
  %v387 = vpack.c.b16 %v337, %v332
  %v388 = vpack.c.b16 %v338, %v333
  %v389 = vpack.c.b16 %v344, %v339
  %v390 = vpack.c.b16 %v345, %v340
  %v391 = vpack.c.b16 %v346, %v341
  %v392 = vpack.c.b16 %v347, %v342
  %v393 = vpack.c.b16 %v348, %v343
  %v394 = vpack.c.b16 %v354, %v349
  %v395 = vpack.c.b16 %v355, %v350
  %v396 = vpack.c.b16 %v356, %v351
  %v397 = vpack.c.b16 %v357, %v352
  %v398 = vpack.c.b16 %v358, %v353
  %v503 = vunpack.c.l.b16 %v63
  %v504 = vunpack.c.l.b16 %v64
  %v505 = vunpack.c.l.b16 %v65
  %v506 = vunpack.c.l.b16 %v66
  %v507 = vunpack.c.l.b16 %v67
  %v508 = vunpack.c.l.b16 %v68
  %v509 = vunpack.c.l.b16 %v69
  %v510 = vunpack.c.l.b16 %v70
  %v511 = vunpack.c.l.b16 %v71
  %v512 = vunpack.c.l.b16 %v72
  %v513 = vunpack.c.l.b16 %v73
  %v514 = vunpack.c.l.b16 %v74
  %v515 = vunpack.c.l.b16 %v75
  %v516 = vunpack.c.l.b16 %v76
  %v517 = vunpack.c.l.b16 %v77
  %v518 = vunpack.c.l.b16 %v78
  %v519 = vunpack.c.l.b16 %v79
  %v520 = vunpack.c.l.b16 %v80
  %v521 = vunpack.c.l.b16 %v81
  %v522 = vunpack.c.l.b16 %v82
  %v523 = vunpack.c.l.b16 %v83
  %v524 = vunpack.c.l.b16 %v84
  %v525 = vunpack.c.l.b16 %v85
  %v526 = vunpack.c.l.b16 %v86
  %v527 = vunpack.c.l.b16 %v87
  %v528 = vunpack.c.l.b16 %v88
  %v529 = vunpack.c.l.b16 %v89
  %v530 = vunpack.c.l.b16 %v90
  %v531 = vunpack.c.l.b16 %v91
  %v532 = vunpack.c.l.b16 %v92
  %v533 = vunpack.c.l.b16 %v93
  %v534 = vunpack.c.l.b16 %v94
  %v535 = vunpack.c.l.b16 %v95
  %v536 = vunpack.c.l.b16 %v96
  %v537 = vunpack.c.l.b16 %v97
  %v538 = vunpack.c.l.b16 %v98
  %v539 = vunpack.c.l.b16 %v99
  %v540 = vunpack.c.l.b16 %v100
  %v541 = vunpack.c.l.b16 %v101
  %v542 = vunpack.c.l.b16 %v102
  %v543 = vunpack.c.l.b16 %v103
  %v544 = vunpack.c.l.b16 %v104
  %v545 = vunpack.c.l.b16 %v105
  %v546 = vunpack.c.l.b16 %v106
  %v547 = vunpack.c.l.b16 %v107
  %v548 = vunpack.c.l.b16 %v108
  %v549 = vunpack.c.l.b16 %v109
  %v550 = vunpack.c.l.b16 %v110
  %v551 = vunpack.c.l.b16 %v111
  %v552 = vunpack.c.l.b16 %v112
  %v553 = vunpack.c.l.b16 %v113
  %v554 = vunpack.c.l.b16 %v114
  %v555 = vunpack.c.l.b16 %v115
  %v556 = vunpack.c.l.b16 %v116
  %v557 = vunpack.c.l.b16 %v117
  %v558 = vunpack.c.l.b16 %v118
  %v559 = vunpack.c.l.b16 %v119
  %v560 = vunpack.c.l.b16 %v120
  %v561 = vunpack.c.l.b16 %v121
  %v562 = vunpack.c.l.b16 %v122
  %v563 = vunpack.c.l.b16 %v123
  %v564 = vunpack.c.l.b16 %v124
  %v565 = vunpack.c.l.b16 %v125
  %v566 = vunpack.c.l.b16 %v126
  %v567 = vunpack.c.l.b16 %v127
  %v568 = vunpack.c.l.b16 %v128
  %v569 = vunpack.c.l.b16 %v129
  %v570 = vunpack.c.l.b16 %v130
  %v571 = vunpack.c.l.b16 %v131
  %v572 = vunpack.c.l.b16 %v132
  %v573 = vunpack.c.l.b16 %v133
  %v574 = vunpack.c.l.b16 %v134
  %v575 = vpack.c.b16 %v504, %v503
  %v576 = vpack.c.b16 %v506, %v505
  %v577 = vpack.c.b16 %v508, %v507
  %v578 = vpack.c.b16 %v510, %v509
  %v579 = vpack.c.b16 %v512, %v511
  %v580 = vpack.c.b16 %v514, %v513
  %v581 = vpack.c.b16 %v516, %v515
  %v582 = vpack.c.b16 %v518, %v517
  %v583 = vpack.c.b16 %v520, %v519
  %v584 = vpack.c.b16 %v522, %v521
  %v585 = vpack.c.b16 %v524, %v523
  %v586 = vpack.c.b16 %v526, %v525
  %v587 = vpack.c.b16 %v528, %v527
  %v588 = vpack.c.b16 %v530, %v529
  %v589 = vpack.c.b16 %v532, %v531
  %v590 = vpack.c.b16 %v534, %v533
  %v591 = vpack.c.b16 %v536, %v535
  %v592 = vpack.c.b16 %v538, %v537
  %v593 = vpack.c.b16 %v540, %v539
  %v594 = vpack.c.b16 %v542, %v541
  %v595 = vpack.c.b16 %v544, %v543
  %v596 = vpack.c.b16 %v546, %v545
  %v597 = vpack.c.b16 %v548, %v547
  %v598 = vpack.c.b16 %v550, %v549
  %v599 = vpack.c.b16 %v552, %v551
  %v600 = vpack.c.b16 %v554, %v553
  %v601 = vpack.c.b16 %v556, %v555
  %v602 = vpack.c.b16 %v558, %v557
  %v603 = vpack.c.b16 %v560, %v559
  %v604 = vpack.c.b16 %v562, %v561
  %v605 = vpack.c.b16 %v564, %v563
  %v606 = vpack.c.b16 %v566, %v565
  %v607 = vpack.c.b16 %v568, %v567
  %v608 = vpack.c.b16 %v570, %v569
  %v609 = vpack.c.b16 %v572, %v571
  %v610 = vpack.c.b16 %v574, %v573
  %vm647 = vcmask 523264
  %v649 = vsel %vm647, %v363, 0
  %v652 = vsel %vm647, %v368, 0
  %v655 = vsel %vm647, %v373, 0
  %v658 = vsel %vm647, %v378, 0
  %v661 = vsel %vm647, %v383, 0
  %v664 = vsel %vm647, %v388, 0
  %v667 = vsel %vm647, %v393, 0
  %v670 = vsel %vm647, %v398, 0
  %672 = vmatprep.subr.bf16.mxu0 0
  %673 = vmatpush1.bf16.msra.mxu0 %v575
  %674 = vmatprep.subr.bf16.mxu0 0
  %675 = vmatpush1.bf16.msra.mxu0 %v576
  %676 = vmatprep.subr.bf16.mxu0 0
  %677 = vmatpush1.bf16.msra.mxu0 %v577
  %678 = vmatprep.subr.bf16.mxu0 0
  %679 = vmatpush1.bf16.msra.mxu0 %v578
  %680 = vmatprep.subr.bf16.mxu0 0
  %681 = vmatpush1.bf16.msra.mxu0 %v579
  %682 = vmatprep.subr.bf16.mxu0 0
  %683 = vmatpush1.bf16.msra.mxu0 %v580
  %684 = vmatprep.subr.bf16.mxu0 0
  %685 = vmatpush1.bf16.msra.mxu0 %v581
  %686 = vmatprep.subr.bf16.mxu0 0
  %687 = vmatpush1.bf16.msra.mxu0 %v582
  %688 = vmatprep.subr.bf16.mxu0 0
  %689 = vmatpush1.bf16.msra.mxu0 %v583
  %690 = vmatprep.subr.bf16.mxu0 0
  %691 = vmatpush1.bf16.msra.mxu0 %v584
  %692 = vmatprep.subr.bf16.mxu0 0
  %693 = vmatpush1.bf16.msra.mxu0 %v585
  %694 = vmatprep.subr.bf16.mxu0 0
  %695 = vmatpush1.bf16.msra.mxu0 %v586
  %696 = vmatprep.subr.bf16.mxu0 0
  %697 = vmatpush1.bf16.msra.mxu0 %v587
  %698 = vmatprep.subr.bf16.mxu0 0
  %699 = vmatpush1.bf16.msra.mxu0 %v588
  %700 = vmatprep.subr.bf16.mxu0 0
  %701 = vmatpush1.bf16.msra.mxu0 %v589
  %702 = vmatprep.subr.bf16.mxu0 0
  %703 = vmatpush1.bf16.msra.mxu0 %v590
  %704 = vmatprep.mubr.bf16.mxu0 %v360
  %705 = vmatmul.mubr.bf16.gmra.mrb[0].mxu0 %v359
  %v706 = vpop.f32.mrb[0].mxu0
  %v707 = vadd.f32 %v154, %v706
  %v708 = vpop.f32.mrb[0].mxu0
  %v709 = vpop.f32.mrb[0].mxu0
  %v710 = vadd.f32 %v159, %v709
  %v711 = vpop.f32.mrb[0].mxu0
  %712 = vmatprep.mubr.bf16.mxu0 %v365
  %713 = vmatmul.mubr.bf16.gmra.mrb[0].mxu0 %v364
  %v714 = vpop.f32.mrb[0].mxu0
  %v715 = vadd.f32 %v164, %v714
  %v716 = vpop.f32.mrb[0].mxu0
  %v717 = vpop.f32.mrb[0].mxu0
  %v718 = vadd.f32 %v169, %v717
  %v719 = vpop.f32.mrb[0].mxu0
  %720 = vmatprep.mubr.bf16.mxu0 %v370
  %721 = vmatmul.mubr.bf16.gmra.mrb[0].mxu0 %v369
  %v722 = vpop.f32.mrb[0].mxu0
  %v723 = vadd.f32 %v174, %v722
  %v724 = vpop.f32.mrb[0].mxu0
  %v725 = vpop.f32.mrb[0].mxu0
  %v726 = vadd.f32 %v179, %v725
  %v727 = vpop.f32.mrb[0].mxu0
  %728 = vmatprep.mubr.bf16.mxu0 %v375
  %729 = vmatmul.mubr.bf16.gmra.mrb[0].mxu0 %v374
  %v730 = vpop.f32.mrb[0].mxu0
  %v731 = vadd.f32 %v184, %v730
  %v732 = vpop.f32.mrb[0].mxu0
  %v733 = vpop.f32.mrb[0].mxu0
  %v734 = vadd.f32 %v189, %v733
  %v735 = vpop.f32.mrb[0].mxu0
  %736 = vmatprep.mubr.bf16.mxu0 %v380
  %737 = vmatmul.mubr.bf16.gmra.mrb[0].mxu0 %v379
  %v738 = vpop.f32.mrb[0].mxu0
  %v739 = vadd.f32 %v194, %v738
  %v740 = vpop.f32.mrb[0].mxu0
  %v741 = vpop.f32.mrb[0].mxu0
  %v742 = vadd.f32 %v199, %v741
  %v743 = vpop.f32.mrb[0].mxu0
  %744 = vmatprep.mubr.bf16.mxu0 %v385
  %745 = vmatmul.mubr.bf16.gmra.mrb[0].mxu0 %v384
  %v746 = vpop.f32.mrb[0].mxu0
  %v747 = vadd.f32 %v204, %v746
  %v748 = vpop.f32.mrb[0].mxu0
  %v749 = vpop.f32.mrb[0].mxu0
  %v750 = vadd.f32 %v209, %v749
  %v751 = vpop.f32.mrb[0].mxu0
  %752 = vmatprep.mubr.bf16.mxu0 %v390
  %753 = vmatmul.mubr.bf16.gmra.mrb[0].mxu0 %v389
  %v754 = vpop.f32.mrb[0].mxu0
  %v755 = vadd.f32 %v214, %v754
  %v756 = vpop.f32.mrb[0].mxu0
  %v757 = vpop.f32.mrb[0].mxu0
  %v758 = vadd.f32 %v219, %v757
  %v759 = vpop.f32.mrb[0].mxu0
  %760 = vmatprep.mubr.bf16.mxu0 %v395
  %761 = vmatmul.mubr.bf16.gmra.mrb[0].mxu0 %v394
  %v762 = vpop.f32.mrb[0].mxu0
  %v763 = vadd.f32 %v224, %v762
  %v764 = vpop.f32.mrb[0].mxu0
  %v765 = vpop.f32.mrb[0].mxu0
  %v766 = vadd.f32 %v229, %v765
  %v767 = vpop.f32.mrb[0].mxu0
  %768 = vdwg.mxu0
  %769 = vmatprep.subr.bf16.mxu0 0
  %770 = vmatpush1.bf16.msra.mxu0 %v591
  %771 = vmatprep.subr.bf16.mxu0 0
  %772 = vmatpush1.bf16.msra.mxu0 %v592
  %773 = vmatprep.subr.bf16.mxu0 0
  %774 = vmatpush1.bf16.msra.mxu0 %v593
  %775 = vmatprep.subr.bf16.mxu0 0
  %776 = vmatpush1.bf16.msra.mxu0 %v594
  %777 = vmatprep.subr.bf16.mxu0 0
  %778 = vmatpush1.bf16.msra.mxu0 %v595
  %779 = vmatprep.subr.bf16.mxu0 0
  %780 = vmatpush1.bf16.msra.mxu0 %v596
  %781 = vmatprep.subr.bf16.mxu0 0
  %782 = vmatpush1.bf16.msra.mxu0 %v597
  %783 = vmatprep.subr.bf16.mxu0 0
  %784 = vmatpush1.bf16.msra.mxu0 %v598
  %785 = vmatprep.subr.bf16.mxu0 0
  %786 = vmatpush1.bf16.msra.mxu0 %v599
  %787 = vmatprep.subr.bf16.mxu0 0
  %788 = vmatpush1.bf16.msra.mxu0 %v600
  %789 = vmatprep.subr.bf16.mxu0 0
  %790 = vmatpush1.bf16.msra.mxu0 %v601
  %791 = vmatprep.subr.bf16.mxu0 0
  %792 = vmatpush1.bf16.msra.mxu0 %v602
  %793 = vmatprep.subr.bf16.mxu0 0
  %794 = vmatpush1.bf16.msra.mxu0 %v603
  %795 = vmatprep.subr.bf16.mxu0 0
  %796 = vmatpush1.bf16.msra.mxu0 %v604
  %797 = vmatprep.subr.bf16.mxu0 0
  %798 = vmatpush1.bf16.msra.mxu0 %v605
  %799 = vmatprep.subr.bf16.mxu0 0
  %800 = vmatpush1.bf16.msra.mxu0 %v606
  %801 = vmatprep.mubr.bf16.mxu0 %v362
  %802 = vmatmul.mubr.bf16.gmra.mrb[0].mxu0 %v361
  %v803 = vpop.f32.mrb[0].mxu0
  %v804 = vadd.f32 %v707, %v803
  %v805 = vpop.f32.mrb[0].mxu0
  %v806 = vpop.f32.mrb[0].mxu0
  %v807 = vadd.f32 %v710, %v806
  %v808 = vpop.f32.mrb[0].mxu0
  %809 = vmatprep.mubr.bf16.mxu0 %v367
  %810 = vmatmul.mubr.bf16.gmra.mrb[0].mxu0 %v366
  %v811 = vpop.f32.mrb[0].mxu0
  %v812 = vadd.f32 %v715, %v811
  %v813 = vpop.f32.mrb[0].mxu0
  %v814 = vpop.f32.mrb[0].mxu0
  %v815 = vadd.f32 %v718, %v814
  %v816 = vpop.f32.mrb[0].mxu0
  %817 = vmatprep.mubr.bf16.mxu0 %v372
  %818 = vmatmul.mubr.bf16.gmra.mrb[0].mxu0 %v371
  %v819 = vpop.f32.mrb[0].mxu0
  %v820 = vadd.f32 %v723, %v819
  %v821 = vpop.f32.mrb[0].mxu0
  %v822 = vpop.f32.mrb[0].mxu0
  %v823 = vadd.f32 %v726, %v822
  %v824 = vpop.f32.mrb[0].mxu0
  %825 = vmatprep.mubr.bf16.mxu0 %v377
  %826 = vmatmul.mubr.bf16.gmra.mrb[0].mxu0 %v376
  %v827 = vpop.f32.mrb[0].mxu0
  %v828 = vadd.f32 %v731, %v827
  %v829 = vpop.f32.mrb[0].mxu0
  %v830 = vpop.f32.mrb[0].mxu0
  %v831 = vadd.f32 %v734, %v830
  %v832 = vpop.f32.mrb[0].mxu0
  %833 = vmatprep.mubr.bf16.mxu0 %v382
  %834 = vmatmul.mubr.bf16.gmra.mrb[0].mxu0 %v381
  %v835 = vpop.f32.mrb[0].mxu0
  %v836 = vadd.f32 %v739, %v835
  %v837 = vpop.f32.mrb[0].mxu0
  %v838 = vpop.f32.mrb[0].mxu0
  %v839 = vadd.f32 %v742, %v838
  %v840 = vpop.f32.mrb[0].mxu0
  %841 = vmatprep.mubr.bf16.mxu0 %v387
  %842 = vmatmul.mubr.bf16.gmra.mrb[0].mxu0 %v386
  %v843 = vpop.f32.mrb[0].mxu0
  %v844 = vadd.f32 %v747, %v843
  %v845 = vpop.f32.mrb[0].mxu0
  %v846 = vpop.f32.mrb[0].mxu0
  %v847 = vadd.f32 %v750, %v846
  %v848 = vpop.f32.mrb[0].mxu0
  %849 = vmatprep.mubr.bf16.mxu0 %v392
  %850 = vmatmul.mubr.bf16.gmra.mrb[0].mxu0 %v391
  %v851 = vpop.f32.mrb[0].mxu0
  %v852 = vadd.f32 %v755, %v851
  %v853 = vpop.f32.mrb[0].mxu0
  %v854 = vpop.f32.mrb[0].mxu0
  %v855 = vadd.f32 %v758, %v854
  %v856 = vpop.f32.mrb[0].mxu0
  %857 = vmatprep.mubr.bf16.mxu0 %v397
  %858 = vmatmul.mubr.bf16.gmra.mrb[0].mxu0 %v396
  %v859 = vpop.f32.mrb[0].mxu0
  %v860 = vadd.f32 %v763, %v859
  %v861 = vpop.f32.mrb[0].mxu0
  %v862 = vpop.f32.mrb[0].mxu0
  %v863 = vadd.f32 %v766, %v862
  %v864 = vpop.f32.mrb[0].mxu0
  %865 = vdwg.mxu0
  %866 = vmatprep.subr.bf16.mxu0 0
  %867 = vmatpush1.bf16.msra.mxu0 %v607
  %868 = vmatprep.subr.bf16.mxu0 0
  %869 = vmatpush1.bf16.msra.mxu0 %v608
  %870 = vmatprep.subr.bf16.mxu0 0
  %871 = vmatpush1.bf16.msra.mxu0 %v609
  %872 = vmatprep.subr.bf16.mxu0 0
  %873 = vmatpush1.bf16.msra.mxu0 %v610
  %874 = vmatprep.subr.bf16.mxu0 0
  %875 = vmatpush1.bf16.msra.mxu0 0
  %876 = vmatprep.subr.bf16.mxu0 0
  %877 = vmatpush1.bf16.msra.mxu0 0
  %878 = vmatprep.subr.bf16.mxu0 0
  %879 = vmatpush1.bf16.msra.mxu0 0
  %880 = vmatprep.subr.bf16.mxu0 0
  %881 = vmatpush1.bf16.msra.mxu0 0
  %882 = vmatprep.subr.bf16.mxu0 0
  %883 = vmatpush1.bf16.msra.mxu0 0
  %884 = vmatprep.subr.bf16.mxu0 0
  %885 = vmatpush1.bf16.msra.mxu0 0
  %886 = vmatprep.subr.bf16.mxu0 0
  %887 = vmatpush1.bf16.msra.mxu0 0
  %888 = vmatprep.subr.bf16.mxu0 0
  %889 = vmatpush1.bf16.msra.mxu0 0
  %890 = vmatprep.subr.bf16.mxu0 0
  %891 = vmatpush1.bf16.msra.mxu0 0
  %892 = vmatprep.subr.bf16.mxu0 0
  %893 = vmatpush1.bf16.msra.mxu0 0
  %894 = vmatprep.subr.bf16.mxu0 0
  %895 = vmatpush1.bf16.msra.mxu0 0
  %896 = vmatprep.subr.bf16.mxu0 0
  %897 = vmatpush1.bf16.msra.mxu0 0
  %898 = vmatprep.mubr.bf16.mxu0 0
  %899 = vmatmul.mubr.bf16.gmra.mrb[0].mxu0 %v649
  %v900 = vpop.f32.mrb[0].mxu0
  %v901 = vadd.f32 %v804, %v900
  %v902 = vpop.f32.mrb[0].mxu0
  %v903 = vpop.f32.mrb[0].mxu0
  %v904 = vadd.f32 %v807, %v903
  %v905 = vpop.f32.mrb[0].mxu0
  %906 = vmatprep.mubr.bf16.mxu0 0
  %907 = vmatmul.mubr.bf16.gmra.mrb[0].mxu0 %v652
  %v908 = vpop.f32.mrb[0].mxu0
  %v909 = vadd.f32 %v812, %v908
  %v910 = vpop.f32.mrb[0].mxu0
  %v911 = vpop.f32.mrb[0].mxu0
  %v912 = vadd.f32 %v815, %v911
  %v913 = vpop.f32.mrb[0].mxu0
  %914 = vmatprep.mubr.bf16.mxu0 0
  %915 = vmatmul.mubr.bf16.gmra.mrb[0].mxu0 %v655
  %v916 = vpop.f32.mrb[0].mxu0
  %v917 = vadd.f32 %v820, %v916
  %v918 = vpop.f32.mrb[0].mxu0
  %v919 = vpop.f32.mrb[0].mxu0
  %v920 = vadd.f32 %v823, %v919
  %v921 = vpop.f32.mrb[0].mxu0
  %922 = vmatprep.mubr.bf16.mxu0 0
  %923 = vmatmul.mubr.bf16.gmra.mrb[0].mxu0 %v658
  %v924 = vpop.f32.mrb[0].mxu0
  %v925 = vadd.f32 %v828, %v924
  %v926 = vpop.f32.mrb[0].mxu0
  %v927 = vpop.f32.mrb[0].mxu0
  %v928 = vadd.f32 %v831, %v927
  %v929 = vpop.f32.mrb[0].mxu0
  %930 = vmatprep.mubr.bf16.mxu0 0
  %931 = vmatmul.mubr.bf16.gmra.mrb[0].mxu0 %v661
  %v932 = vpop.f32.mrb[0].mxu0
  %v933 = vadd.f32 %v836, %v932
  %v934 = vpop.f32.mrb[0].mxu0
  %v935 = vpop.f32.mrb[0].mxu0
  %v936 = vadd.f32 %v839, %v935
  %v937 = vpop.f32.mrb[0].mxu0
  %938 = vmatprep.mubr.bf16.mxu0 0
  %939 = vmatmul.mubr.bf16.gmra.mrb[0].mxu0 %v664
  %v940 = vpop.f32.mrb[0].mxu0
  %v941 = vadd.f32 %v844, %v940
  %v942 = vpop.f32.mrb[0].mxu0
  %v943 = vpop.f32.mrb[0].mxu0
  %v944 = vadd.f32 %v847, %v943
  %v945 = vpop.f32.mrb[0].mxu0
  %946 = vmatprep.mubr.bf16.mxu0 0
  %947 = vmatmul.mubr.bf16.gmra.mrb[0].mxu0 %v667
  %v948 = vpop.f32.mrb[0].mxu0
  %v949 = vadd.f32 %v852, %v948
  %v950 = vpop.f32.mrb[0].mxu0
  %v951 = vpop.f32.mrb[0].mxu0
  %v952 = vadd.f32 %v855, %v951
  %v953 = vpop.f32.mrb[0].mxu0
  %954 = vmatprep.mubr.bf16.mxu0 0
  %955 = vmatmul.mubr.bf16.gmra.mrb[0].mxu0 %v670
  %v956 = vpop.f32.mrb[0].mxu0
  %v957 = vadd.f32 %v860, %v956
  %v958 = vpop.f32.mrb[0].mxu0
  %v959 = vpop.f32.mrb[0].mxu0
  %v960 = vadd.f32 %v863, %v959
  %v961 = vpop.f32.mrb[0].mxu0
  %962 = vdwg.mxu0
  %v963 = vmax.f32 %v901, 0.0
  %v964 = vmax.f32 %v904, 0.0
  %v965 = vmax.f32 %v909, 0.0
  %v966 = vmax.f32 %v912, 0.0
  %v967 = vmax.f32 %v917, 0.0
  %v968 = vmax.f32 %v920, 0.0
  %v969 = vmax.f32 %v925, 0.0
  %v970 = vmax.f32 %v928, 0.0
  %v971 = vmax.f32 %v933, 0.0
  %v972 = vmax.f32 %v936, 0.0
  %v973 = vmax.f32 %v941, 0.0
  %v974 = vmax.f32 %v944, 0.0
  %v975 = vmax.f32 %v949, 0.0
  %v976 = vmax.f32 %v952, 0.0
  %v977 = vmax.f32 %v957, 0.0
  %v978 = vmax.f32 %v960, 0.0
  %v979 = vpack.c.bf16 %v964, %v963
  %v980 = vpack.c.bf16 %v966, %v965
  %v981 = vpack.c.bf16 %v968, %v967
  %v982 = vpack.c.bf16 %v970, %v969
  %v983 = vpack.c.bf16 %v972, %v971
  %v984 = vpack.c.bf16 %v974, %v973
  %v985 = vpack.c.bf16 %v976, %v975
  %v986 = vpack.c.bf16 %v978, %v977
  %v995 = vunpack.c.l.b16 %v979
  %v996 = vunpack.c.h.b16 %v979
  %v997 = vunpack.c.l.b16 %v980
  %v998 = vunpack.c.h.b16 %v980
  %v999 = vunpack.c.l.b16 %v981
  %v1000 = vunpack.c.h.b16 %v981
  %v1001 = vunpack.c.l.b16 %v982
  %v1002 = vunpack.c.h.b16 %v982
  %v1003 = vunpack.c.l.b16 %v983
  %v1004 = vunpack.c.h.b16 %v983
  %v1005 = vunpack.c.l.b16 %v984
  %v1006 = vunpack.c.h.b16 %v984
  %v1007 = vunpack.c.l.b16 %v985
  %v1008 = vunpack.c.h.b16 %v985
  %v1009 = vunpack.c.l.b16 %v986
  %v1010 = vunpack.c.h.b16 %v986
  %v1011 = vpack.c.b16 %v995, %v995
  %v1012 = vpack.c.b16 %v996, %v996
  %v1013 = vpack.c.b16 %v997, %v997
  %v1014 = vpack.c.b16 %v998, %v998
  %v1015 = vpack.c.b16 %v999, %v999
  %v1016 = vpack.c.b16 %v1000, %v1000
  %v1017 = vpack.c.b16 %v1001, %v1001
  %v1018 = vpack.c.b16 %v1002, %v1002
  %v1019 = vpack.c.b16 %v1003, %v1003
  %v1020 = vpack.c.b16 %v1004, %v1004
  %v1021 = vpack.c.b16 %v1005, %v1005
  %v1022 = vpack.c.b16 %v1006, %v1006
  %v1023 = vpack.c.b16 %v1007, %v1007
  %v1024 = vpack.c.b16 %v1008, %v1008
  %v1025 = vpack.c.b16 %v1009, %v1009
  %v1026 = vpack.c.b16 %v1010, %v1010
  %1043 = vst [vmem:[%s3] sm:$0xf] %v1011
  %1044 = vst [vmem:[%s3 + $0x4] sm:$0xf] %v1012
  %1045 = vst [vmem:[%s3 + $0x8] sm:$0xf] %v1013
  %1046 = vst [vmem:[%s3 + $0xc] sm:$0xf] %v1014
  %1047 = vst [vmem:[%s3 + $0x10] sm:$0xf] %v1015
  %1048 = vst [vmem:[%s3 + $0x14] sm:$0xf] %v1016
  %1049 = vst [vmem:[%s3 + $0x18] sm:$0xf] %v1017
  %1050 = vst [vmem:[%s3 + $0x1c] sm:$0xf] %v1018
  %1051 = vst [vmem:[%s3 + $0x20] sm:$0xf] %v1019
  %1052 = vst [vmem:[%s3 + $0x24] sm:$0xf] %v1020
  %1053 = vst [vmem:[%s3 + $0x28] sm:$0xf] %v1021
  %1054 = vst [vmem:[%s3 + $0x2c] sm:$0xf] %v1022
  %1055 = vst [vmem:[%s3 + $0x30] sm:$0xf] %v1023
  %1056 = vst [vmem:[%s3 + $0x34] sm:$0xf] %v1024
  %1057 = vst [vmem:[%s3 + $0x38] sm:$0xf] %v1025
  %1058 = vst [vmem:[%s3 + $0x3c] sm:$0xf] %v1026
  // Predicated region
  $region14: #{mmdvae_forward.16} parent=0 // pred_check
    _
  $region15: #{mmdvae_forward.16} parent=0 // pred_check_branch
    %1060 = sbr.rel (0) target = $region17
  $region16: #{mmdvae_forward.16} parent=0 // pred_region
    _
  $region17: #{mmdvae_forward.16} parent=0 // pred_fallthru
    _
  // Predicated region
  $region18: #{mmdvae_forward.16} parent=0 // pred_check
    _
  $region19: #{mmdvae_forward.16} parent=0 // pred_check_branch
    %1062 = sbr.rel (0) target = $region21
  $region20: #{mmdvae_forward.16} parent=0 // pred_region
    _
  $region21: #{mmdvae_forward.16} parent=0 // pred_fallthru
    _

// kernel: mmdvae_forward.17
$region0: #{mmdvae_forward.17}
  #allocation0 [shape = 'u32[]', space=smem, size = 0x4, offset = 0x4, fixed_abs, tag = 'smem constant byte address 0x4 - core index']
  #allocation1 [shape = 'u32[144,128]{1,0:T(1,128)}', space=vmem, size = 0x12000, scoped, tag = 'internal scratch']
  %s0 = inlined_call_operand.vmem [shape: bf16[64,288], index: 0, kind: input, shape index: {}]
  %s1 = inlined_call_operand.vmem [shape: bf16[288,128], index: 1, kind: input, shape index: {}]
  %s2 = inlined_call_operand.vmem [shape: f32[64,1], index: 2, kind: input, shape index: {}]
  %s3 = inlined_call_operand.vmem [shape: bf16[64,128], index: 3, kind: output, shape index: {}]
  %s4 = sld [smem:[#allocation0]]
  $region22: #{mmdvae_forward.17} parent=0
    _
  %s6 = ssub.s32 1, %s4
  %s7 = scalar_select 0, %s6, %s4
  // Predicated region
  $region2: #{mmdvae_forward.17} parent=0 // pred_check
    _
  $region3: #{mmdvae_forward.17} parent=0 // pred_check_branch
    %9 = sbr.rel (0) target = $region5
  $region4: #{mmdvae_forward.17} parent=0 // pred_region
    _
  $region5: #{mmdvae_forward.17} parent=0 // pred_fallthru
    _
  // Predicated region
  $region6: #{mmdvae_forward.17} parent=0 // pred_check
    _
  $region7: #{mmdvae_forward.17} parent=0 // pred_check_branch
    %11 = sbr.rel (0) target = $region9
  $region8: #{mmdvae_forward.17} parent=0 // pred_region
    _
  $region9: #{mmdvae_forward.17} parent=0 // pred_fallthru
    _
  // Predicated region
  $region10: #{mmdvae_forward.17} parent=0 // pred_check
    _
  $region11: #{mmdvae_forward.17} parent=0 // pred_check_branch
    %13 = sbr.rel (0) target = $region13
  $region12: #{mmdvae_forward.17} parent=0 // pred_region
    _
  $region13: #{mmdvae_forward.17} parent=0 // pred_fallthru
    _
  %v15 = vld [vmem:[%s0] sm:$0xff]
  %v16 = vld [vmem:[%s0 + $0x8] sm:$0xf]
  %v17 = vld [vmem:[%s0 + $0xc] sm:$0xff]
  %v18 = vld [vmem:[%s0 + $0x14] sm:$0xf]
  %v19 = vld [vmem:[%s0 + $0x18] sm:$0xff]
  %v20 = vld [vmem:[%s0 + $0x20] sm:$0xf]
  %v21 = vld [vmem:[%s0 + $0x24] sm:$0xff]
  %v22 = vld [vmem:[%s0 + $0x2c] sm:$0xf]
  %v23 = vld [vmem:[%s0 + $0x30] sm:$0xff]
  %v24 = vld [vmem:[%s0 + $0x38] sm:$0xf]
  %v25 = vld [vmem:[%s0 + $0x3c] sm:$0xff]
  %v26 = vld [vmem:[%s0 + $0x44] sm:$0xf]
  %v27 = vld [vmem:[%s0 + $0x48] sm:$0xff]
  %v28 = vld [vmem:[%s0 + $0x50] sm:$0xf]
  %v29 = vld [vmem:[%s0 + $0x54] sm:$0xff]
  %v30 = vld [vmem:[%s0 + $0x5c] sm:$0xf]
  %v31 = vld [vmem:[%s1] sm:$0xf]
  %v32 = vld [vmem:[%s1 + $0x4] sm:$0xf]
  %v33 = vld [vmem:[%s1 + $0x8] sm:$0xf]
  %v34 = vld [vmem:[%s1 + $0xc] sm:$0xf]
  %v35 = vld [vmem:[%s1 + $0x10] sm:$0xf]
  %v36 = vld [vmem:[%s1 + $0x14] sm:$0xf]
  %v37 = vld [vmem:[%s1 + $0x18] sm:$0xf]
  %v38 = vld [vmem:[%s1 + $0x1c] sm:$0xf]
  %v39 = vld [vmem:[%s1 + $0x20] sm:$0xf]
  %v40 = vld [vmem:[%s1 + $0x24] sm:$0xf]
  %v41 = vld [vmem:[%s1 + $0x28] sm:$0xf]
  %v42 = vld [vmem:[%s1 + $0x2c] sm:$0xf]
  %v43 = vld [vmem:[%s1 + $0x30] sm:$0xf]
  %v44 = vld [vmem:[%s1 + $0x34] sm:$0xf]
  %v45 = vld [vmem:[%s1 + $0x38] sm:$0xf]
  %v46 = vld [vmem:[%s1 + $0x3c] sm:$0xf]
  %v47 = vld [vmem:[%s1 + $0x40] sm:$0xf]
  %v48 = vld [vmem:[%s1 + $0x44] sm:$0xf]
  %v49 = vld [vmem:[%s1 + $0x48] sm:$0xf]
  %v50 = vld [vmem:[%s1 + $0x4c] sm:$0xf]
  %v51 = vld [vmem:[%s1 + $0x50] sm:$0xf]
  %v52 = vld [vmem:[%s1 + $0x54] sm:$0xf]
  %v53 = vld [vmem:[%s1 + $0x58] sm:$0xf]
  %v54 = vld [vmem:[%s1 + $0x5c] sm:$0xf]
  %v55 = vld [vmem:[%s1 + $0x60] sm:$0xf]
  %v56 = vld [vmem:[%s1 + $0x64] sm:$0xf]
  %v57 = vld [vmem:[%s1 + $0x68] sm:$0xf]
  %v58 = vld [vmem:[%s1 + $0x6c] sm:$0xf]
  %v59 = vld [vmem:[%s1 + $0x70] sm:$0xf]
  %v60 = vld [vmem:[%s1 + $0x74] sm:$0xf]
  %v61 = vld [vmem:[%s1 + $0x78] sm:$0xf]
  %v62 = vld [vmem:[%s1 + $0x7c] sm:$0xf]
  %v63 = vld [vmem:[%s1 + $0x80] sm:$0xf]
  %v64 = vld [vmem:[%s1 + $0x84] sm:$0xf]
  %v65 = vld [vmem:[%s1 + $0x88] sm:$0xf]
  %v66 = vld [vmem:[%s1 + $0x8c] sm:$0xf]
  %v67 = vld [vmem:[%s2] sm:$0xff]
  %v68 = vld [vmem:[%s2 + $0x8] sm:$0xff]
  %v69 = vld [vmem:[%s2 + $0x10] sm:$0xff]
  %v70 = vld [vmem:[%s2 + $0x18] sm:$0xff]
  %v71 = vld [vmem:[%s2 + $0x20] sm:$0xff]
  %v72 = vld [vmem:[%s2 + $0x28] sm:$0xff]
  %v73 = vld [vmem:[%s2 + $0x30] sm:$0xff]
  %v74 = vld [vmem:[%s2 + $0x38] sm:$0xff]
  %76 = vset.pattern.permute.xlu0 0
  %77 = vperm.xlu0 %76, %v67
  %v78 = vpop.permute.xlu0 %77
  %81 = vset.pattern.permute.xlu0 0
  %82 = vperm.xlu0 %81, %v68
  %v83 = vpop.permute.xlu0 %82
  %86 = vset.pattern.permute.xlu0 0
  %87 = vperm.xlu0 %86, %v69
  %v88 = vpop.permute.xlu0 %87
  %91 = vset.pattern.permute.xlu0 0
  %92 = vperm.xlu0 %91, %v70
  %v93 = vpop.permute.xlu0 %92
  %96 = vset.pattern.permute.xlu0 0
  %97 = vperm.xlu0 %96, %v71
  %v98 = vpop.permute.xlu0 %97
  %101 = vset.pattern.permute.xlu0 0
  %102 = vperm.xlu0 %101, %v72
  %v103 = vpop.permute.xlu0 %102
  %106 = vset.pattern.permute.xlu0 0
  %107 = vperm.xlu0 %106, %v73
  %v108 = vpop.permute.xlu0 %107
  %111 = vset.pattern.permute.xlu0 0
  %112 = vperm.xlu0 %111, %v74
  %v113 = vpop.permute.xlu0 %112
  %v131 = vunpack.c.l.b16 %v15
  %v132 = vunpack.c.h.b16 %v15
  %v133 = vunpack.c.l.b16 %v16
  %v134 = vunpack.c.l.b16 %v17
  %v135 = vunpack.c.h.b16 %v17
  %v136 = vunpack.c.l.b16 %v18
  %v137 = vunpack.c.l.b16 %v19
  %v138 = vunpack.c.h.b16 %v19
  %v139 = vunpack.c.l.b16 %v20
  %v140 = vunpack.c.l.b16 %v21
  %v141 = vunpack.c.h.b16 %v21
  %v142 = vunpack.c.l.b16 %v22
  %v143 = vunpack.c.l.b16 %v23
  %v144 = vunpack.c.h.b16 %v23
  %v145 = vunpack.c.l.b16 %v24
  %v146 = vunpack.c.l.b16 %v25
  %v147 = vunpack.c.h.b16 %v25
  %v148 = vunpack.c.l.b16 %v26
  %v149 = vunpack.c.l.b16 %v27
  %v150 = vunpack.c.h.b16 %v27
  %v151 = vunpack.c.l.b16 %v28
  %v152 = vunpack.c.l.b16 %v29
  %v153 = vunpack.c.h.b16 %v29
  %v154 = vunpack.c.l.b16 %v30
  %v155 = vpack.c.b16 %v134, %v131
  %v156 = vpack.c.b16 %v135, %v132
  %v157 = vpack.c.b16 %v136, %v133
  %v158 = vpack.c.b16 %v140, %v137
  %v159 = vpack.c.b16 %v141, %v138
  %v160 = vpack.c.b16 %v142, %v139
  %v161 = vpack.c.b16 %v146, %v143
  %v162 = vpack.c.b16 %v147, %v144
  %v163 = vpack.c.b16 %v148, %v145
  %v164 = vpack.c.b16 %v152, %v149
  %v165 = vpack.c.b16 %v153, %v150
  %v166 = vpack.c.b16 %v154, %v151
  %v211 = vunpack.c.l.b16 %v31
  %v212 = vunpack.c.l.b16 %v32
  %v213 = vunpack.c.l.b16 %v33
  %v214 = vunpack.c.l.b16 %v34
  %v215 = vunpack.c.l.b16 %v35
  %v216 = vunpack.c.l.b16 %v36
  %v217 = vunpack.c.l.b16 %v37
  %v218 = vunpack.c.l.b16 %v38
  %v219 = vunpack.c.l.b16 %v39
  %v220 = vunpack.c.l.b16 %v40
  %v221 = vunpack.c.l.b16 %v41
  %v222 = vunpack.c.l.b16 %v42
  %v223 = vunpack.c.l.b16 %v43
  %v224 = vunpack.c.l.b16 %v44
  %v225 = vunpack.c.l.b16 %v45
  %v226 = vunpack.c.l.b16 %v46
  %v227 = vunpack.c.l.b16 %v47
  %v228 = vunpack.c.l.b16 %v48
  %v229 = vunpack.c.l.b16 %v49
  %v230 = vunpack.c.l.b16 %v50
  %v231 = vunpack.c.l.b16 %v51
  %v232 = vunpack.c.l.b16 %v52
  %v233 = vunpack.c.l.b16 %v53
  %v234 = vunpack.c.l.b16 %v54
  %v235 = vunpack.c.l.b16 %v55
  %v236 = vunpack.c.l.b16 %v56
  %v237 = vunpack.c.l.b16 %v57
  %v238 = vunpack.c.l.b16 %v58
  %v239 = vunpack.c.l.b16 %v59
  %v240 = vunpack.c.l.b16 %v60
  %v241 = vunpack.c.l.b16 %v61
  %v242 = vunpack.c.l.b16 %v62
  %v243 = vunpack.c.l.b16 %v63
  %v244 = vunpack.c.l.b16 %v64
  %v245 = vunpack.c.l.b16 %v65
  %v246 = vunpack.c.l.b16 %v66
  %v247 = vpack.c.b16 %v212, %v211
  %v248 = vpack.c.b16 %v214, %v213
  %v249 = vpack.c.b16 %v216, %v215
  %v250 = vpack.c.b16 %v218, %v217
  %v251 = vpack.c.b16 %v220, %v219
  %v252 = vpack.c.b16 %v222, %v221
  %v253 = vpack.c.b16 %v224, %v223
  %v254 = vpack.c.b16 %v226, %v225
  %v255 = vpack.c.b16 %v228, %v227
  %v256 = vpack.c.b16 %v230, %v229
  %v257 = vpack.c.b16 %v232, %v231
  %v258 = vpack.c.b16 %v234, %v233
  %v259 = vpack.c.b16 %v236, %v235
  %v260 = vpack.c.b16 %v238, %v237
  %v261 = vpack.c.b16 %v240, %v239
  %v262 = vpack.c.b16 %v242, %v241
  %v263 = vpack.c.b16 %v244, %v243
  %v264 = vpack.c.b16 %v246, %v245
  %vm283 = vcmask 261120
  %v285 = vsel %vm283, %v157, 0
  %v288 = vsel %vm283, %v160, 0
  %v291 = vsel %vm283, %v163, 0
  %v294 = vsel %vm283, %v166, 0
  %296 = vmatprep.subr.bf16.mxu0 0
  %297 = vmatpush1.bf16.msra.mxu0 %v247
  %298 = vmatprep.subr.bf16.mxu0 0
  %299 = vmatpush1.bf16.msra.mxu0 %v248
  %300 = vmatprep.subr.bf16.mxu0 0
  %301 = vmatpush1.bf16.msra.mxu0 %v249
  %302 = vmatprep.subr.bf16.mxu0 0
  %303 = vmatpush1.bf16.msra.mxu0 %v250
  %304 = vmatprep.subr.bf16.mxu0 0
  %305 = vmatpush1.bf16.msra.mxu0 %v251
  %306 = vmatprep.subr.bf16.mxu0 0
  %307 = vmatpush1.bf16.msra.mxu0 %v252
  %308 = vmatprep.subr.bf16.mxu0 0
  %309 = vmatpush1.bf16.msra.mxu0 %v253
  %310 = vmatprep.subr.bf16.mxu0 0
  %311 = vmatpush1.bf16.msra.mxu0 %v254
  %312 = vmatprep.subr.bf16.mxu0 0
  %313 = vmatpush1.bf16.msra.mxu0 %v255
  %314 = vmatprep.subr.bf16.mxu0 0
  %315 = vmatpush1.bf16.msra.mxu0 %v256
  %316 = vmatprep.subr.bf16.mxu0 0
  %317 = vmatpush1.bf16.msra.mxu0 %v257
  %318 = vmatprep.subr.bf16.mxu0 0
  %319 = vmatpush1.bf16.msra.mxu0 %v258
  %320 = vmatprep.subr.bf16.mxu0 0
  %321 = vmatpush1.bf16.msra.mxu0 %v259
  %322 = vmatprep.subr.bf16.mxu0 0
  %323 = vmatpush1.bf16.msra.mxu0 %v260
  %324 = vmatprep.subr.bf16.mxu0 0
  %325 = vmatpush1.bf16.msra.mxu0 %v261
  %326 = vmatprep.subr.bf16.mxu0 0
  %327 = vmatpush1.bf16.msra.mxu0 %v262
  %328 = vmatprep.mubr.bf16.mxu0 %v156
  %329 = vmatmul.mubr.bf16.gmra.mrb[0].mxu0 %v155
  %v330 = vpop.f32.mrb[0].mxu0
  %v331 = vadd.f32 %v78, %v330
  %v332 = vpop.f32.mrb[0].mxu0
  %v333 = vpop.f32.mrb[0].mxu0
  %v334 = vadd.f32 %v83, %v333
  %v335 = vpop.f32.mrb[0].mxu0
  %336 = vmatprep.mubr.bf16.mxu0 %v159
  %337 = vmatmul.mubr.bf16.gmra.mrb[0].mxu0 %v158
  %v338 = vpop.f32.mrb[0].mxu0
  %v339 = vadd.f32 %v88, %v338
  %v340 = vpop.f32.mrb[0].mxu0
  %v341 = vpop.f32.mrb[0].mxu0
  %v342 = vadd.f32 %v93, %v341
  %v343 = vpop.f32.mrb[0].mxu0
  %344 = vmatprep.mubr.bf16.mxu0 %v162
  %345 = vmatmul.mubr.bf16.gmra.mrb[0].mxu0 %v161
  %v346 = vpop.f32.mrb[0].mxu0
  %v347 = vadd.f32 %v98, %v346
  %v348 = vpop.f32.mrb[0].mxu0
  %v349 = vpop.f32.mrb[0].mxu0
  %v350 = vadd.f32 %v103, %v349
  %v351 = vpop.f32.mrb[0].mxu0
  %352 = vmatprep.mubr.bf16.mxu0 %v165
  %353 = vmatmul.mubr.bf16.gmra.mrb[0].mxu0 %v164
  %v354 = vpop.f32.mrb[0].mxu0
  %v355 = vadd.f32 %v108, %v354
  %v356 = vpop.f32.mrb[0].mxu0
  %v357 = vpop.f32.mrb[0].mxu0
  %v358 = vadd.f32 %v113, %v357
  %v359 = vpop.f32.mrb[0].mxu0
  %360 = vdwg.mxu0
  %361 = vmatprep.subr.bf16.mxu0 0
  %362 = vmatpush1.bf16.msra.mxu0 %v263
  %363 = vmatprep.subr.bf16.mxu0 0
  %364 = vmatpush1.bf16.msra.mxu0 %v264
  %365 = vmatprep.subr.bf16.mxu0 0
  %366 = vmatpush1.bf16.msra.mxu0 0
  %367 = vmatprep.subr.bf16.mxu0 0
  %368 = vmatpush1.bf16.msra.mxu0 0
  %369 = vmatprep.subr.bf16.mxu0 0
  %370 = vmatpush1.bf16.msra.mxu0 0
  %371 = vmatprep.subr.bf16.mxu0 0
  %372 = vmatpush1.bf16.msra.mxu0 0
  %373 = vmatprep.subr.bf16.mxu0 0
  %374 = vmatpush1.bf16.msra.mxu0 0
  %375 = vmatprep.subr.bf16.mxu0 0
  %376 = vmatpush1.bf16.msra.mxu0 0
  %377 = vmatprep.subr.bf16.mxu0 0
  %378 = vmatpush1.bf16.msra.mxu0 0
  %379 = vmatprep.subr.bf16.mxu0 0
  %380 = vmatpush1.bf16.msra.mxu0 0
  %381 = vmatprep.subr.bf16.mxu0 0
  %382 = vmatpush1.bf16.msra.mxu0 0
  %383 = vmatprep.subr.bf16.mxu0 0
  %384 = vmatpush1.bf16.msra.mxu0 0
  %385 = vmatprep.subr.bf16.mxu0 0
  %386 = vmatpush1.bf16.msra.mxu0 0
  %387 = vmatprep.subr.bf16.mxu0 0
  %388 = vmatpush1.bf16.msra.mxu0 0
  %389 = vmatprep.subr.bf16.mxu0 0
  %390 = vmatpush1.bf16.msra.mxu0 0
  %391 = vmatprep.subr.bf16.mxu0 0
  %392 = vmatpush1.bf16.msra.mxu0 0
  %393 = vmatprep.mubr.bf16.mxu0 0
  %394 = vmatmul.mubr.bf16.gmra.mrb[0].mxu0 %v285
  %v395 = vpop.f32.mrb[0].mxu0
  %v396 = vadd.f32 %v331, %v395
  %v397 = vpop.f32.mrb[0].mxu0
  %v398 = vpop.f32.mrb[0].mxu0
  %v399 = vadd.f32 %v334, %v398
  %v400 = vpop.f32.mrb[0].mxu0
  %401 = vmatprep.mubr.bf16.mxu0 0
  %402 = vmatmul.mubr.bf16.gmra.mrb[0].mxu0 %v288
  %v403 = vpop.f32.mrb[0].mxu0
  %v404 = vadd.f32 %v339, %v403
  %v405 = vpop.f32.mrb[0].mxu0
  %v406 = vpop.f32.mrb[0].mxu0
  %v407 = vadd.f32 %v342, %v406
  %v408 = vpop.f32.mrb[0].mxu0
  %409 = vmatprep.mubr.bf16.mxu0 0
  %410 = vmatmul.mubr.bf16.gmra.mrb[0].mxu0 %v291
  %v411 = vpop.f32.mrb[0].mxu0
  %v412 = vadd.f32 %v347, %v411
  %v413 = vpop.f32.mrb[0].mxu0
  %v414 = vpop.f32.mrb[0].mxu0
  %v415 = vadd.f32 %v350, %v414
  %v416 = vpop.f32.mrb[0].mxu0
  %417 = vmatprep.mubr.bf16.mxu0 0
  %418 = vmatmul.mubr.bf16.gmra.mrb[0].mxu0 %v294
  %v419 = vpop.f32.mrb[0].mxu0
  %v420 = vadd.f32 %v355, %v419
  %v421 = vpop.f32.mrb[0].mxu0
  %v422 = vpop.f32.mrb[0].mxu0
  %v423 = vadd.f32 %v358, %v422
  %v424 = vpop.f32.mrb[0].mxu0
  %425 = vdwg.mxu0
  %v426 = vmax.f32 %v396, 0.0
  %v427 = vmax.f32 %v399, 0.0
  %v428 = vmax.f32 %v404, 0.0
  %v429 = vmax.f32 %v407, 0.0
  %v430 = vmax.f32 %v412, 0.0
  %v431 = vmax.f32 %v415, 0.0
  %v432 = vmax.f32 %v420, 0.0
  %v433 = vmax.f32 %v423, 0.0
  %v434 = vpack.c.bf16 %v427, %v426
  %v435 = vpack.c.bf16 %v429, %v428
  %v436 = vpack.c.bf16 %v431, %v430
  %v437 = vpack.c.bf16 %v433, %v432
  %v442 = vunpack.c.l.b16 %v434
  %v443 = vunpack.c.h.b16 %v434
  %v444 = vunpack.c.l.b16 %v435
  %v445 = vunpack.c.h.b16 %v435
  %v446 = vunpack.c.l.b16 %v436
  %v447 = vunpack.c.h.b16 %v436
  %v448 = vunpack.c.l.b16 %v437
  %v449 = vunpack.c.h.b16 %v437
  %v450 = vpack.c.b16 %v442, %v442
  %v451 = vpack.c.b16 %v443, %v443
  %v452 = vpack.c.b16 %v444, %v444
  %v453 = vpack.c.b16 %v445, %v445
  %v454 = vpack.c.b16 %v446, %v446
  %v455 = vpack.c.b16 %v447, %v447
  %v456 = vpack.c.b16 %v448, %v448
  %v457 = vpack.c.b16 %v449, %v449
  %466 = vst [vmem:[%s3] sm:$0xf] %v450
  %467 = vst [vmem:[%s3 + $0x4] sm:$0xf] %v451
  %468 = vst [vmem:[%s3 + $0x8] sm:$0xf] %v452
  %469 = vst [vmem:[%s3 + $0xc] sm:$0xf] %v453
  %470 = vst [vmem:[%s3 + $0x10] sm:$0xf] %v454
  %471 = vst [vmem:[%s3 + $0x14] sm:$0xf] %v455
  %472 = vst [vmem:[%s3 + $0x18] sm:$0xf] %v456
  %473 = vst [vmem:[%s3 + $0x1c] sm:$0xf] %v457
  // Predicated region
  $region14: #{mmdvae_forward.17} parent=0 // pred_check
    _
  $region15: #{mmdvae_forward.17} parent=0 // pred_check_branch
    %475 = sbr.rel (0) target = $region17
  $region16: #{mmdvae_forward.17} parent=0 // pred_region
    _
  $region17: #{mmdvae_forward.17} parent=0 // pred_fallthru
    _
  // Predicated region
  $region18: #{mmdvae_forward.17} parent=0 // pred_check
    _
  $region19: #{mmdvae_forward.17} parent=0 // pred_check_branch
    %477 = sbr.rel (0) target = $region21
  $region20: #{mmdvae_forward.17} parent=0 // pred_region
    _
  $region21: #{mmdvae_forward.17} parent=0 // pred_fallthru
    _

// kernel: mmdvae_forward.18
$region0: #{mmdvae_forward.18}
  #allocation0 [shape = 'u32[]', space=smem, size = 0x4, offset = 0x4, fixed_abs, tag = 'smem constant byte address 0x4 - core index']
  #allocation1 [shape = 'u32[144,128]{1,0:T(1,128)}', space=vmem, size = 0x12000, scoped, tag = 'internal scratch']
  %s0 = inlined_call_operand.vmem [shape: bf16[32,144], index: 0, kind: input, shape index: {}]
  %s1 = inlined_call_operand.vmem [shape: bf16[144,512], index: 1, kind: input, shape index: {}]
  %s2 = inlined_call_operand.vmem [shape: f32[32,1], index: 2, kind: input, shape index: {}]
  %s3 = inlined_call_operand.vmem [shape: bf16[32,512], index: 3, kind: output, shape index: {}]
  %s4 = sld [smem:[#allocation0]]
  $region22: #{mmdvae_forward.18} parent=0
    _
  %s6 = ssub.s32 1, %s4
  %s7 = scalar_select 0, %s6, %s4
  // Predicated region
  $region2: #{mmdvae_forward.18} parent=0 // pred_check
    _
  $region3: #{mmdvae_forward.18} parent=0 // pred_check_branch
    %9 = sbr.rel (0) target = $region5
  $region4: #{mmdvae_forward.18} parent=0 // pred_region
    _
  $region5: #{mmdvae_forward.18} parent=0 // pred_fallthru
    _
  // Predicated region
  $region6: #{mmdvae_forward.18} parent=0 // pred_check
    _
  $region7: #{mmdvae_forward.18} parent=0 // pred_check_branch
    %11 = sbr.rel (0) target = $region9
  $region8: #{mmdvae_forward.18} parent=0 // pred_region
    _
  $region9: #{mmdvae_forward.18} parent=0 // pred_fallthru
    _
  // Predicated region
  $region10: #{mmdvae_forward.18} parent=0 // pred_check
    _
  $region11: #{mmdvae_forward.18} parent=0 // pred_check_branch
    %13 = sbr.rel (0) target = $region13
  $region12: #{mmdvae_forward.18} parent=0 // pred_region
    _
  $region13: #{mmdvae_forward.18} parent=0 // pred_fallthru
    _
  %v15 = vld [vmem:[%s0] sm:$0xff]
  %v16 = vld [vmem:[%s0 + $0x8] sm:$0xff]
  %v17 = vld [vmem:[%s0 + $0x10] sm:$0xff]
  %v18 = vld [vmem:[%s0 + $0x18] sm:$0xff]
  %v19 = vld [vmem:[%s1] sm:$0xff]
  %v20 = vld [vmem:[%s1 + $0x8] sm:$0xff]
  %v21 = vld [vmem:[%s1 + $0x10] sm:$0xff]
  %v22 = vld [vmem:[%s1 + $0x18] sm:$0xff]
  %v23 = vld [vmem:[%s1 + $0x20] sm:$0xff]
  %v24 = vld [vmem:[%s1 + $0x28] sm:$0xff]
  %v25 = vld [vmem:[%s1 + $0x30] sm:$0xff]
  %v26 = vld [vmem:[%s1 + $0x38] sm:$0xff]
  %v27 = vld [vmem:[%s1 + $0x40] sm:$0xff]
  %v28 = vld [vmem:[%s1 + $0x48] sm:$0xff]
  %v29 = vld [vmem:[%s1 + $0x50] sm:$0xff]
  %v30 = vld [vmem:[%s1 + $0x58] sm:$0xff]
  %v31 = vld [vmem:[%s1 + $0x60] sm:$0xff]
  %v32 = vld [vmem:[%s1 + $0x68] sm:$0xff]
  %v33 = vld [vmem:[%s1 + $0x70] sm:$0xff]
  %v34 = vld [vmem:[%s1 + $0x78] sm:$0xff]
  %v35 = vld [vmem:[%s1 + $0x80] sm:$0xff]
  %v36 = vld [vmem:[%s1 + $0x88] sm:$0xff]
  %v37 = vld [vmem:[%s1 + $0x90] sm:$0xff]
  %v38 = vld [vmem:[%s1 + $0x98] sm:$0xff]
  %v39 = vld [vmem:[%s1 + $0xa0] sm:$0xff]
  %v40 = vld [vmem:[%s1 + $0xa8] sm:$0xff]
  %v41 = vld [vmem:[%s1 + $0xb0] sm:$0xff]
  %v42 = vld [vmem:[%s1 + $0xb8] sm:$0xff]
  %v43 = vld [vmem:[%s1 + $0xc0] sm:$0xff]
  %v44 = vld [vmem:[%s1 + $0xc8] sm:$0xff]
  %v45 = vld [vmem:[%s1 + $0xd0] sm:$0xff]
  %v46 = vld [vmem:[%s1 + $0xd8] sm:$0xff]
  %v47 = vld [vmem:[%s1 + $0xe0] sm:$0xff]
  %v48 = vld [vmem:[%s1 + $0xe8] sm:$0xff]
  %v49 = vld [vmem:[%s1 + $0xf0] sm:$0xff]
  %v50 = vld [vmem:[%s1 + $0xf8] sm:$0xff]
  %v51 = vld [vmem:[%s1 + $0x100] sm:$0xff]
  %v52 = vld [vmem:[%s1 + $0x108] sm:$0xff]
  %v53 = vld [vmem:[%s1 + $0x110] sm:$0xff]
  %v54 = vld [vmem:[%s1 + $0x118] sm:$0xff]
  %v55 = vld [vmem:[%s2] sm:$0xff]
  %v56 = vld [vmem:[%s2 + $0x8] sm:$0xff]
  %v57 = vld [vmem:[%s2 + $0x10] sm:$0xff]
  %v58 = vld [vmem:[%s2 + $0x18] sm:$0xff]
  %60 = vset.pattern.permute.xlu0 0
  %61 = vperm.xlu0 %60, %v55
  %v62 = vpop.permute.xlu0 %61
  %65 = vset.pattern.permute.xlu0 0
  %66 = vperm.xlu0 %65, %v56
  %v67 = vpop.permute.xlu0 %66
  %70 = vset.pattern.permute.xlu0 0
  %71 = vperm.xlu0 %70, %v57
  %v72 = vpop.permute.xlu0 %71
  %75 = vset.pattern.permute.xlu0 0
  %76 = vperm.xlu0 %75, %v58
  %v77 = vpop.permute.xlu0 %76
  %v83 = vunpack.c.l.b16 %v15
  %v84 = vunpack.c.h.b16 %v15
  %v85 = vunpack.c.l.b16 %v16
  %v86 = vunpack.c.h.b16 %v16
  %v87 = vunpack.c.l.b16 %v17
  %v88 = vunpack.c.h.b16 %v17
  %v89 = vunpack.c.l.b16 %v18
  %v90 = vunpack.c.h.b16 %v18
  %v91 = vpack.c.b16 %v85, %v83
  %v92 = vpack.c.b16 %v86, %v84
  %v93 = vpack.c.b16 %v89, %v87
  %v94 = vpack.c.b16 %v90, %v88
  %v133 = vunpack.c.l.b16 %v19
  %v134 = vunpack.c.h.b16 %v19
  %v135 = vunpack.c.l.b16 %v20
  %v136 = vunpack.c.h.b16 %v20
  %v137 = vunpack.c.l.b16 %v21
  %v138 = vunpack.c.h.b16 %v21
  %v139 = vunpack.c.l.b16 %v22
  %v140 = vunpack.c.h.b16 %v22
  %v141 = vunpack.c.l.b16 %v23
  %v142 = vunpack.c.h.b16 %v23
  %v143 = vunpack.c.l.b16 %v24
  %v144 = vunpack.c.h.b16 %v24
  %v145 = vunpack.c.l.b16 %v25
  %v146 = vunpack.c.h.b16 %v25
  %v147 = vunpack.c.l.b16 %v26
  %v148 = vunpack.c.h.b16 %v26
  %v149 = vunpack.c.l.b16 %v27
  %v150 = vunpack.c.h.b16 %v27
  %v151 = vunpack.c.l.b16 %v28
  %v152 = vunpack.c.h.b16 %v28
  %v153 = vunpack.c.l.b16 %v29
  %v154 = vunpack.c.h.b16 %v29
  %v155 = vunpack.c.l.b16 %v30
  %v156 = vunpack.c.h.b16 %v30
  %v157 = vunpack.c.l.b16 %v31
  %v158 = vunpack.c.h.b16 %v31
  %v159 = vunpack.c.l.b16 %v32
  %v160 = vunpack.c.h.b16 %v32
  %v161 = vunpack.c.l.b16 %v33
  %v162 = vunpack.c.h.b16 %v33
  %v163 = vunpack.c.l.b16 %v34
  %v164 = vunpack.c.h.b16 %v34
  %v165 = vunpack.c.l.b16 %v35
  %v166 = vunpack.c.h.b16 %v35
  %v167 = vunpack.c.l.b16 %v36
  %v168 = vunpack.c.h.b16 %v36
  %v169 = vunpack.c.l.b16 %v37
  %v170 = vunpack.c.h.b16 %v37
  %v171 = vunpack.c.l.b16 %v38
  %v172 = vunpack.c.h.b16 %v38
  %v173 = vunpack.c.l.b16 %v39
  %v174 = vunpack.c.h.b16 %v39
  %v175 = vunpack.c.l.b16 %v40
  %v176 = vunpack.c.h.b16 %v40
  %v177 = vunpack.c.l.b16 %v41
  %v178 = vunpack.c.h.b16 %v41
  %v179 = vunpack.c.l.b16 %v42
  %v180 = vunpack.c.h.b16 %v42
  %v181 = vunpack.c.l.b16 %v43
  %v182 = vunpack.c.h.b16 %v43
  %v183 = vunpack.c.l.b16 %v44
  %v184 = vunpack.c.h.b16 %v44
  %v185 = vunpack.c.l.b16 %v45
  %v186 = vunpack.c.h.b16 %v45
  %v187 = vunpack.c.l.b16 %v46
  %v188 = vunpack.c.h.b16 %v46
  %v189 = vunpack.c.l.b16 %v47
  %v190 = vunpack.c.h.b16 %v47
  %v191 = vunpack.c.l.b16 %v48
  %v192 = vunpack.c.h.b16 %v48
  %v193 = vunpack.c.l.b16 %v49
  %v194 = vunpack.c.h.b16 %v49
  %v195 = vunpack.c.l.b16 %v50
  %v196 = vunpack.c.h.b16 %v50
  %v197 = vunpack.c.l.b16 %v51
  %v198 = vunpack.c.h.b16 %v51
  %v199 = vunpack.c.l.b16 %v52
  %v200 = vunpack.c.h.b16 %v52
  %v201 = vunpack.c.l.b16 %v53
  %v202 = vunpack.c.h.b16 %v53
  %v203 = vunpack.c.l.b16 %v54
  %v204 = vunpack.c.h.b16 %v54
  %v205 = vpack.c.b16 %v137, %v133
  %v206 = vpack.c.b16 %v138, %v134
  %v207 = vpack.c.b16 %v139, %v135
  %v208 = vpack.c.b16 %v140, %v136
  %v209 = vpack.c.b16 %v145, %v141
  %v210 = vpack.c.b16 %v146, %v142
  %v211 = vpack.c.b16 %v147, %v143
  %v212 = vpack.c.b16 %v148, %v144
  %v213 = vpack.c.b16 %v153, %v149
  %v214 = vpack.c.b16 %v154, %v150
  %v215 = vpack.c.b16 %v155, %v151
  %v216 = vpack.c.b16 %v156, %v152
  %v217 = vpack.c.b16 %v161, %v157
  %v218 = vpack.c.b16 %v162, %v158
  %v219 = vpack.c.b16 %v163, %v159
  %v220 = vpack.c.b16 %v164, %v160
  %v221 = vpack.c.b16 %v169, %v165
  %v222 = vpack.c.b16 %v170, %v166
  %v223 = vpack.c.b16 %v171, %v167
  %v224 = vpack.c.b16 %v172, %v168
  %v225 = vpack.c.b16 %v177, %v173
  %v226 = vpack.c.b16 %v178, %v174
  %v227 = vpack.c.b16 %v179, %v175
  %v228 = vpack.c.b16 %v180, %v176
  %v229 = vpack.c.b16 %v185, %v181
  %v230 = vpack.c.b16 %v186, %v182
  %v231 = vpack.c.b16 %v187, %v183
  %v232 = vpack.c.b16 %v188, %v184
  %v233 = vpack.c.b16 %v193, %v189
  %v234 = vpack.c.b16 %v194, %v190
  %v235 = vpack.c.b16 %v195, %v191
  %v236 = vpack.c.b16 %v196, %v192
  %v237 = vpack.c.b16 %v201, %v197
  %v238 = vpack.c.b16 %v202, %v198
  %v239 = vpack.c.b16 %v203, %v199
  %v240 = vpack.c.b16 %v204, %v200
  %vm277 = vcmask 130048
  %v279 = vsel %vm277, %v92, 0
  %v282 = vsel %vm277, %v94, 0
  %284 = vmatprep.subr.bf16.mxu0 %v206
  %285 = vmatpush1.bf16.msra.mxu0 %v205
  %286 = vmatprep.subr.bf16.mxu0 %v210
  %287 = vmatpush1.bf16.msra.mxu0 %v209
  %288 = vmatprep.subr.bf16.mxu0 %v214
  %289 = vmatpush1.bf16.msra.mxu0 %v213
  %290 = vmatprep.subr.bf16.mxu0 %v218
  %291 = vmatpush1.bf16.msra.mxu0 %v217
  %292 = vmatprep.subr.bf16.mxu0 %v222
  %293 = vmatpush1.bf16.msra.mxu0 %v221
  %294 = vmatprep.subr.bf16.mxu0 %v226
  %295 = vmatpush1.bf16.msra.mxu0 %v225
  %296 = vmatprep.subr.bf16.mxu0 %v230
  %297 = vmatpush1.bf16.msra.mxu0 %v229
  %298 = vmatprep.subr.bf16.mxu0 %v234
  %299 = vmatpush1.bf16.msra.mxu0 %v233
  %300 = vmatprep.subr.bf16.mxu0 %v238
  %301 = vmatpush1.bf16.msra.mxu0 %v237
  %302 = vmatprep.subr.bf16.mxu0 0
  %303 = vmatpush1.bf16.msra.mxu0 0
  %304 = vmatprep.subr.bf16.mxu0 0
  %305 = vmatpush1.bf16.msra.mxu0 0
  %306 = vmatprep.subr.bf16.mxu0 0
  %307 = vmatpush1.bf16.msra.mxu0 0
  %308 = vmatprep.subr.bf16.mxu0 0
  %309 = vmatpush1.bf16.msra.mxu0 0
  %310 = vmatprep.subr.bf16.mxu0 0
  %311 = vmatpush1.bf16.msra.mxu0 0
  %312 = vmatprep.subr.bf16.mxu0 0
  %313 = vmatpush1.bf16.msra.mxu0 0
  %314 = vmatprep.subr.bf16.mxu0 0
  %315 = vmatpush1.bf16.msra.mxu0 0
  %316 = vmatprep.mubr.bf16.mxu0 %v279
  %317 = vmatmul.mubr.bf16.gmra.mrb[0].mxu0 %v91
  %v318 = vpop.f32.mrb[0].mxu0
  %v319 = vadd.f32 %v62, %v318
  %v320 = vpop.f32.mrb[0].mxu0
  %v321 = vadd.f32 %v62, %v320
  %v322 = vpop.f32.mrb[0].mxu0
  %v323 = vadd.f32 %v67, %v322
  %v324 = vpop.f32.mrb[0].mxu0
  %v325 = vadd.f32 %v67, %v324
  %326 = vmatprep.mubr.bf16.mxu0 %v282
  %327 = vmatmul.mubr.bf16.gmra.mrb[0].mxu0 %v93
  %v328 = vpop.f32.mrb[0].mxu0
  %v329 = vadd.f32 %v72, %v328
  %v330 = vpop.f32.mrb[0].mxu0
  %v331 = vadd.f32 %v72, %v330
  %v332 = vpop.f32.mrb[0].mxu0
  %v333 = vadd.f32 %v77, %v332
  %v334 = vpop.f32.mrb[0].mxu0
  %v335 = vadd.f32 %v77, %v334
  %336 = vdwg.mxu0
  %337 = vmatprep.subr.bf16.mxu0 %v208
  %338 = vmatpush1.bf16.msra.mxu0 %v207
  %339 = vmatprep.subr.bf16.mxu0 %v212
  %340 = vmatpush1.bf16.msra.mxu0 %v211
  %341 = vmatprep.subr.bf16.mxu0 %v216
  %342 = vmatpush1.bf16.msra.mxu0 %v215
  %343 = vmatprep.subr.bf16.mxu0 %v220
  %344 = vmatpush1.bf16.msra.mxu0 %v219
  %345 = vmatprep.subr.bf16.mxu0 %v224
  %346 = vmatpush1.bf16.msra.mxu0 %v223
  %347 = vmatprep.subr.bf16.mxu0 %v228
  %348 = vmatpush1.bf16.msra.mxu0 %v227
  %349 = vmatprep.subr.bf16.mxu0 %v232
  %350 = vmatpush1.bf16.msra.mxu0 %v231
  %351 = vmatprep.subr.bf16.mxu0 %v236
  %352 = vmatpush1.bf16.msra.mxu0 %v235
  %353 = vmatprep.subr.bf16.mxu0 %v240
  %354 = vmatpush1.bf16.msra.mxu0 %v239
  %355 = vmatprep.subr.bf16.mxu0 0
  %356 = vmatpush1.bf16.msra.mxu0 0
  %357 = vmatprep.subr.bf16.mxu0 0
  %358 = vmatpush1.bf16.msra.mxu0 0
  %359 = vmatprep.subr.bf16.mxu0 0
  %360 = vmatpush1.bf16.msra.mxu0 0
  %361 = vmatprep.subr.bf16.mxu0 0
  %362 = vmatpush1.bf16.msra.mxu0 0
  %363 = vmatprep.subr.bf16.mxu0 0
  %364 = vmatpush1.bf16.msra.mxu0 0
  %365 = vmatprep.subr.bf16.mxu0 0
  %366 = vmatpush1.bf16.msra.mxu0 0
  %367 = vmatprep.subr.bf16.mxu0 0
  %368 = vmatpush1.bf16.msra.mxu0 0
  %369 = vmatprep.mubr.bf16.mxu0 %v279
  %370 = vmatmul.mubr.bf16.gmra.mrb[0].mxu0 %v91
  %v371 = vpop.f32.mrb[0].mxu0
  %v372 = vadd.f32 %v62, %v371
  %v373 = vpop.f32.mrb[0].mxu0
  %v374 = vadd.f32 %v62, %v373
  %v375 = vpop.f32.mrb[0].mxu0
  %v376 = vadd.f32 %v67, %v375
  %v377 = vpop.f32.mrb[0].mxu0
  %v378 = vadd.f32 %v67, %v377
  %379 = vmatprep.mubr.bf16.mxu0 %v282
  %380 = vmatmul.mubr.bf16.gmra.mrb[0].mxu0 %v93
  %v381 = vpop.f32.mrb[0].mxu0
  %v382 = vadd.f32 %v72, %v381
  %v383 = vpop.f32.mrb[0].mxu0
  %v384 = vadd.f32 %v72, %v383
  %v385 = vpop.f32.mrb[0].mxu0
  %v386 = vadd.f32 %v77, %v385
  %v387 = vpop.f32.mrb[0].mxu0
  %v388 = vadd.f32 %v77, %v387
  %389 = vdwg.mxu0
  %v390 = vmax.f32 %v319, 0.0
  %v391 = vmax.f32 %v321, 0.0
  %v392 = vmax.f32 %v372, 0.0
  %v393 = vmax.f32 %v374, 0.0
  %v394 = vmax.f32 %v323, 0.0
  %v395 = vmax.f32 %v325, 0.0
  %v396 = vmax.f32 %v376, 0.0
  %v397 = vmax.f32 %v378, 0.0
  %v398 = vmax.f32 %v329, 0.0
  %v399 = vmax.f32 %v331, 0.0
  %v400 = vmax.f32 %v382, 0.0
  %v401 = vmax.f32 %v384, 0.0
  %v402 = vmax.f32 %v333, 0.0
  %v403 = vmax.f32 %v335, 0.0
  %v404 = vmax.f32 %v386, 0.0
  %v405 = vmax.f32 %v388, 0.0
  %v406 = vpack.c.bf16 %v394, %v390
  %v407 = vpack.c.bf16 %v395, %v391
  %v408 = vpack.c.bf16 %v396, %v392
  %v409 = vpack.c.bf16 %v397, %v393
  %v410 = vpack.c.bf16 %v402, %v398
  %v411 = vpack.c.bf16 %v403, %v399
  %v412 = vpack.c.bf16 %v404, %v400
  %v413 = vpack.c.bf16 %v405, %v401
  %v422 = vunpack.c.l.b16 %v406
  %v423 = vunpack.c.l.b16 %v407
  %v424 = vunpack.c.l.b16 %v408
  %v425 = vunpack.c.l.b16 %v409
  %v426 = vunpack.c.h.b16 %v406
  %v427 = vunpack.c.h.b16 %v407
  %v428 = vunpack.c.h.b16 %v408
  %v429 = vunpack.c.h.b16 %v409
  %v430 = vunpack.c.l.b16 %v410
  %v431 = vunpack.c.l.b16 %v411
  %v432 = vunpack.c.l.b16 %v412
  %v433 = vunpack.c.l.b16 %v413
  %v434 = vunpack.c.h.b16 %v410
  %v435 = vunpack.c.h.b16 %v411
  %v436 = vunpack.c.h.b16 %v412
  %v437 = vunpack.c.h.b16 %v413
  %v438 = vpack.c.b16 %v423, %v422
  %v439 = vpack.c.b16 %v425, %v424
  %v440 = vpack.c.b16 %v427, %v426
  %v441 = vpack.c.b16 %v429, %v428
  %v442 = vpack.c.b16 %v431, %v430
  %v443 = vpack.c.b16 %v433, %v432
  %v444 = vpack.c.b16 %v435, %v434
  %v445 = vpack.c.b16 %v437, %v436
  %454 = vst [vmem:[%s3] sm:$0xff] %v438
  %455 = vst [vmem:[%s3 + $0x8] sm:$0xff] %v439
  %456 = vst [vmem:[%s3 + $0x10] sm:$0xff] %v440
  %457 = vst [vmem:[%s3 + $0x18] sm:$0xff] %v441
  %458 = vst [vmem:[%s3 + $0x20] sm:$0xff] %v442
  %459 = vst [vmem:[%s3 + $0x28] sm:$0xff] %v443
  %460 = vst [vmem:[%s3 + $0x30] sm:$0xff] %v444
  %461 = vst [vmem:[%s3 + $0x38] sm:$0xff] %v445
  // Predicated region
  $region14: #{mmdvae_forward.18} parent=0 // pred_check
    _
  $region15: #{mmdvae_forward.18} parent=0 // pred_check_branch
    %463 = sbr.rel (0) target = $region17
  $region16: #{mmdvae_forward.18} parent=0 // pred_region
    _
  $region17: #{mmdvae_forward.18} parent=0 // pred_fallthru
    _
  // Predicated region
  $region18: #{mmdvae_forward.18} parent=0 // pred_check
    _
  $region19: #{mmdvae_forward.18} parent=0 // pred_check_branch
    %465 = sbr.rel (0) target = $region21
  $region20: #{mmdvae_forward.18} parent=0 // pred_region
    _
  $region21: #{mmdvae_forward.18} parent=0 // pred_fallthru
    _

// kernel: mmdvae_forward.19
$region0: #{mmdvae_forward.19}
  #allocation0 [shape = 'u32[]', space=smem, size = 0x4, offset = 0x4, fixed_abs, tag = 'smem constant byte address 0x4 - core index']
  #allocation1 [shape = 'u32[144,128]{1,0:T(1,128)}', space=vmem, size = 0x12000, scoped, tag = 'internal scratch']
  %s0 = inlined_call_operand.vmem [shape: bf16[16,80], index: 0, kind: input, shape index: {}]
  %s1 = inlined_call_operand.vmem [shape: bf16[80,2048], index: 1, kind: input, shape index: {}]
  %s2 = inlined_call_operand.vmem [shape: f32[16,1], index: 2, kind: input, shape index: {}]
  %s3 = inlined_call_operand.vmem [shape: f32[16,2048], index: 3, kind: output, shape index: {}]
  %s4 = sld [smem:[#allocation0]]
  $region87: #{mmdvae_forward.19} parent=0
    _
  %s6 = ssub.s32 1, %s4
  %s7 = scalar_select 0, %s6, %s4
  $region1: #{mmdvae_forward.19} parent=0
    #allocation2 [shape = 'u8[163840]{0}', space=vmem, size = 0x28000, scoped, tag = 'input window, operand 1']
    #allocation3 [shape = 'u8[65536]{0}', space=vmem, size = 0x10000, scoped, tag = 'output window, operand 0']
    loop: start=0, step=1, limit=6
    $region2: #{mmdvae_forward.19} parent=1 // loop_pre_header
      _
    $region3: #{mmdvae_forward.19} parent=1 // loop_header
      %s9 = sphi 0, %s13
      %p10 = scmp.ge.s32.totalorder %s9, 6
      %s17 = sphi 0, %s17
      %s19 = sphi 0, %s17
      %s20 = sphi 0, %s19
      %s34 = sphi 0, %s20
      %s40 = sphi 0, %s42
      %s43 = sphi 0, %s40
      %s44 = sphi 0, %s43
      %s60 = sphi 0, %s44
      %s64 = sphi 0, %s64
      %s66 = sphi 0, %s64
      %s67 = sphi 0, %s66
      %s81 = sphi 0, %s67
      %s87 = sphi 0, %s89
      %s90 = sphi 0, %s87
      %s91 = sphi 0, %s90
      %s107 = sphi 0, %s91
    $region4: #{mmdvae_forward.19} parent=1 // loop_header_branch
      %12 = sbr.rel (%p10) target = $region8
    $region5: #{mmdvae_forward.19} parent=1 // loop_body
      %s14 = ssub.s32 %s9, 1
      %s15 = ssub.s32 %s9, 2
      %s16 = sadd.s32 %s9, 1
      %s18 = sadd.s32 %s17, 1
      %p21 = scmp.eq.s32.totalorder %s9, 3
      %p22 = scmp.ne.s32.totalorder %s17, %s19
      %p23 = scmp.eq.s32.totalorder %s9, 0
      %p24 = por %p22, %p23
      %p25 = scmp.ne.s32.totalorder %s17, %s19
      %p26 = scmp.eq.s32.totalorder %s14, 3
      %p27 = por %p25, %p26
      %p28 = scmp.ne.s32.totalorder %s19, %s20
      %p29 = scmp.eq.s32.totalorder %s14, 0
      %p30 = por %p28, %p29
      %p31 = scmp.ne.s32.totalorder %s19, %s20
      %p32 = scmp.eq.s32.totalorder %s15, 3
      %p33 = por %p31, %p32
      %p35 = scmp.ne.s32.totalorder %s20, %s34
      %p36 = scmp.eq.s32.totalorder %s15, 0
      %p37 = por %p35, %p36
      %s38 = ssub.s32 %s9, %s16
      %p39 = scmp.eq.s32.totalorder %s38, 0
      %s41 = sadd.s32 %s40, 1
      %s42 = scalar_select %p39, %s40, %s41
      %p45 = pneg %p39
      %p46 = scmp.eq.s32.totalorder %s9, 3
      %p47 = por %p45, %p46
      %p48 = scmp.ne.s32.totalorder %s40, %s43
      %p49 = scmp.eq.s32.totalorder %s9, 0
      %p50 = por %p48, %p49
      %p51 = scmp.ne.s32.totalorder %s40, %s43
      %p52 = scmp.eq.s32.totalorder %s14, 3
      %p53 = por %p51, %p52
      %p54 = scmp.ne.s32.totalorder %s43, %s44
      %p55 = scmp.eq.s32.totalorder %s14, 0
      %p56 = por %p54, %p55
      %p57 = scmp.ne.s32.totalorder %s43, %s44
      %p58 = scmp.eq.s32.totalorder %s15, 3
      %p59 = por %p57, %p58
      %p61 = scmp.ne.s32.totalorder %s44, %s60
      %p62 = scmp.eq.s32.totalorder %s15, 0
      %p63 = por %p61, %p62
      %s65 = sadd.s32 %s64, 1
      %p68 = scmp.eq.s32.totalorder %s9, 3
      %p69 = scmp.ne.s32.totalorder %s64, %s66
      %p70 = scmp.eq.s32.totalorder %s9, 0
      %p71 = por %p69, %p70
      %p72 = scmp.ne.s32.totalorder %s64, %s66
      %p73 = scmp.eq.s32.totalorder %s14, 3
      %p74 = por %p72, %p73
      %p75 = scmp.ne.s32.totalorder %s66, %s67
      %p76 = scmp.eq.s32.totalorder %s14, 0
      %p77 = por %p75, %p76
      %p78 = scmp.ne.s32.totalorder %s66, %s67
      %p79 = scmp.eq.s32.totalorder %s15, 3
      %p80 = por %p78, %p79
      %p82 = scmp.ne.s32.totalorder %s67, %s81
      %p83 = scmp.eq.s32.totalorder %s15, 0
      %p84 = por %p82, %p83
      %s85 = ssub.s32 %s9, %s16
      %p86 = scmp.eq.s32.totalorder %s85, 0
      %s88 = sadd.s32 %s87, 1
      %s89 = scalar_select %p86, %s87, %s88
      %p92 = pneg %p86
      %p93 = scmp.eq.s32.totalorder %s9, 3
      %p94 = por %p92, %p93
      %p95 = scmp.ne.s32.totalorder %s87, %s90
      %p96 = scmp.eq.s32.totalorder %s9, 0
      %p97 = por %p95, %p96
      %p98 = scmp.ne.s32.totalorder %s87, %s90
      %p99 = scmp.eq.s32.totalorder %s14, 3
      %p100 = por %p98, %p99
      %p101 = scmp.ne.s32.totalorder %s90, %s91
      %p102 = scmp.eq.s32.totalorder %s14, 0
      %p103 = por %p101, %p102
      %p104 = scmp.ne.s32.totalorder %s90, %s91
      %p105 = scmp.eq.s32.totalorder %s15, 3
      %p106 = por %p104, %p105
      %p108 = scmp.ne.s32.totalorder %s91, %s107
      %p109 = scmp.eq.s32.totalorder %s15, 0
      %p110 = por %p108, %p109
      %p111 = scmp.le.s32.totalorder 1, %s9
      %p112 = scmp.lt.s32.totalorder %s9, 5
      %p113 = pnand %p111, %p112
      %p114 = pneg %p113
      // Predicated region
      $region9: #{mmdvae_forward.19} parent=5 // pred_check
        _
      $region10: #{mmdvae_forward.19} parent=5 // pred_check_branch
        %116 = sbr.rel (%p113) target = $region12
      $region11: #{mmdvae_forward.19} parent=5 // pred_region
        %s117 = ssub.s32 %s9, 1
        // Predicated region
        $region13: #{mmdvae_forward.19} parent=11 // pred_check
          %p118 = pneg %p30
        $region14: #{mmdvae_forward.19} parent=11 // pred_check_branch
          %120 = sbr.rel (%p118) target = $region16
        $region15: #{mmdvae_forward.19} parent=11 // pred_region
          _
        $region16: #{mmdvae_forward.19} parent=11 // pred_fallthru
          _
        // Predicated region
        $region17: #{mmdvae_forward.19} parent=11 // pred_check
          %p121 = pneg %p77
        $region18: #{mmdvae_forward.19} parent=11 // pred_check_branch
          %123 = sbr.rel (%p121) target = $region20
        $region19: #{mmdvae_forward.19} parent=11 // pred_region
          _
        $region20: #{mmdvae_forward.19} parent=11 // pred_fallthru
          _
      $region12: #{mmdvae_forward.19} parent=5 // pred_fallthru
        _
      %p124 = scmp.lt.s32.totalorder %s9, 4
      // Predicated region
      $region21: #{mmdvae_forward.19} parent=5 // pred_check
        %p125 = pneg %p124
      $region22: #{mmdvae_forward.19} parent=5 // pred_check_branch
        %127 = sbr.rel (%p125) target = $region24
      $region23: #{mmdvae_forward.19} parent=5 // pred_region
        // Predicated region
        $region25: #{mmdvae_forward.19} parent=23 // pred_check
          %p128 = pneg %p50
        $region26: #{mmdvae_forward.19} parent=23 // pred_check_branch
          %130 = sbr.rel (%p128) target = $region28
        $region27: #{mmdvae_forward.19} parent=23 // pred_region
          %s131 = sand.u32 %s40, 1
          %s132 = sand.u32 %s40, 1
          %s133 = smul.addr %s132, 160
          %s134 = scalar_lea.vmem [#allocation2], %s133
          %s135 = smul.u32 4, %s9
          %s136 = smul.addr %s135, 4
          %s137 = scalar_lea.vmem %s1, %s136
          // Predicated region
          $region29: #{mmdvae_forward.19} parent=27 // pred_check
            _
          $region30: #{mmdvae_forward.19} parent=27 // pred_check_branch
            %139 = sbr.rel (0) target = $region32
          $region31: #{mmdvae_forward.19} parent=27 // pred_region
            // Predicated region
            $region33: #{mmdvae_forward.19} parent=31 // pred_check
              _
            $region34: #{mmdvae_forward.19} parent=31 // pred_check_branch
              %141 = sbr.rel (0) target = $region36
            $region35: #{mmdvae_forward.19} parent=31 // pred_region
              loop: start=0, step=1, limit=1
              $region37: #{mmdvae_forward.19} parent=35 // loop_pre_header
                _
              $region38: #{mmdvae_forward.19} parent=35 // loop_header
                %s143 = sphi 0, %s147
                %p144 = scmp.ge.s32.totalorder %s143, 1
                %s148 = sphi %s137, %s137
                %s149 = sphi %s134, %s134
              $region39: #{mmdvae_forward.19} parent=35 // loop_header_branch
                %146 = sbr.rel (%p144) target = $region43
              $region40: #{mmdvae_forward.19} parent=35 // loop_body
                %v150 = vld [vmem:[%s148] sm:$0xff]
                %151 = vst [vmem:[%s149] sm:$0xff] %v150
                %v152 = vld [vmem:[%s148 + $0x8] sm:$0xff]
                %153 = vst [vmem:[%s149 + $0x8] sm:$0xff] %v152
                %v154 = vld [vmem:[%s148 + $0x40] sm:$0xff]
                %155 = vst [vmem:[%s149 + $0x10] sm:$0xff] %v154
                %v156 = vld [vmem:[%s148 + $0x48] sm:$0xff]
                %157 = vst [vmem:[%s149 + $0x18] sm:$0xff] %v156
                %v158 = vld [vmem:[%s148 + $0x80] sm:$0xff]
                %159 = vst [vmem:[%s149 + $0x20] sm:$0xff] %v158
                %v160 = vld [vmem:[%s148 + $0x88] sm:$0xff]
                %161 = vst [vmem:[%s149 + $0x28] sm:$0xff] %v160
                %v162 = vld [vmem:[%s148 + $0xc0] sm:$0xff]
                %163 = vst [vmem:[%s149 + $0x30] sm:$0xff] %v162
                %v164 = vld [vmem:[%s148 + $0xc8] sm:$0xff]
                %165 = vst [vmem:[%s149 + $0x38] sm:$0xff] %v164
                %v166 = vld [vmem:[%s148 + $0x100] sm:$0xff]
                %167 = vst [vmem:[%s149 + $0x40] sm:$0xff] %v166
                %v168 = vld [vmem:[%s148 + $0x108] sm:$0xff]
                %169 = vst [vmem:[%s149 + $0x48] sm:$0xff] %v168
                %v170 = vld [vmem:[%s148 + $0x140] sm:$0xff]
                %171 = vst [vmem:[%s149 + $0x50] sm:$0xff] %v170
                %v172 = vld [vmem:[%s148 + $0x148] sm:$0xff]
                %173 = vst [vmem:[%s149 + $0x58] sm:$0xff] %v172
                %v174 = vld [vmem:[%s148 + $0x180] sm:$0xff]
                %175 = vst [vmem:[%s149 + $0x60] sm:$0xff] %v174
                %v176 = vld [vmem:[%s148 + $0x188] sm:$0xff]
                %177 = vst [vmem:[%s149 + $0x68] sm:$0xff] %v176
                %v178 = vld [vmem:[%s148 + $0x1c0] sm:$0xff]
                %179 = vst [vmem:[%s149 + $0x70] sm:$0xff] %v178
                %v180 = vld [vmem:[%s148 + $0x1c8] sm:$0xff]
                %181 = vst [vmem:[%s149 + $0x78] sm:$0xff] %v180
                %v182 = vld [vmem:[%s148 + $0x200] sm:$0xff]
                %183 = vst [vmem:[%s149 + $0x80] sm:$0xff] %v182
                %v184 = vld [vmem:[%s148 + $0x208] sm:$0xff]
                %185 = vst [vmem:[%s149 + $0x88] sm:$0xff] %v184
                %v186 = vld [vmem:[%s148 + $0x240] sm:$0xff]
                %187 = vst [vmem:[%s149 + $0x90] sm:$0xff] %v186
                %v188 = vld [vmem:[%s148 + $0x248] sm:$0xff]
                %189 = vst [vmem:[%s149 + $0x98] sm:$0xff] %v188
              $region41: #{mmdvae_forward.19} parent=35 // loop_footer
                %s147 = sadd.s32 1, %s143
              $region42: #{mmdvae_forward.19} parent=35 // loop_footer_branch
                %142 = sbr.rel target = $region38
              $region43: #{mmdvae_forward.19} parent=35 // loop_exit
                _
            $region36: #{mmdvae_forward.19} parent=31 // pred_fallthru
              _
            // Predicated region
            $region44: #{mmdvae_forward.19} parent=31 // pred_check
              _
            $region45: #{mmdvae_forward.19} parent=31 // pred_check_branch
              %191 = sbr.rel target = $region47
            $region46: #{mmdvae_forward.19} parent=31 // pred_region
              _
            $region47: #{mmdvae_forward.19} parent=31 // pred_fallthru
              _
          $region32: #{mmdvae_forward.19} parent=27 // pred_fallthru
            _
          %192 = vnop
        $region28: #{mmdvae_forward.19} parent=23 // pred_fallthru
          _
      $region24: #{mmdvae_forward.19} parent=5 // pred_fallthru
        _
      %p193 = scmp.le.s32.totalorder 1, %s9
      %p194 = scmp.lt.s32.totalorder %s9, 5
      %p195 = pnand %p193, %p194
      %p196 = pneg %p195
      // Predicated region
      $region48: #{mmdvae_forward.19} parent=5 // pred_check
        _
      $region49: #{mmdvae_forward.19} parent=5 // pred_check_branch
        %198 = sbr.rel (%p195) target = $region51
      $region50: #{mmdvae_forward.19} parent=5 // pred_region
        %s199 = ssub.s32 %s9, 1
        %s200 = sand.u32 %s43, 1
        %s201 = sand.u32 %s43, 1
        %s202 = smul.addr %s201, 160
        %s203 = scalar_lea.vmem [#allocation2], %s202
        // Predicated region
        $region52: #{mmdvae_forward.19} parent=50 // pred_check
          %p204 = pneg %p56
        $region53: #{mmdvae_forward.19} parent=50 // pred_check_branch
          %206 = sbr.rel (%p204) target = $region55
        $region54: #{mmdvae_forward.19} parent=50 // pred_region
          _
        $region55: #{mmdvae_forward.19} parent=50 // pred_fallthru
          _
        %p207 = pneg %p30
        %p208 = pneg %p27
        %s209 = sand.u32 %s43, 1
        %s210 = sand.u32 %s43, 1
        %s211 = smul.addr %s210, 160
        %s212 = scalar_lea.vmem [#allocation2], %s211
        %p213 = pneg %p56
        %p214 = pneg %p53
        %p215 = pneg %p77
        %p216 = pneg %p74
        %p217 = pneg %p103
        %p218 = pneg %p100
        %s219 = sand.u32 %s90, 1
        %s220 = sand.u32 %s90, 1
        %s221 = smul.addr %s220, 64
        %s222 = scalar_lea.vmem [#allocation3], %s221
        %s223 = smul.u32 4, %s14
        %s224 = smul.u32 4, %s14
        %v226 = vld [vmem:[%s0] sm:$0xf]
        %v227 = vld [vmem:[%s0 + $0x4] sm:$0xf]
        %v228 = vld [vmem:[%s203] sm:$0xff]
        %v229 = vld [vmem:[%s203 + $0x8] sm:$0xff]
        %v230 = vld [vmem:[%s203 + $0x10] sm:$0xff]
        %v231 = vld [vmem:[%s203 + $0x18] sm:$0xff]
        %v232 = vld [vmem:[%s203 + $0x20] sm:$0xff]
        %v233 = vld [vmem:[%s203 + $0x28] sm:$0xff]
        %v234 = vld [vmem:[%s203 + $0x30] sm:$0xff]
        %v235 = vld [vmem:[%s203 + $0x38] sm:$0xff]
        %v236 = vld [vmem:[%s203 + $0x40] sm:$0xff]
        %v237 = vld [vmem:[%s203 + $0x48] sm:$0xff]
        %v238 = vld [vmem:[%s203 + $0x50] sm:$0xff]
        %v239 = vld [vmem:[%s203 + $0x58] sm:$0xff]
        %v240 = vld [vmem:[%s203 + $0x60] sm:$0xff]
        %v241 = vld [vmem:[%s203 + $0x68] sm:$0xff]
        %v242 = vld [vmem:[%s203 + $0x70] sm:$0xff]
        %v243 = vld [vmem:[%s203 + $0x78] sm:$0xff]
        %v244 = vld [vmem:[%s203 + $0x80] sm:$0xff]
        %v245 = vld [vmem:[%s203 + $0x88] sm:$0xff]
        %v246 = vld [vmem:[%s203 + $0x90] sm:$0xff]
        %v247 = vld [vmem:[%s203 + $0x98] sm:$0xff]
        %v248 = vld [vmem:[%s2] sm:$0xff]
        %v249 = vld [vmem:[%s2 + $0x8] sm:$0xff]
        %251 = vset.pattern.permute.xlu0 0
        %252 = vperm.xlu0 %251, %v248
        %v253 = vpop.permute.xlu0 %252
        %256 = vset.pattern.permute.xlu0 0
        %257 = vperm.xlu0 %256, %v249
        %v258 = vpop.permute.xlu0 %257
        %v262 = vunpack.c.l.b16 %v226
        %v263 = vunpack.c.l.b16 %v227
        %v264 = vpack.c.b16 %v263, %v262
        %v285 = vunpack.c.l.b16 %v228
        %v286 = vunpack.c.h.b16 %v228
        %v287 = vunpack.c.l.b16 %v229
        %v288 = vunpack.c.h.b16 %v229
        %v289 = vunpack.c.l.b16 %v230
        %v290 = vunpack.c.h.b16 %v230
        %v291 = vunpack.c.l.b16 %v231
        %v292 = vunpack.c.h.b16 %v231
        %v293 = vunpack.c.l.b16 %v232
        %v294 = vunpack.c.h.b16 %v232
        %v295 = vunpack.c.l.b16 %v233
        %v296 = vunpack.c.h.b16 %v233
        %v297 = vunpack.c.l.b16 %v234
        %v298 = vunpack.c.h.b16 %v234
        %v299 = vunpack.c.l.b16 %v235
        %v300 = vunpack.c.h.b16 %v235
        %v301 = vunpack.c.l.b16 %v236
        %v302 = vunpack.c.h.b16 %v236
        %v303 = vunpack.c.l.b16 %v237
        %v304 = vunpack.c.h.b16 %v237
        %v305 = vunpack.c.l.b16 %v238
        %v306 = vunpack.c.h.b16 %v238
        %v307 = vunpack.c.l.b16 %v239
        %v308 = vunpack.c.h.b16 %v239
        %v309 = vunpack.c.l.b16 %v240
        %v310 = vunpack.c.h.b16 %v240
        %v311 = vunpack.c.l.b16 %v241
        %v312 = vunpack.c.h.b16 %v241
        %v313 = vunpack.c.l.b16 %v242
        %v314 = vunpack.c.h.b16 %v242
        %v315 = vunpack.c.l.b16 %v243
        %v316 = vunpack.c.h.b16 %v243
        %v317 = vunpack.c.l.b16 %v244
        %v318 = vunpack.c.h.b16 %v244
        %v319 = vunpack.c.l.b16 %v245
        %v320 = vunpack.c.h.b16 %v245
        %v321 = vunpack.c.l.b16 %v246
        %v322 = vunpack.c.h.b16 %v246
        %v323 = vunpack.c.l.b16 %v247
        %v324 = vunpack.c.h.b16 %v247
        %v325 = vpack.c.b16 %v289, %v285
        %v326 = vpack.c.b16 %v290, %v286
        %v327 = vpack.c.b16 %v291, %v287
        %v328 = vpack.c.b16 %v292, %v288
        %v329 = vpack.c.b16 %v297, %v293
        %v330 = vpack.c.b16 %v298, %v294
        %v331 = vpack.c.b16 %v299, %v295
        %v332 = vpack.c.b16 %v300, %v296
        %v333 = vpack.c.b16 %v305, %v301
        %v334 = vpack.c.b16 %v306, %v302
        %v335 = vpack.c.b16 %v307, %v303
        %v336 = vpack.c.b16 %v308, %v304
        %v337 = vpack.c.b16 %v313, %v309
        %v338 = vpack.c.b16 %v314, %v310
        %v339 = vpack.c.b16 %v315, %v311
        %v340 = vpack.c.b16 %v316, %v312
        %v341 = vpack.c.b16 %v321, %v317
        %v342 = vpack.c.b16 %v322, %v318
        %v343 = vpack.c.b16 %v323, %v319
        %v344 = vpack.c.b16 %v324, %v320
        %vm365 = vcmask 654336
        %v367 = vsel %vm365, %v264, 0
        %369 = vmatprep.subr.bf16.mxu0 %v326
        %370 = vmatpush1.bf16.msra.mxu0 %v325
        %371 = vmatprep.subr.bf16.mxu0 %v330
        %372 = vmatpush1.bf16.msra.mxu0 %v329
        %373 = vmatprep.subr.bf16.mxu0 %v334
        %374 = vmatpush1.bf16.msra.mxu0 %v333
        %375 = vmatprep.subr.bf16.mxu0 %v338
        %376 = vmatpush1.bf16.msra.mxu0 %v337
        %377 = vmatprep.subr.bf16.mxu0 %v342
        %378 = vmatpush1.bf16.msra.mxu0 %v341
        %379 = vmatprep.subr.bf16.mxu0 0
        %380 = vmatpush1.bf16.msra.mxu0 0
        %381 = vmatprep.subr.bf16.mxu0 0
        %382 = vmatpush1.bf16.msra.mxu0 0
        %383 = vmatprep.subr.bf16.mxu0 0
        %384 = vmatpush1.bf16.msra.mxu0 0
        %385 = vmatprep.subr.bf16.mxu0 0
        %386 = vmatpush1.bf16.msra.mxu0 0
        %387 = vmatprep.subr.bf16.mxu0 0
        %388 = vmatpush1.bf16.msra.mxu0 0
        %389 = vmatprep.subr.bf16.mxu0 0
        %390 = vmatpush1.bf16.msra.mxu0 0
        %391 = vmatprep.subr.bf16.mxu0 0
        %392 = vmatpush1.bf16.msra.mxu0 0
        %393 = vmatprep.subr.bf16.mxu0 0
        %394 = vmatpush1.bf16.msra.mxu0 0
        %395 = vmatprep.subr.bf16.mxu0 0
        %396 = vmatpush1.bf16.msra.mxu0 0
        %397 = vmatprep.subr.bf16.mxu0 0
        %398 = vmatpush1.bf16.msra.mxu0 0
        %399 = vmatprep.subr.bf16.mxu0 0
        %400 = vmatpush1.bf16.msra.mxu0 0
        %401 = vmatprep.mubr.bf16.mxu0 0
        %402 = vmatmul.mubr.bf16.gmra.mrb[0].mxu0 %v367
        %v403 = vpop.f32.mrb[0].mxu0
        %v404 = vadd.f32 %v253, %v403
        %v405 = vpop.f32.mrb[0].mxu0
        %v406 = vadd.f32 %v253, %v405
        %v407 = vpop.f32.mrb[0].mxu0
        %v408 = vadd.f32 %v258, %v407
        %v409 = vpop.f32.mrb[0].mxu0
        %v410 = vadd.f32 %v258, %v409
        %411 = vdwg.mxu0
        %412 = vmatprep.subr.bf16.mxu0 %v328
        %413 = vmatpush1.bf16.msra.mxu0 %v327
        %414 = vmatprep.subr.bf16.mxu0 %v332
        %415 = vmatpush1.bf16.msra.mxu0 %v331
        %416 = vmatprep.subr.bf16.mxu0 %v336
        %417 = vmatpush1.bf16.msra.mxu0 %v335
        %418 = vmatprep.subr.bf16.mxu0 %v340
        %419 = vmatpush1.bf16.msra.mxu0 %v339
        %420 = vmatprep.subr.bf16.mxu0 %v344
        %421 = vmatpush1.bf16.msra.mxu0 %v343
        %422 = vmatprep.subr.bf16.mxu0 0
        %423 = vmatpush1.bf16.msra.mxu0 0
        %424 = vmatprep.subr.bf16.mxu0 0
        %425 = vmatpush1.bf16.msra.mxu0 0
        %426 = vmatprep.subr.bf16.mxu0 0
        %427 = vmatpush1.bf16.msra.mxu0 0
        %428 = vmatprep.subr.bf16.mxu0 0
        %429 = vmatpush1.bf16.msra.mxu0 0
        %430 = vmatprep.subr.bf16.mxu0 0
        %431 = vmatpush1.bf16.msra.mxu0 0
        %432 = vmatprep.subr.bf16.mxu0 0
        %433 = vmatpush1.bf16.msra.mxu0 0
        %434 = vmatprep.subr.bf16.mxu0 0
        %435 = vmatpush1.bf16.msra.mxu0 0
        %436 = vmatprep.subr.bf16.mxu0 0
        %437 = vmatpush1.bf16.msra.mxu0 0
        %438 = vmatprep.subr.bf16.mxu0 0
        %439 = vmatpush1.bf16.msra.mxu0 0
        %440 = vmatprep.subr.bf16.mxu0 0
        %441 = vmatpush1.bf16.msra.mxu0 0
        %442 = vmatprep.subr.bf16.mxu0 0
        %443 = vmatpush1.bf16.msra.mxu0 0
        %444 = vmatprep.mubr.bf16.mxu0 0
        %445 = vmatmul.mubr.bf16.gmra.mrb[0].mxu0 %v367
        %v446 = vpop.f32.mrb[0].mxu0
        %v447 = vadd.f32 %v253, %v446
        %v448 = vpop.f32.mrb[0].mxu0
        %v449 = vadd.f32 %v253, %v448
        %v450 = vpop.f32.mrb[0].mxu0
        %v451 = vadd.f32 %v258, %v450
        %v452 = vpop.f32.mrb[0].mxu0
        %v453 = vadd.f32 %v258, %v452
        %454 = vdwg.mxu0
        %v455 = vmul.f32 %v404, 0.5
        %v456 = vmul.f32 %v406, 0.5
        %v457 = vmul.f32 %v447, 0.5
        %v458 = vmul.f32 %v449, 0.5
        %v459 = vmul.f32 %v408, 0.5
        %v460 = vmul.f32 %v410, 0.5
        %v461 = vmul.f32 %v451, 0.5
        %v462 = vmul.f32 %v453, 0.5
        %v463 = vtanh.pop %v455
        %v464 = vtanh.pop %v456
        %v465 = vtanh.pop %v457
        %v466 = vtanh.pop %v458
        %v467 = vtanh.pop %v459
        %v468 = vtanh.pop %v460
        %v469 = vtanh.pop %v461
        %v470 = vtanh.pop %v462
        %v471 = vadd.f32 %v463, 1.0
        %v472 = vadd.f32 %v464, 1.0
        %v473 = vadd.f32 %v465, 1.0
        %v474 = vadd.f32 %v466, 1.0
        %v475 = vadd.f32 %v467, 1.0
        %v476 = vadd.f32 %v468, 1.0
        %v477 = vadd.f32 %v469, 1.0
        %v478 = vadd.f32 %v470, 1.0
        %v479 = vmul.f32 %v471, 0.5
        %v480 = vmul.f32 %v472, 0.5
        %v481 = vmul.f32 %v473, 0.5
        %v482 = vmul.f32 %v474, 0.5
        %v483 = vmul.f32 %v475, 0.5
        %v484 = vmul.f32 %v476, 0.5
        %v485 = vmul.f32 %v477, 0.5
        %v486 = vmul.f32 %v478, 0.5
        %487 = vst [vmem:[%s222] sm:$0xff] %v479
        %488 = vst [vmem:[%s222 + $0x8] sm:$0xff] %v480
        %489 = vst [vmem:[%s222 + $0x10] sm:$0xff] %v481
        %490 = vst [vmem:[%s222 + $0x18] sm:$0xff] %v482
        %491 = vst [vmem:[%s222 + $0x20] sm:$0xff] %v483
        %492 = vst [vmem:[%s222 + $0x28] sm:$0xff] %v484
        %493 = vst [vmem:[%s222 + $0x30] sm:$0xff] %v485
        %494 = vst [vmem:[%s222 + $0x38] sm:$0xff] %v486
        %s495 = sand.u32 %s90, 1
        %s496 = sand.u32 %s90, 1
        %s497 = smul.addr %s496, 64
        %s498 = scalar_lea.vmem [#allocation3], %s497
        // Predicated region
        $region56: #{mmdvae_forward.19} parent=50 // pred_check
          %p499 = pneg %p100
        $region57: #{mmdvae_forward.19} parent=50 // pred_check_branch
          %501 = sbr.rel (%p499) target = $region59
        $region58: #{mmdvae_forward.19} parent=50 // pred_region
          %s502 = smul.u32 4, %s14
          %s503 = smul.addr %s502, 8
          %s504 = scalar_lea.vmem %s3, %s503
          // Predicated region
          $region60: #{mmdvae_forward.19} parent=58 // pred_check
            _
          $region61: #{mmdvae_forward.19} parent=58 // pred_check_branch
            %506 = sbr.rel (0) target = $region63
          $region62: #{mmdvae_forward.19} parent=58 // pred_region
            // Predicated region
            $region64: #{mmdvae_forward.19} parent=62 // pred_check
              _
            $region65: #{mmdvae_forward.19} parent=62 // pred_check_branch
              %508 = sbr.rel (0) target = $region67
            $region66: #{mmdvae_forward.19} parent=62 // pred_region
              loop: start=0, step=1, limit=1
              $region68: #{mmdvae_forward.19} parent=66 // loop_pre_header
                _
              $region69: #{mmdvae_forward.19} parent=66 // loop_header
                %s510 = sphi 0, %s514
                %p511 = scmp.ge.s32.totalorder %s510, 1
                %s515 = sphi %s498, %s498
                %s516 = sphi %s504, %s504
              $region70: #{mmdvae_forward.19} parent=66 // loop_header_branch
                %513 = sbr.rel (%p511) target = $region74
              $region71: #{mmdvae_forward.19} parent=66 // loop_body
                %v517 = vld [vmem:[%s515] sm:$0xff]
                %518 = vst [vmem:[%s516] sm:$0xff] %v517
                %v519 = vld [vmem:[%s515 + $0x8] sm:$0xff]
                %520 = vst [vmem:[%s516 + $0x8] sm:$0xff] %v519
                %v521 = vld [vmem:[%s515 + $0x10] sm:$0xff]
                %522 = vst [vmem:[%s516 + $0x10] sm:$0xff] %v521
                %v523 = vld [vmem:[%s515 + $0x18] sm:$0xff]
                %524 = vst [vmem:[%s516 + $0x18] sm:$0xff] %v523
                %v525 = vld [vmem:[%s515 + $0x20] sm:$0xff]
                %526 = vst [vmem:[%s516 + $0x80] sm:$0xff] %v525
                %v527 = vld [vmem:[%s515 + $0x28] sm:$0xff]
                %528 = vst [vmem:[%s516 + $0x88] sm:$0xff] %v527
                %v529 = vld [vmem:[%s515 + $0x30] sm:$0xff]
                %530 = vst [vmem:[%s516 + $0x90] sm:$0xff] %v529
                %v531 = vld [vmem:[%s515 + $0x38] sm:$0xff]
                %532 = vst [vmem:[%s516 + $0x98] sm:$0xff] %v531
              $region72: #{mmdvae_forward.19} parent=66 // loop_footer
                %s514 = sadd.s32 1, %s510
              $region73: #{mmdvae_forward.19} parent=66 // loop_footer_branch
                %509 = sbr.rel target = $region69
              $region74: #{mmdvae_forward.19} parent=66 // loop_exit
                _
            $region67: #{mmdvae_forward.19} parent=62 // pred_fallthru
              _
            // Predicated region
            $region75: #{mmdvae_forward.19} parent=62 // pred_check
              _
            $region76: #{mmdvae_forward.19} parent=62 // pred_check_branch
              %534 = sbr.rel target = $region78
            $region77: #{mmdvae_forward.19} parent=62 // pred_region
              _
            $region78: #{mmdvae_forward.19} parent=62 // pred_fallthru
              _
          $region63: #{mmdvae_forward.19} parent=58 // pred_fallthru
            _
          %535 = vnop
        $region59: #{mmdvae_forward.19} parent=50 // pred_fallthru
          _
      $region51: #{mmdvae_forward.19} parent=5 // pred_fallthru
        _
      %p536 = scmp.le.s32.totalorder 2, %s9
      // Predicated region
      $region79: #{mmdvae_forward.19} parent=5 // pred_check
        %p537 = pneg %p536
      $region80: #{mmdvae_forward.19} parent=5 // pred_check_branch
        %539 = sbr.rel (%p537) target = $region82
      $region81: #{mmdvae_forward.19} parent=5 // pred_region
        %s540 = ssub.s32 %s9, 2
        // Predicated region
        $region83: #{mmdvae_forward.19} parent=81 // pred_check
          %p541 = pneg %p106
        $region84: #{mmdvae_forward.19} parent=81 // pred_check_branch
          %543 = sbr.rel (%p541) target = $region86
        $region85: #{mmdvae_forward.19} parent=81 // pred_region
          %s544 = sand.u32 %s91, 1
          %s545 = sand.u32 %s91, 1
          %s546 = smul.addr %s545, 64
          %s547 = scalar_lea.vmem [#allocation3], %s546
        $region86: #{mmdvae_forward.19} parent=81 // pred_fallthru
          _
      $region82: #{mmdvae_forward.19} parent=5 // pred_fallthru
        _
    $region6: #{mmdvae_forward.19} parent=1 // loop_footer
      %s13 = sadd.s32 1, %s9
    $region7: #{mmdvae_forward.19} parent=1 // loop_footer_branch
      %8 = sbr.rel target = $region3
    $region8: #{mmdvae_forward.19} parent=1 // loop_exit
      _

</llo_original>
